<compile_context>
chip_gen: v6e
topology: v6e:2x2x1
jax: 0.10.0
libtpu: 0.0.40
codegen_flags: <defaults>
</compile_context>

<pallas_src>
import jax
import jax.numpy as jnp
import numpy as np
from jax.experimental import pallas as pl
from jax.experimental.pallas import tpu as pltpu  # noqa: F401  (TPU backend)

# ---- model dimensions (small, consistent with the module) ----
N, S, E, H, FE = 2, 8, 32, 4, 2      # batch, seq, embed, heads, forward_expansion
D = E // H                           # head_dim
HID = FE * E                         # feed-forward hidden
NS = N * S                           # flattened rows
EPS = 1e-5                           # nn.LayerNorm default eps
SCALE = float(E) ** 0.5              # embed_size ** (1/2)
assert HID == 2 * E                  # packing splits wf1/wf2/bf1 into two E-wide halves


# ---------------- in-kernel helpers (traced into the kernel body) --------------
def _layernorm(x2, g, b):
    mu = jnp.mean(x2, axis=-1, keepdims=True)
    var = jnp.mean((x2 - mu) ** 2, axis=-1, keepdims=True)
    return (x2 - mu) * jax.lax.rsqrt(var + EPS) * g + b


def _split_heads(t2):
    # (NS, E) -> (H*N, S, D), batch index b = h*N + n.  Lane slices + an
    # outer-dim stack; the reshape only splits/merges tile-aligned outer dims.
    parts = [t2[:, h * D:(h + 1) * D] for h in range(H)]      # H x (NS, D)
    return jnp.stack(parts, axis=0).reshape(H * N, S, D)


def _merge_heads(t3):
    # (H*N, S, D) -> (NS, E) with head h occupying lanes [h*D, (h+1)*D).
    t = t3.reshape(H, NS, D)
    return jnp.concatenate([t[h] for h in range(H)], axis=-1)


def _proj(t3, w):
    # shared per-head (D, D) projection applied over the last dim.
    return jnp.dot(t3.reshape(H * N * S, D), w,
                   preferred_element_type=jnp.float32).reshape(H * N, S, D)


def _attention(vh, kh, qh, bias, wv, wk, wq, wo, bo):
    """SelfAttention(values, keys, query, mask) with all heads batched.

    vh/kh/qh: (H*N, S, D) head-split inputs; wq already carries 1/sqrt(E).
    bias: (N, S, S) additive f32 mask (0 keep / -1e20 masked); broadcast over
    heads.  One score einsum, one masked softmax, one PV einsum, one fc_out.
    (Adding -1e20 vs masked_fill(-1e20)/sqrt(E): both saturate exp() to 0.)
    """
    v = _proj(vh, wv)
    k = _proj(kh, wk)
    q = _proj(qh, wq)
    s = jnp.einsum('bqd,bkd->bqk', q, k,
                   preferred_element_type=jnp.float32)          # (H*N, S, S)
    s = s.reshape(H, N, S, S) + bias                            # mask as a VPU add
    m = jnp.max(s, axis=-1, keepdims=True)
    p = jnp.exp(s - m)
    denom = jnp.sum(p, axis=-1, keepdims=True)
    p = (p * pl.reciprocal(denom, approx=False)).reshape(H * N, S, S)
    ctx = jnp.einsum('bqk,bkd->bqd', p, v,
                     preferred_element_type=jnp.float32)        # (H*N, S, D)
    return jnp.dot(_merge_heads(ctx), wo,
                   preferred_element_type=jnp.float32) + bo


# ---------------- the Pallas kernel: whole batch in one invocation -------------
def decoder_block_kernel(xvk_ref, hw_ref, bw_ref, vec_ref, bias_ref, out_ref):
    xvk = xvk_ref[...]                       # (3*NS, E) rows: [x ; value ; key]
    x = xvk[0:NS]
    value = xvk[NS:2 * NS]
    key = xvk[2 * NS:3 * NS]

    hw = hw_ref[...]     # (6, D, D): wq1/sqrt(E), wk1, wv1, wq2/sqrt(E), wk2, wv2
    bw = bw_ref[...]     # (6, E, E): wo1, wo2, wf1[:, :E], wf1[:, E:], wf2[:E], wf2[E:]
    vec = vec_ref[...]   # (11, E):   bo1,bo2,gn,bn,g1,b1,g2,b2,bf2,bf1[:E],bf1[E:]
    bias = bias_ref[...]  # (2, N, S, S) additive masks: [trg, src]

    bo1, bo2 = vec[0:1], vec[1:2]
    gn, bn = vec[2:3], vec[3:4]
    g1, b1 = vec[4:5], vec[5:6]
    g2, b2 = vec[6:7], vec[7:8]
    bf2 = vec[8:9]
    bf1a, bf1b = vec[9:10], vec[10:11]

    # ---- decoder self-attention: attention(x, x, x, trg_mask) ----
    xh = _split_heads(x)
    attn = _attention(xh, xh, xh, bias[0], hw[2], hw[1], hw[0], bw[0], bo1)
    # query = dropout(norm(attention + x))   (dropout == identity in eval)
    query = _layernorm(attn + x, gn, bn)

    # ---- TransformerBlock: attention(value, key, query, src_mask) ----
    attn2 = _attention(_split_heads(value), _split_heads(key),
                       _split_heads(query), bias[1],
                       hw[5], hw[4], hw[3], bw[1], bo2)
    x2 = _layernorm(attn2 + query, g1, b1)

    # ---- feed-forward: Linear -> ReLU -> Linear (HID handled as two E halves,
    #      so every matmul stays an (.,E)@(E,E) tile; ReLU/bias commute with the split)
    ha = jnp.maximum(jnp.dot(x2, bw[2], preferred_element_type=jnp.float32) + bf1a, 0.0)
    hb = jnp.maximum(jnp.dot(x2, bw[3], preferred_element_type=jnp.float32) + bf1b, 0.0)
    ff = (jnp.dot(ha, bw[4], preferred_element_type=jnp.float32)
          + jnp.dot(hb, bw[5], preferred_element_type=jnp.float32) + bf2)

    # TODO(synk): output last dim (E=32) < 128 lanes -> masked stores; negligible
    # at this size, repack lane-dense only if a bundle dump shows it matters.
    out_ref[...] = _layernorm(ff + x2, g2, b2)


# ---------------- wrapper -------------------------------------------------------
def pack_params(p):
    """One-time transform: 20 tensors -> 3 packed operands."""
    row = lambda v: v.reshape(1, -1)
    hw = jnp.stack([p['wq1'] / SCALE, p['wk1'], p['wv1'],
                    p['wq2'] / SCALE, p['wk2'], p['wv2']], axis=0)           # (6, D, D)
    bw = jnp.stack([p['wo1'], p['wo2'],
                    p['wf1'][:, :E], p['wf1'][:, E:],
                    p['wf2'][:E, :], p['wf2'][E:, :]], axis=0)               # (6, E, E)
    vec = jnp.concatenate(
        [row(p['bo1']), row(p['bo2']), row(p['gn']), row(p['bn']),
         row(p['g1']), row(p['b1']), row(p['g2']), row(p['b2']),
         row(p['bf2']), row(p['bf1'][:E]), row(p['bf1'][E:])], axis=0)       # (11, E)
    return hw, bw, vec


def decoder_block(x, value, key, src_mask, trg_mask, packed):
    hw, bw, vec = packed
    # Flatten + fuse the three activations into one operand (pure layout plumbing).
    xvk = jnp.concatenate(
        [x.reshape(NS, E), value.reshape(NS, E), key.reshape(NS, E)], axis=0)
    # Pre-bake both masks as one f32 additive-bias operand.
    bias = jnp.stack(
        [jnp.where(trg_mask != 0, 0.0, -1e20),
         jnp.where(src_mask != 0, 0.0, -1e20)], axis=0).astype(jnp.float32)
    out = pl.pallas_call(
        decoder_block_kernel,
        out_shape=jax.ShapeDtypeStruct((NS, E), jnp.float32),
    )(xvk, hw, bw, vec, bias)
    return out.reshape(N, S, E)


# ---------------- pure-JAX reference (torch semantics) --------------------------
def _ref_attention(vals, keys, qs, mask, wv, wk, wq, wo, bo):
    n = qs.shape[0]
    v = vals.reshape(n, -1, H, D) @ wv
    k = keys.reshape(n, -1, H, D) @ wk
    q = qs.reshape(n, -1, H, D) @ wq
    energy = jnp.einsum('nqhd,nkhd->nhqk', q, k)
    energy = jnp.where(mask[:, None] == 0, -1e20, energy)
    att = jax.nn.softmax(energy / SCALE, axis=3)
    out = jnp.einsum('nhql,nlhd->nqhd', att, v).reshape(n, -1, E)
    return out @ wo + bo


def _ref_layernorm(x, g, b):
    mu = jnp.mean(x, axis=-1, keepdims=True)
    var = jnp.mean((x - mu) ** 2, axis=-1, keepdims=True)
    return (x - mu) / jnp.sqrt(var + EPS) * g + b


def ref_decoder_block(x, value, key, src_mask, trg_mask, p):
    attn = _ref_attention(x, x, x, trg_mask, p['wv1'], p['wk1'], p['wq1'], p['wo1'], p['bo1'])
    query = _ref_layernorm(attn + x, p['gn'], p['bn'])
    attn2 = _ref_attention(value, key, query, src_mask, p['wv2'], p['wk2'], p['wq2'], p['wo2'], p['bo2'])
    x2 = _ref_layernorm(attn2 + query, p['g1'], p['b1'])
    ff = jnp.maximum(x2 @ p['wf1'] + p['bf1'], 0.0) @ p['wf2'] + p['bf2']
    return _ref_layernorm(ff + x2, p['g2'], p['b2'])


# ---------------- main ----------------------------------------------------------
if __name__ == "__main__":
    root = jax.random.PRNGKey(0)
    ks = jax.random.split(root, 32)
    rnd = lambda i, shape, s=0.2: (s * jax.random.normal(ks[i], shape)).astype(jnp.float32)

    # per-head (D, D) projections shared across heads (matches nn.Linear(head_dim, head_dim))
    p = dict(
        wq1=rnd(0, (D, D)), wk1=rnd(1, (D, D)), wv1=rnd(2, (D, D)),
        wo1=rnd(3, (E, E)), bo1=rnd(4, (E,)),
        wq2=rnd(5, (D, D)), wk2=rnd(6, (D, D)), wv2=rnd(7, (D, D)),
        wo2=rnd(8, (E, E)), bo2=rnd(9, (E,)),
        gn=1.0 + rnd(10, (E,)), bn=rnd(11, (E,)),
        g1=1.0 + rnd(12, (E,)), b1=rnd(13, (E,)),
        g2=1.0 + rnd(14, (E,)), b2=rnd(15, (E,)),
        wf1=rnd(16, (E, HID)), bf1=rnd(17, (HID,)),
        wf2=rnd(18, (HID, E)), bf2=rnd(19, (E,)),
    )

    # inputs
    x = rnd(20, (N, S, E), 1.0)
    value = rnd(21, (N, S, E), 1.0)
    key = rnd(22, (N, S, E), 1.0)
    trg_mask = jnp.broadcast_to(
        jnp.tril(jnp.ones((S, S), jnp.int32)), (N, S, S)).astype(jnp.int32)
    src_mask = jnp.ones((N, S, S), jnp.int32)

    packed = pack_params(p)

    out = decoder_block(x, value, key, src_mask, trg_mask, packed)
    out = jax.block_until_ready(out)

    ref = ref_decoder_block(x, value, key, src_mask, trg_mask, p)
    np.testing.assert_allclose(np.asarray(out), np.asarray(ref), atol=2e-4, rtol=2e-4)

    print("KERNEL_OK")
</pallas_src>

<mosaic_0001>
module attributes {stable_mosaic.version = 11 : i64} {
  func.func @decoder_block_kernel(%arg0: memref<48x32xf32, #tpu.memory_space<vmem>>, %arg1: memref<6x8x8xf32, #tpu.memory_space<vmem>>, %arg2: memref<6x32x32xf32, #tpu.memory_space<vmem>>, %arg3: memref<11x32xf32, #tpu.memory_space<vmem>>, %arg4: memref<2x2x8x8xf32, #tpu.memory_space<vmem>>, %arg5: memref<16x32xf32, #tpu.memory_space<vmem>>) attributes {dimension_semantics = [], scalar_prefetch = 0 : i64, scratch_operands = 0 : i64, tpu.core_type = #tpu.core_type<tc>} {
    %c0 = arith.constant 0 : index
    %c0_0 = arith.constant 0 : index
    %0 = vector.load %arg0[%c0, %c0_0] : memref<48x32xf32, #tpu.memory_space<vmem>>, vector<48x32xf32>
    %1 = vector.extract_strided_slice %0 {offsets = [0, 0], sizes = [16, 32], strides = [1, 1]} : vector<48x32xf32> to vector<16x32xf32>
    %2 = vector.extract_strided_slice %0 {offsets = [16, 0], sizes = [16, 32], strides = [1, 1]} : vector<48x32xf32> to vector<16x32xf32>
    %3 = vector.extract_strided_slice %0 {offsets = [32, 0], sizes = [16, 32], strides = [1, 1]} : vector<48x32xf32> to vector<16x32xf32>
    %c0_1 = arith.constant 0 : index
    %c0_2 = arith.constant 0 : index
    %c0_3 = arith.constant 0 : index
    %4 = vector.load %arg1[%c0_1, %c0_2, %c0_3] : memref<6x8x8xf32, #tpu.memory_space<vmem>>, vector<6x8x8xf32>
    %c0_4 = arith.constant 0 : index
    %c0_5 = arith.constant 0 : index
    %c0_6 = arith.constant 0 : index
    %5 = vector.load %arg2[%c0_4, %c0_5, %c0_6] : memref<6x32x32xf32, #tpu.memory_space<vmem>>, vector<6x32x32xf32>
    %c0_7 = arith.constant 0 : index
    %c0_8 = arith.constant 0 : index
    %6 = vector.load %arg3[%c0_7, %c0_8] : memref<11x32xf32, #tpu.memory_space<vmem>>, vector<11x32xf32>
    %c0_9 = arith.constant 0 : index
    %c0_10 = arith.constant 0 : index
    %c0_11 = arith.constant 0 : index
    %c0_12 = arith.constant 0 : index
    %7 = vector.load %arg4[%c0_9, %c0_10, %c0_11, %c0_12] : memref<2x2x8x8xf32, #tpu.memory_space<vmem>>, vector<2x2x8x8xf32>
    %8 = vector.extract_strided_slice %6 {offsets = [0, 0], sizes = [1, 32], strides = [1, 1]} : vector<11x32xf32> to vector<1x32xf32>
    %9 = vector.extract_strided_slice %6 {offsets = [1, 0], sizes = [1, 32], strides = [1, 1]} : vector<11x32xf32> to vector<1x32xf32>
    %10 = vector.extract_strided_slice %6 {offsets = [2, 0], sizes = [1, 32], strides = [1, 1]} : vector<11x32xf32> to vector<1x32xf32>
    %11 = vector.extract_strided_slice %6 {offsets = [3, 0], sizes = [1, 32], strides = [1, 1]} : vector<11x32xf32> to vector<1x32xf32>
    %12 = vector.extract_strided_slice %6 {offsets = [4, 0], sizes = [1, 32], strides = [1, 1]} : vector<11x32xf32> to vector<1x32xf32>
    %13 = vector.extract_strided_slice %6 {offsets = [5, 0], sizes = [1, 32], strides = [1, 1]} : vector<11x32xf32> to vector<1x32xf32>
    %14 = vector.extract_strided_slice %6 {offsets = [6, 0], sizes = [1, 32], strides = [1, 1]} : vector<11x32xf32> to vector<1x32xf32>
    %15 = vector.extract_strided_slice %6 {offsets = [7, 0], sizes = [1, 32], strides = [1, 1]} : vector<11x32xf32> to vector<1x32xf32>
    %16 = vector.extract_strided_slice %6 {offsets = [8, 0], sizes = [1, 32], strides = [1, 1]} : vector<11x32xf32> to vector<1x32xf32>
    %17 = vector.extract_strided_slice %6 {offsets = [9, 0], sizes = [1, 32], strides = [1, 1]} : vector<11x32xf32> to vector<1x32xf32>
    %18 = vector.extract_strided_slice %6 {offsets = [10, 0], sizes = [1, 32], strides = [1, 1]} : vector<11x32xf32> to vector<1x32xf32>
    %19 = vector.extract_strided_slice %1 {offsets = [0, 0], sizes = [16, 8], strides = [1, 1]} : vector<16x32xf32> to vector<16x8xf32>
    %20 = vector.extract_strided_slice %1 {offsets = [0, 8], sizes = [16, 8], strides = [1, 1]} : vector<16x32xf32> to vector<16x8xf32>
    %21 = vector.extract_strided_slice %1 {offsets = [0, 16], sizes = [16, 8], strides = [1, 1]} : vector<16x32xf32> to vector<16x8xf32>
    %22 = vector.extract_strided_slice %1 {offsets = [0, 24], sizes = [16, 8], strides = [1, 1]} : vector<16x32xf32> to vector<16x8xf32>
    %23 = vector.shape_cast %19 : vector<16x8xf32> to vector<1x16x8xf32>
    %24 = vector.shape_cast %20 : vector<16x8xf32> to vector<1x16x8xf32>
    %25 = vector.shape_cast %21 : vector<16x8xf32> to vector<1x16x8xf32>
    %26 = vector.shape_cast %22 : vector<16x8xf32> to vector<1x16x8xf32>
    %27 = tpu.concatenate %23, %24, %25, %26 in 0 : vector<1x16x8xf32>, vector<1x16x8xf32>, vector<1x16x8xf32>, vector<1x16x8xf32> -> vector<4x16x8xf32>
    %28 = vector.shape_cast %27 : vector<4x16x8xf32> to vector<8x8x8xf32>
    %29 = vector.extract_strided_slice %7 {offsets = [0, 0, 0, 0], sizes = [1, 2, 8, 8], strides = [1, 1, 1, 1]} : vector<2x2x8x8xf32> to vector<1x2x8x8xf32>
    %30 = vector.shape_cast %29 : vector<1x2x8x8xf32> to vector<2x8x8xf32>
    %31 = vector.extract_strided_slice %4 {offsets = [2, 0, 0], sizes = [1, 8, 8], strides = [1, 1, 1]} : vector<6x8x8xf32> to vector<1x8x8xf32>
    %32 = vector.shape_cast %31 : vector<1x8x8xf32> to vector<8x8xf32>
    %33 = vector.extract_strided_slice %4 {offsets = [1, 0, 0], sizes = [1, 8, 8], strides = [1, 1, 1]} : vector<6x8x8xf32> to vector<1x8x8xf32>
    %34 = vector.shape_cast %33 : vector<1x8x8xf32> to vector<8x8xf32>
    %35 = vector.extract_strided_slice %4 {offsets = [0, 0, 0], sizes = [1, 8, 8], strides = [1, 1, 1]} : vector<6x8x8xf32> to vector<1x8x8xf32>
    %36 = vector.shape_cast %35 : vector<1x8x8xf32> to vector<8x8xf32>
    %37 = vector.extract_strided_slice %5 {offsets = [0, 0, 0], sizes = [1, 32, 32], strides = [1, 1, 1]} : vector<6x32x32xf32> to vector<1x32x32xf32>
    %38 = vector.shape_cast %37 : vector<1x32x32xf32> to vector<32x32xf32>
    %39 = vector.shape_cast %28 : vector<8x8x8xf32> to vector<64x8xf32>
    %cst = arith.constant dense<0.000000e+00> : vector<64x8xf32>
    %40 = tpu.matmul %39, %32, %cst {dimension_numbers = #tpu.dot_dimension_numbers<[1], [0], [0], [1], [0, 0, 1, 1], [], []>} : vector<64x8xf32>, vector<8x8xf32>, vector<64x8xf32> -> vector<64x8xf32>
    %41 = vector.shape_cast %40 : vector<64x8xf32> to vector<8x8x8xf32>
    %42 = vector.shape_cast %28 : vector<8x8x8xf32> to vector<64x8xf32>
    %cst_13 = arith.constant dense<0.000000e+00> : vector<64x8xf32>
    %43 = tpu.matmul %42, %34, %cst_13 {dimension_numbers = #tpu.dot_dimension_numbers<[1], [0], [0], [1], [0, 0, 1, 1], [], []>} : vector<64x8xf32>, vector<8x8xf32>, vector<64x8xf32> -> vector<64x8xf32>
    %44 = vector.shape_cast %43 : vector<64x8xf32> to vector<8x8x8xf32>
    %45 = vector.shape_cast %28 : vector<8x8x8xf32> to vector<64x8xf32>
    %cst_14 = arith.constant dense<0.000000e+00> : vector<64x8xf32>
    %46 = tpu.matmul %45, %36, %cst_14 {dimension_numbers = #tpu.dot_dimension_numbers<[1], [0], [0], [1], [0, 0, 1, 1], [], []>} : vector<64x8xf32>, vector<8x8xf32>, vector<64x8xf32> -> vector<64x8xf32>
    %47 = vector.shape_cast %46 : vector<64x8xf32> to vector<8x8x8xf32>
    "tpu.trace_start"() <{level = 10 : i32, message = "bqd,bkd->bqk"}> : () -> ()
    %cst_15 = arith.constant dense<0.000000e+00> : vector<8x8x8xf32>
    %48 = tpu.matmul %47, %44, %cst_15 {dimension_numbers = #tpu.dot_dimension_numbers<[2], [2], [1], [1], [0, 0, 0, 1, 1, 1], [0], [0]>} : vector<8x8x8xf32>, vector<8x8x8xf32>, vector<8x8x8xf32> -> vector<8x8x8xf32>
    "tpu.trace_stop"() : () -> ()
    %49 = vector.shape_cast %48 : vector<8x8x8xf32> to vector<4x2x8x8xf32>
    %50 = vector.shape_cast %30 : vector<2x8x8xf32> to vector<1x2x8x8xf32>
    %51 = vector.broadcast %50 : vector<1x2x8x8xf32> to vector<4x2x8x8xf32>
    %52 = arith.addf %49, %51 : vector<4x2x8x8xf32>
    %cst_16 = arith.constant dense<0xFF800000> : vector<4x2x8xf32>
    %53 = vector.multi_reduction <maximumf>, %52, %cst_16 [3] : vector<4x2x8x8xf32> to vector<4x2x8xf32>
    %54 = vector.shape_cast %53 : vector<4x2x8xf32> to vector<4x2x8x1xf32>
    %55 = vector.broadcast %54 : vector<4x2x8x1xf32> to vector<4x2x8x8xf32>
    %56 = arith.subf %52, %55 : vector<4x2x8x8xf32>
    %57 = math.exp %56 : vector<4x2x8x8xf32>
    %cst_17 = arith.constant dense<0.000000e+00> : vector<4x2x8xf32>
    %58 = vector.multi_reduction <add>, %57, %cst_17 [3] : vector<4x2x8x8xf32> to vector<4x2x8xf32>
    %59 = vector.shape_cast %58 : vector<4x2x8xf32> to vector<4x2x8x1xf32>
    %60 = tpu.reciprocal %59 : vector<4x2x8x1xf32> -> vector<4x2x8x1xf32>
    %61 = vector.broadcast %60 : vector<4x2x8x1xf32> to vector<4x2x8x8xf32>
    %62 = arith.mulf %57, %61 : vector<4x2x8x8xf32>
    %63 = vector.shape_cast %62 : vector<4x2x8x8xf32> to vector<8x8x8xf32>
    "tpu.trace_start"() <{level = 10 : i32, message = "bqk,bkd->bqd"}> : () -> ()
    %cst_18 = arith.constant dense<0.000000e+00> : vector<8x8x8xf32>
    %64 = tpu.matmul %63, %41, %cst_18 {dimension_numbers = #tpu.dot_dimension_numbers<[2], [1], [1], [2], [0, 0, 0, 1, 1, 2], [0], [0]>} : vector<8x8x8xf32>, vector<8x8x8xf32>, vector<8x8x8xf32> -> vector<8x8x8xf32>
    "tpu.trace_stop"() : () -> ()
    %65 = vector.shape_cast %64 : vector<8x8x8xf32> to vector<4x16x8xf32>
    %66 = vector.extract_strided_slice %65 {offsets = [0, 0, 0], sizes = [1, 16, 8], strides = [1, 1, 1]} : vector<4x16x8xf32> to vector<1x16x8xf32>
    %67 = vector.shape_cast %66 : vector<1x16x8xf32> to vector<16x8xf32>
    %68 = vector.extract_strided_slice %65 {offsets = [1, 0, 0], sizes = [1, 16, 8], strides = [1, 1, 1]} : vector<4x16x8xf32> to vector<1x16x8xf32>
    %69 = vector.shape_cast %68 : vector<1x16x8xf32> to vector<16x8xf32>
    %70 = vector.extract_strided_slice %65 {offsets = [2, 0, 0], sizes = [1, 16, 8], strides = [1, 1, 1]} : vector<4x16x8xf32> to vector<1x16x8xf32>
    %71 = vector.shape_cast %70 : vector<1x16x8xf32> to vector<16x8xf32>
    %72 = vector.extract_strided_slice %65 {offsets = [3, 0, 0], sizes = [1, 16, 8], strides = [1, 1, 1]} : vector<4x16x8xf32> to vector<1x16x8xf32>
    %73 = vector.shape_cast %72 : vector<1x16x8xf32> to vector<16x8xf32>
    %74 = tpu.concatenate %67, %69, %71, %73 in 1 : vector<16x8xf32>, vector<16x8xf32>, vector<16x8xf32>, vector<16x8xf32> -> vector<16x32xf32>
    %cst_19 = arith.constant dense<0.000000e+00> : vector<16x32xf32>
    %75 = tpu.matmul %74, %38, %cst_19 {dimension_numbers = #tpu.dot_dimension_numbers<[1], [0], [0], [1], [0, 0, 1, 1], [], []>} : vector<16x32xf32>, vector<32x32xf32>, vector<16x32xf32> -> vector<16x32xf32>
    %76 = vector.broadcast %8 : vector<1x32xf32> to vector<16x32xf32>
    %77 = arith.addf %75, %76 : vector<16x32xf32>
    %78 = arith.addf %77, %1 : vector<16x32xf32>
    %cst_20 = arith.constant dense<0.000000e+00> : vector<16xf32>
    %79 = vector.multi_reduction <add>, %78, %cst_20 [1] : vector<16x32xf32> to vector<16xf32>
    %80 = vector.shape_cast %79 : vector<16xf32> to vector<16x1xf32>
    %cst_21 = arith.constant 3.200000e+01 : f32
    %81 = vector.broadcast %cst_21 : f32 to vector<16x1xf32>
    %82 = arith.divf %80, %81 : vector<16x1xf32>
    %83 = vector.broadcast %82 : vector<16x1xf32> to vector<16x32xf32>
    %84 = arith.subf %78, %83 : vector<16x32xf32>
    %85 = arith.mulf %84, %84 : vector<16x32xf32>
    %cst_22 = arith.constant dense<0.000000e+00> : vector<16xf32>
    %86 = vector.multi_reduction <add>, %85, %cst_22 [1] : vector<16x32xf32> to vector<16xf32>
    %87 = vector.shape_cast %86 : vector<16xf32> to vector<16x1xf32>
    %cst_23 = arith.constant 3.200000e+01 : f32
    %88 = vector.broadcast %cst_23 : f32 to vector<16x1xf32>
    %89 = arith.divf %87, %88 : vector<16x1xf32>
    %90 = vector.broadcast %82 : vector<16x1xf32> to vector<16x32xf32>
    %91 = arith.subf %78, %90 : vector<16x32xf32>
    %cst_24 = arith.constant 9.99999974E-6 : f32
    %92 = vector.broadcast %cst_24 : f32 to vector<16x1xf32>
    %93 = arith.addf %89, %92 : vector<16x1xf32>
    %94 = math.rsqrt %93 : vector<16x1xf32>
    %95 = vector.broadcast %94 : vector<16x1xf32> to vector<16x32xf32>
    %96 = arith.mulf %91, %95 : vector<16x32xf32>
    %97 = vector.broadcast %10 : vector<1x32xf32> to vector<16x32xf32>
    %98 = arith.mulf %96, %97 : vector<16x32xf32>
    %99 = vector.broadcast %11 : vector<1x32xf32> to vector<16x32xf32>
    %100 = arith.addf %98, %99 : vector<16x32xf32>
    %101 = vector.extract_strided_slice %2 {offsets = [0, 0], sizes = [16, 8], strides = [1, 1]} : vector<16x32xf32> to vector<16x8xf32>
    %102 = vector.extract_strided_slice %2 {offsets = [0, 8], sizes = [16, 8], strides = [1, 1]} : vector<16x32xf32> to vector<16x8xf32>
    %103 = vector.extract_strided_slice %2 {offsets = [0, 16], sizes = [16, 8], strides = [1, 1]} : vector<16x32xf32> to vector<16x8xf32>
    %104 = vector.extract_strided_slice %2 {offsets = [0, 24], sizes = [16, 8], strides = [1, 1]} : vector<16x32xf32> to vector<16x8xf32>
    %105 = vector.shape_cast %101 : vector<16x8xf32> to vector<1x16x8xf32>
    %106 = vector.shape_cast %102 : vector<16x8xf32> to vector<1x16x8xf32>
    %107 = vector.shape_cast %103 : vector<16x8xf32> to vector<1x16x8xf32>
    %108 = vector.shape_cast %104 : vector<16x8xf32> to vector<1x16x8xf32>
    %109 = tpu.concatenate %105, %106, %107, %108 in 0 : vector<1x16x8xf32>, vector<1x16x8xf32>, vector<1x16x8xf32>, vector<1x16x8xf32> -> vector<4x16x8xf32>
    %110 = vector.shape_cast %109 : vector<4x16x8xf32> to vector<8x8x8xf32>
    %111 = vector.extract_strided_slice %3 {offsets = [0, 0], sizes = [16, 8], strides = [1, 1]} : vector<16x32xf32> to vector<16x8xf32>
    %112 = vector.extract_strided_slice %3 {offsets = [0, 8], sizes = [16, 8], strides = [1, 1]} : vector<16x32xf32> to vector<16x8xf32>
    %113 = vector.extract_strided_slice %3 {offsets = [0, 16], sizes = [16, 8], strides = [1, 1]} : vector<16x32xf32> to vector<16x8xf32>
    %114 = vector.extract_strided_slice %3 {offsets = [0, 24], sizes = [16, 8], strides = [1, 1]} : vector<16x32xf32> to vector<16x8xf32>
    %115 = vector.shape_cast %111 : vector<16x8xf32> to vector<1x16x8xf32>
    %116 = vector.shape_cast %112 : vector<16x8xf32> to vector<1x16x8xf32>
    %117 = vector.shape_cast %113 : vector<16x8xf32> to vector<1x16x8xf32>
    %118 = vector.shape_cast %114 : vector<16x8xf32> to vector<1x16x8xf32>
    %119 = tpu.concatenate %115, %116, %117, %118 in 0 : vector<1x16x8xf32>, vector<1x16x8xf32>, vector<1x16x8xf32>, vector<1x16x8xf32> -> vector<4x16x8xf32>
    %120 = vector.shape_cast %119 : vector<4x16x8xf32> to vector<8x8x8xf32>
    %121 = vector.extract_strided_slice %100 {offsets = [0, 0], sizes = [16, 8], strides = [1, 1]} : vector<16x32xf32> to vector<16x8xf32>
    %122 = vector.extract_strided_slice %100 {offsets = [0, 8], sizes = [16, 8], strides = [1, 1]} : vector<16x32xf32> to vector<16x8xf32>
    %123 = vector.extract_strided_slice %100 {offsets = [0, 16], sizes = [16, 8], strides = [1, 1]} : vector<16x32xf32> to vector<16x8xf32>
    %124 = vector.extract_strided_slice %100 {offsets = [0, 24], sizes = [16, 8], strides = [1, 1]} : vector<16x32xf32> to vector<16x8xf32>
    %125 = vector.shape_cast %121 : vector<16x8xf32> to vector<1x16x8xf32>
    %126 = vector.shape_cast %122 : vector<16x8xf32> to vector<1x16x8xf32>
    %127 = vector.shape_cast %123 : vector<16x8xf32> to vector<1x16x8xf32>
    %128 = vector.shape_cast %124 : vector<16x8xf32> to vector<1x16x8xf32>
    %129 = tpu.concatenate %125, %126, %127, %128 in 0 : vector<1x16x8xf32>, vector<1x16x8xf32>, vector<1x16x8xf32>, vector<1x16x8xf32> -> vector<4x16x8xf32>
    %130 = vector.shape_cast %129 : vector<4x16x8xf32> to vector<8x8x8xf32>
    %131 = vector.extract_strided_slice %7 {offsets = [1, 0, 0, 0], sizes = [1, 2, 8, 8], strides = [1, 1, 1, 1]} : vector<2x2x8x8xf32> to vector<1x2x8x8xf32>
    %132 = vector.shape_cast %131 : vector<1x2x8x8xf32> to vector<2x8x8xf32>
    %133 = vector.extract_strided_slice %4 {offsets = [5, 0, 0], sizes = [1, 8, 8], strides = [1, 1, 1]} : vector<6x8x8xf32> to vector<1x8x8xf32>
    %134 = vector.shape_cast %133 : vector<1x8x8xf32> to vector<8x8xf32>
    %135 = vector.extract_strided_slice %4 {offsets = [4, 0, 0], sizes = [1, 8, 8], strides = [1, 1, 1]} : vector<6x8x8xf32> to vector<1x8x8xf32>
    %136 = vector.shape_cast %135 : vector<1x8x8xf32> to vector<8x8xf32>
    %137 = vector.extract_strided_slice %4 {offsets = [3, 0, 0], sizes = [1, 8, 8], strides = [1, 1, 1]} : vector<6x8x8xf32> to vector<1x8x8xf32>
    %138 = vector.shape_cast %137 : vector<1x8x8xf32> to vector<8x8xf32>
    %139 = vector.extract_strided_slice %5 {offsets = [1, 0, 0], sizes = [1, 32, 32], strides = [1, 1, 1]} : vector<6x32x32xf32> to vector<1x32x32xf32>
    %140 = vector.shape_cast %139 : vector<1x32x32xf32> to vector<32x32xf32>
    %141 = vector.shape_cast %110 : vector<8x8x8xf32> to vector<64x8xf32>
    %cst_25 = arith.constant dense<0.000000e+00> : vector<64x8xf32>
    %142 = tpu.matmul %141, %134, %cst_25 {dimension_numbers = #tpu.dot_dimension_numbers<[1], [0], [0], [1], [0, 0, 1, 1], [], []>} : vector<64x8xf32>, vector<8x8xf32>, vector<64x8xf32> -> vector<64x8xf32>
    %143 = vector.shape_cast %142 : vector<64x8xf32> to vector<8x8x8xf32>
    %144 = vector.shape_cast %120 : vector<8x8x8xf32> to vector<64x8xf32>
    %cst_26 = arith.constant dense<0.000000e+00> : vector<64x8xf32>
    %145 = tpu.matmul %144, %136, %cst_26 {dimension_numbers = #tpu.dot_dimension_numbers<[1], [0], [0], [1], [0, 0, 1, 1], [], []>} : vector<64x8xf32>, vector<8x8xf32>, vector<64x8xf32> -> vector<64x8xf32>
    %146 = vector.shape_cast %145 : vector<64x8xf32> to vector<8x8x8xf32>
    %147 = vector.shape_cast %130 : vector<8x8x8xf32> to vector<64x8xf32>
    %cst_27 = arith.constant dense<0.000000e+00> : vector<64x8xf32>
    %148 = tpu.matmul %147, %138, %cst_27 {dimension_numbers = #tpu.dot_dimension_numbers<[1], [0], [0], [1], [0, 0, 1, 1], [], []>} : vector<64x8xf32>, vector<8x8xf32>, vector<64x8xf32> -> vector<64x8xf32>
    %149 = vector.shape_cast %148 : vector<64x8xf32> to vector<8x8x8xf32>
    "tpu.trace_start"() <{level = 10 : i32, message = "bqd,bkd->bqk"}> : () -> ()
    %cst_28 = arith.constant dense<0.000000e+00> : vector<8x8x8xf32>
    %150 = tpu.matmul %149, %146, %cst_28 {dimension_numbers = #tpu.dot_dimension_numbers<[2], [2], [1], [1], [0, 0, 0, 1, 1, 1], [0], [0]>} : vector<8x8x8xf32>, vector<8x8x8xf32>, vector<8x8x8xf32> -> vector<8x8x8xf32>
    "tpu.trace_stop"() : () -> ()
    %151 = vector.shape_cast %150 : vector<8x8x8xf32> to vector<4x2x8x8xf32>
    %152 = vector.shape_cast %132 : vector<2x8x8xf32> to vector<1x2x8x8xf32>
    %153 = vector.broadcast %152 : vector<1x2x8x8xf32> to vector<4x2x8x8xf32>
    %154 = arith.addf %151, %153 : vector<4x2x8x8xf32>
    %cst_29 = arith.constant dense<0xFF800000> : vector<4x2x8xf32>
    %155 = vector.multi_reduction <maximumf>, %154, %cst_29 [3] : vector<4x2x8x8xf32> to vector<4x2x8xf32>
    %156 = vector.shape_cast %155 : vector<4x2x8xf32> to vector<4x2x8x1xf32>
    %157 = vector.broadcast %156 : vector<4x2x8x1xf32> to vector<4x2x8x8xf32>
    %158 = arith.subf %154, %157 : vector<4x2x8x8xf32>
    %159 = math.exp %158 : vector<4x2x8x8xf32>
    %cst_30 = arith.constant dense<0.000000e+00> : vector<4x2x8xf32>
    %160 = vector.multi_reduction <add>, %159, %cst_30 [3] : vector<4x2x8x8xf32> to vector<4x2x8xf32>
    %161 = vector.shape_cast %160 : vector<4x2x8xf32> to vector<4x2x8x1xf32>
    %162 = tpu.reciprocal %161 : vector<4x2x8x1xf32> -> vector<4x2x8x1xf32>
    %163 = vector.broadcast %162 : vector<4x2x8x1xf32> to vector<4x2x8x8xf32>
    %164 = arith.mulf %159, %163 : vector<4x2x8x8xf32>
    %165 = vector.shape_cast %164 : vector<4x2x8x8xf32> to vector<8x8x8xf32>
    "tpu.trace_start"() <{level = 10 : i32, message = "bqk,bkd->bqd"}> : () -> ()
    %cst_31 = arith.constant dense<0.000000e+00> : vector<8x8x8xf32>
    %166 = tpu.matmul %165, %143, %cst_31 {dimension_numbers = #tpu.dot_dimension_numbers<[2], [1], [1], [2], [0, 0, 0, 1, 1, 2], [0], [0]>} : vector<8x8x8xf32>, vector<8x8x8xf32>, vector<8x8x8xf32> -> vector<8x8x8xf32>
    "tpu.trace_stop"() : () -> ()
    %167 = vector.shape_cast %166 : vector<8x8x8xf32> to vector<4x16x8xf32>
    %168 = vector.extract_strided_slice %167 {offsets = [0, 0, 0], sizes = [1, 16, 8], strides = [1, 1, 1]} : vector<4x16x8xf32> to vector<1x16x8xf32>
    %169 = vector.shape_cast %168 : vector<1x16x8xf32> to vector<16x8xf32>
    %170 = vector.extract_strided_slice %167 {offsets = [1, 0, 0], sizes = [1, 16, 8], strides = [1, 1, 1]} : vector<4x16x8xf32> to vector<1x16x8xf32>
    %171 = vector.shape_cast %170 : vector<1x16x8xf32> to vector<16x8xf32>
    %172 = vector.extract_strided_slice %167 {offsets = [2, 0, 0], sizes = [1, 16, 8], strides = [1, 1, 1]} : vector<4x16x8xf32> to vector<1x16x8xf32>
    %173 = vector.shape_cast %172 : vector<1x16x8xf32> to vector<16x8xf32>
    %174 = vector.extract_strided_slice %167 {offsets = [3, 0, 0], sizes = [1, 16, 8], strides = [1, 1, 1]} : vector<4x16x8xf32> to vector<1x16x8xf32>
    %175 = vector.shape_cast %174 : vector<1x16x8xf32> to vector<16x8xf32>
    %176 = tpu.concatenate %169, %171, %173, %175 in 1 : vector<16x8xf32>, vector<16x8xf32>, vector<16x8xf32>, vector<16x8xf32> -> vector<16x32xf32>
    %cst_32 = arith.constant dense<0.000000e+00> : vector<16x32xf32>
    %177 = tpu.matmul %176, %140, %cst_32 {dimension_numbers = #tpu.dot_dimension_numbers<[1], [0], [0], [1], [0, 0, 1, 1], [], []>} : vector<16x32xf32>, vector<32x32xf32>, vector<16x32xf32> -> vector<16x32xf32>
    %178 = vector.broadcast %9 : vector<1x32xf32> to vector<16x32xf32>
    %179 = arith.addf %177, %178 : vector<16x32xf32>
    %180 = arith.addf %179, %100 : vector<16x32xf32>
    %cst_33 = arith.constant dense<0.000000e+00> : vector<16xf32>
    %181 = vector.multi_reduction <add>, %180, %cst_33 [1] : vector<16x32xf32> to vector<16xf32>
    %182 = vector.shape_cast %181 : vector<16xf32> to vector<16x1xf32>
    %cst_34 = arith.constant 3.200000e+01 : f32
    %183 = vector.broadcast %cst_34 : f32 to vector<16x1xf32>
    %184 = arith.divf %182, %183 : vector<16x1xf32>
    %185 = vector.broadcast %184 : vector<16x1xf32> to vector<16x32xf32>
    %186 = arith.subf %180, %185 : vector<16x32xf32>
    %187 = arith.mulf %186, %186 : vector<16x32xf32>
    %cst_35 = arith.constant dense<0.000000e+00> : vector<16xf32>
    %188 = vector.multi_reduction <add>, %187, %cst_35 [1] : vector<16x32xf32> to vector<16xf32>
    %189 = vector.shape_cast %188 : vector<16xf32> to vector<16x1xf32>
    %cst_36 = arith.constant 3.200000e+01 : f32
    %190 = vector.broadcast %cst_36 : f32 to vector<16x1xf32>
    %191 = arith.divf %189, %190 : vector<16x1xf32>
    %192 = vector.broadcast %184 : vector<16x1xf32> to vector<16x32xf32>
    %193 = arith.subf %180, %192 : vector<16x32xf32>
    %cst_37 = arith.constant 9.99999974E-6 : f32
    %194 = vector.broadcast %cst_37 : f32 to vector<16x1xf32>
    %195 = arith.addf %191, %194 : vector<16x1xf32>
    %196 = math.rsqrt %195 : vector<16x1xf32>
    %197 = vector.broadcast %196 : vector<16x1xf32> to vector<16x32xf32>
    %198 = arith.mulf %193, %197 : vector<16x32xf32>
    %199 = vector.broadcast %12 : vector<1x32xf32> to vector<16x32xf32>
    %200 = arith.mulf %198, %199 : vector<16x32xf32>
    %201 = vector.broadcast %13 : vector<1x32xf32> to vector<16x32xf32>
    %202 = arith.addf %200, %201 : vector<16x32xf32>
    %203 = vector.extract_strided_slice %5 {offsets = [2, 0, 0], sizes = [1, 32, 32], strides = [1, 1, 1]} : vector<6x32x32xf32> to vector<1x32x32xf32>
    %204 = vector.shape_cast %203 : vector<1x32x32xf32> to vector<32x32xf32>
    %cst_38 = arith.constant dense<0.000000e+00> : vector<16x32xf32>
    %205 = tpu.matmul %202, %204, %cst_38 {dimension_numbers = #tpu.dot_dimension_numbers<[1], [0], [0], [1], [0, 0, 1, 1], [], []>} : vector<16x32xf32>, vector<32x32xf32>, vector<16x32xf32> -> vector<16x32xf32>
    %206 = vector.broadcast %17 : vector<1x32xf32> to vector<16x32xf32>
    %207 = arith.addf %205, %206 : vector<16x32xf32>
    %cst_39 = arith.constant 0.000000e+00 : f32
    %208 = vector.broadcast %cst_39 : f32 to vector<16x32xf32>
    %209 = arith.maximumf %207, %208 : vector<16x32xf32>
    %210 = vector.extract_strided_slice %5 {offsets = [3, 0, 0], sizes = [1, 32, 32], strides = [1, 1, 1]} : vector<6x32x32xf32> to vector<1x32x32xf32>
    %211 = vector.shape_cast %210 : vector<1x32x32xf32> to vector<32x32xf32>
    %cst_40 = arith.constant dense<0.000000e+00> : vector<16x32xf32>
    %212 = tpu.matmul %202, %211, %cst_40 {dimension_numbers = #tpu.dot_dimension_numbers<[1], [0], [0], [1], [0, 0, 1, 1], [], []>} : vector<16x32xf32>, vector<32x32xf32>, vector<16x32xf32> -> vector<16x32xf32>
    %213 = vector.broadcast %18 : vector<1x32xf32> to vector<16x32xf32>
    %214 = arith.addf %212, %213 : vector<16x32xf32>
    %cst_41 = arith.constant 0.000000e+00 : f32
    %215 = vector.broadcast %cst_41 : f32 to vector<16x32xf32>
    %216 = arith.maximumf %214, %215 : vector<16x32xf32>
    %217 = vector.extract_strided_slice %5 {offsets = [4, 0, 0], sizes = [1, 32, 32], strides = [1, 1, 1]} : vector<6x32x32xf32> to vector<1x32x32xf32>
    %218 = vector.shape_cast %217 : vector<1x32x32xf32> to vector<32x32xf32>
    %cst_42 = arith.constant dense<0.000000e+00> : vector<16x32xf32>
    %219 = tpu.matmul %209, %218, %cst_42 {dimension_numbers = #tpu.dot_dimension_numbers<[1], [0], [0], [1], [0, 0, 1, 1], [], []>} : vector<16x32xf32>, vector<32x32xf32>, vector<16x32xf32> -> vector<16x32xf32>
    %220 = vector.extract_strided_slice %5 {offsets = [5, 0, 0], sizes = [1, 32, 32], strides = [1, 1, 1]} : vector<6x32x32xf32> to vector<1x32x32xf32>
    %221 = vector.shape_cast %220 : vector<1x32x32xf32> to vector<32x32xf32>
    %cst_43 = arith.constant dense<0.000000e+00> : vector<16x32xf32>
    %222 = tpu.matmul %216, %221, %cst_43 {dimension_numbers = #tpu.dot_dimension_numbers<[1], [0], [0], [1], [0, 0, 1, 1], [], []>} : vector<16x32xf32>, vector<32x32xf32>, vector<16x32xf32> -> vector<16x32xf32>
    %223 = arith.addf %219, %222 : vector<16x32xf32>
    %224 = vector.broadcast %16 : vector<1x32xf32> to vector<16x32xf32>
    %225 = arith.addf %223, %224 : vector<16x32xf32>
    %226 = arith.addf %225, %202 : vector<16x32xf32>
    %cst_44 = arith.constant dense<0.000000e+00> : vector<16xf32>
    %227 = vector.multi_reduction <add>, %226, %cst_44 [1] : vector<16x32xf32> to vector<16xf32>
    %228 = vector.shape_cast %227 : vector<16xf32> to vector<16x1xf32>
    %cst_45 = arith.constant 3.200000e+01 : f32
    %229 = vector.broadcast %cst_45 : f32 to vector<16x1xf32>
    %230 = arith.divf %228, %229 : vector<16x1xf32>
    %231 = vector.broadcast %230 : vector<16x1xf32> to vector<16x32xf32>
    %232 = arith.subf %226, %231 : vector<16x32xf32>
    %233 = arith.mulf %232, %232 : vector<16x32xf32>
    %cst_46 = arith.constant dense<0.000000e+00> : vector<16xf32>
    %234 = vector.multi_reduction <add>, %233, %cst_46 [1] : vector<16x32xf32> to vector<16xf32>
    %235 = vector.shape_cast %234 : vector<16xf32> to vector<16x1xf32>
    %cst_47 = arith.constant 3.200000e+01 : f32
    %236 = vector.broadcast %cst_47 : f32 to vector<16x1xf32>
    %237 = arith.divf %235, %236 : vector<16x1xf32>
    %238 = vector.broadcast %230 : vector<16x1xf32> to vector<16x32xf32>
    %239 = arith.subf %226, %238 : vector<16x32xf32>
    %cst_48 = arith.constant 9.99999974E-6 : f32
    %240 = vector.broadcast %cst_48 : f32 to vector<16x1xf32>
    %241 = arith.addf %237, %240 : vector<16x1xf32>
    %242 = math.rsqrt %241 : vector<16x1xf32>
    %243 = vector.broadcast %242 : vector<16x1xf32> to vector<16x32xf32>
    %244 = arith.mulf %239, %243 : vector<16x32xf32>
    %245 = vector.broadcast %14 : vector<1x32xf32> to vector<16x32xf32>
    %246 = arith.mulf %244, %245 : vector<16x32xf32>
    %247 = vector.broadcast %15 : vector<1x32xf32> to vector<16x32xf32>
    %248 = arith.addf %246, %247 : vector<16x32xf32>
    %c0_49 = arith.constant 0 : index
    %c0_50 = arith.constant 0 : index
    %249 = vector.load %arg5[%c0_49, %c0_50] : memref<16x32xf32, #tpu.memory_space<vmem>>, vector<16x32xf32>
    tpu.vector_store %arg5[%c0_49, %c0_50], %248 {strides = array<i32>} : memref<16x32xf32, #tpu.memory_space<vmem>>, vector<16x32xf32>,
    return
  }
}

</mosaic_0001>

<llo_original>
// kernel: tpu_custom_call.1
$region0: #{tpu_custom_call.1}
  #allocation0 [shape = 'u32[]', space=smem, size = 0x4, offset = 0x4, fixed_abs, tag = 'smem constant byte address 0x4 - core index']
  #allocation1 [shape = 'u32[144,128]{1,0:T(1,128)}', space=vmem, size = 0x12000, scoped, tag = 'internal scratch']
  %s0 = inlined_call_operand.vmem [shape: f32[48,32], index: 0, kind: input, shape index: {}]
  %s1 = inlined_call_operand.vmem [shape: f32[6,8,8], index: 1, kind: input, shape index: {}]
  %s2 = inlined_call_operand.hbm [shape: f32[6,32,32], index: 2, kind: input, shape index: {}]
  %s3 = inlined_call_operand.hbm [shape: f32[11,32], index: 3, kind: input, shape index: {}]
  %s4 = inlined_call_operand.vmem [shape: f32[2,2,8,8], index: 4, kind: input, shape index: {}]
  %s5 = inlined_call_operand.hbm [shape: f32[16,32], index: 5, kind: output, shape index: {}]
  %s6 = sld [smem:[#allocation0]]
  $region38: #{tpu_custom_call.1} parent=0
    _
  %s8 = ssub.s32 1, %s6
  %s9 = scalar_select 0, %s8, %s6
  $region1: #{tpu_custom_call.1} parent=0
    #allocation2 [shape = 'u8[98304]{0}', space=vmem, size = 0x18000, scoped, tag = 'input window, operand 2, single buffered']
    #allocation3 [shape = 's32[1]{0}', space=sflag, size = 0x4, scoped, tag = 'scoped memory for tpu_custom_call.1']
    #allocation4 [shape = 's32[1]{0}', space=sflag, size = 0x4, scoped, tag = 'scoped memory for tpu_custom_call.1']
    #allocation5 [shape = 'u8[8192]{0}', space=vmem, size = 0x2000, scoped, tag = 'input window, operand 3, single buffered']
    #allocation6 [shape = 's32[1]{0}', space=sflag, size = 0x4, scoped, tag = 'scoped memory for tpu_custom_call.1']
    #allocation7 [shape = 'u8[8192]{0}', space=vmem, size = 0x2000, scoped, tag = 'output window, operand 0, single buffered']
    %10 = vsyncpa [#allocation3], 0
    %11 = vsyncpa [#allocation6], 0
    %12 = vsyncpa [#allocation4], 0
    // Predicated region
    $region2: #{tpu_custom_call.1} parent=1 // pred_check
      _
    $region3: #{tpu_custom_call.1} parent=1 // pred_check_branch
      %14 = sbr.rel (0) target = $region5
    $region4: #{tpu_custom_call.1} parent=1 // pred_region
      _
    $region5: #{tpu_custom_call.1} parent=1 // pred_fallthru
      _
    // Predicated region
    $region6: #{tpu_custom_call.1} parent=1 // pred_check
      _
    $region7: #{tpu_custom_call.1} parent=1 // pred_check_branch
      %16 = sbr.rel (0) target = $region9
    $region8: #{tpu_custom_call.1} parent=1 // pred_region
      _
    $region9: #{tpu_custom_call.1} parent=1 // pred_fallthru
      _
    // Predicated region
    $region10: #{tpu_custom_call.1} parent=1 // pred_check
      _
    $region11: #{tpu_custom_call.1} parent=1 // pred_check_branch
      %18 = sbr.rel (0) target = $region13
    $region12: #{tpu_custom_call.1} parent=1 // pred_region
      %s20 = ssub.s32 3072, 3072
      %21 = vsyncadd [#allocation3], %s20
      %s22 = sshll.u32 [#allocation2], 4
      %s23 = int_to_ptr.vmem [resolvable:$true] %s22
      %28 = dma.hbm_to_vmem [thread:$0]  %s2, 3072, %s23, [#allocation3], 128, 128, 8
    $region13: #{tpu_custom_call.1} parent=1 // pred_fallthru
      _
    // Predicated region
    $region14: #{tpu_custom_call.1} parent=1 // pred_check
      _
    $region15: #{tpu_custom_call.1} parent=1 // pred_check_branch
      %30 = sbr.rel (0) target = $region17
    $region16: #{tpu_custom_call.1} parent=1 // pred_region
      %s32 = ssub.s32 256, 256
      %33 = vsyncadd [#allocation6], %s32
      %s34 = sshll.u32 [#allocation5], 4
      %s35 = int_to_ptr.vmem [resolvable:$true] %s34
      %40 = dma.hbm_to_vmem [thread:$0]  %s3, 256, %s35, [#allocation6], 128, 128, 8
    $region17: #{tpu_custom_call.1} parent=1 // pred_fallthru
      _
    // Predicated region
    $region18: #{tpu_custom_call.1} parent=1 // pred_check
      _
    $region19: #{tpu_custom_call.1} parent=1 // pred_check_branch
      %42 = sbr.rel (0) target = $region21
    $region20: #{tpu_custom_call.1} parent=1 // pred_region
      _
    $region21: #{tpu_custom_call.1} parent=1 // pred_fallthru
      _
    // Predicated region
    $region22: #{tpu_custom_call.1} parent=1 // pred_check
      _
    $region23: #{tpu_custom_call.1} parent=1 // pred_check_branch
      %44 = sbr.rel (0) target = $region25
    $region24: #{tpu_custom_call.1} parent=1 // pred_region
      %45 = dma.done [#allocation3], 3072
    $region25: #{tpu_custom_call.1} parent=1 // pred_fallthru
      _
    // Predicated region
    $region26: #{tpu_custom_call.1} parent=1 // pred_check
      _
    $region27: #{tpu_custom_call.1} parent=1 // pred_check_branch
      %47 = sbr.rel (0) target = $region29
    $region28: #{tpu_custom_call.1} parent=1 // pred_region
      %48 = dma.done [#allocation6], 256
    $region29: #{tpu_custom_call.1} parent=1 // pred_fallthru
      _
    %v49 = vld [vmem:[%s0] sm:$0xff]
    %v50 = vld [vmem:[%s0 + $0x8] sm:$0xff]
    %v51 = vld [vmem:[%s0 + $0x10] sm:$0xff]
    %v52 = vld [vmem:[%s0 + $0x18] sm:$0xff]
    %v53 = vld [vmem:[%s0 + $0x20] sm:$0xff]
    %v54 = vld [vmem:[%s0 + $0x28] sm:$0xff]
    %v55 = vld [vmem:[%s1] sm:$0xff]
    %v56 = vld [vmem:[%s1 + $0x8] sm:$0xff]
    %v57 = vld [vmem:[%s1 + $0x10] sm:$0xff]
    %v58 = vld [vmem:[%s1 + $0x18] sm:$0xff]
    %v59 = vld [vmem:[%s1 + $0x20] sm:$0xff]
    %v60 = vld [vmem:[%s1 + $0x28] sm:$0xff]
    %v61 = vld [vmem:[#allocation2] sm:$0xff]
    %v62 = vld [vmem:[#allocation2 + $0x8] sm:$0xff]
    %v63 = vld [vmem:[#allocation2 + $0x10] sm:$0xff]
    %v64 = vld [vmem:[#allocation2 + $0x18] sm:$0xff]
    %v65 = vld [vmem:[#allocation2 + $0x20] sm:$0xff]
    %v66 = vld [vmem:[#allocation2 + $0x28] sm:$0xff]
    %v67 = vld [vmem:[#allocation2 + $0x30] sm:$0xff]
    %v68 = vld [vmem:[#allocation2 + $0x38] sm:$0xff]
    %v69 = vld [vmem:[#allocation2 + $0x40] sm:$0xff]
    %v70 = vld [vmem:[#allocation2 + $0x48] sm:$0xff]
    %v71 = vld [vmem:[#allocation2 + $0x50] sm:$0xff]
    %v72 = vld [vmem:[#allocation2 + $0x58] sm:$0xff]
    %v73 = vld [vmem:[#allocation2 + $0x60] sm:$0xff]
    %v74 = vld [vmem:[#allocation2 + $0x68] sm:$0xff]
    %v75 = vld [vmem:[#allocation2 + $0x70] sm:$0xff]
    %v76 = vld [vmem:[#allocation2 + $0x78] sm:$0xff]
    %v77 = vld [vmem:[#allocation2 + $0x80] sm:$0xff]
    %v78 = vld [vmem:[#allocation2 + $0x88] sm:$0xff]
    %v79 = vld [vmem:[#allocation2 + $0x90] sm:$0xff]
    %v80 = vld [vmem:[#allocation2 + $0x98] sm:$0xff]
    %v81 = vld [vmem:[#allocation2 + $0xa0] sm:$0xff]
    %v82 = vld [vmem:[#allocation2 + $0xa8] sm:$0xff]
    %v83 = vld [vmem:[#allocation2 + $0xb0] sm:$0xff]
    %v84 = vld [vmem:[#allocation2 + $0xb8] sm:$0xff]
    %v85 = vld [vmem:[#allocation5] sm:$0xff]
    %v86 = vld [vmem:[#allocation5 + $0x8] sm:$0x7]
    %v87 = vld [vmem:[%s4] sm:$0xff]
    %v88 = vld [vmem:[%s4 + $0x8] sm:$0xff]
    %v89 = vld [vmem:[%s4 + $0x10] sm:$0xff]
    %v90 = vld [vmem:[%s4 + $0x18] sm:$0xff]
    %93 = vrot.lane.b32.xlu0 %v49, 120
    %v94 = vpop.permute.xlu0 %93
    %95 = vrot.lane.b32.xlu0 %v50, 120
    %v96 = vpop.permute.xlu0 %95
    %97 = vrot.lane.b32.xlu0 %v49, 112
    %v98 = vpop.permute.xlu0 %97
    %99 = vrot.lane.b32.xlu0 %v50, 112
    %v100 = vpop.permute.xlu0 %99
    %101 = vrot.lane.b32.xlu0 %v49, 104
    %v102 = vpop.permute.xlu0 %101
    %103 = vrot.lane.b32.xlu0 %v50, 104
    %v104 = vpop.permute.xlu0 %103
    %vm105 = vcmask 64512
    %v106 = vsel %vm105, %v49, 0
    %v108 = vsel %vm105, %v50, 0
    %v110 = vsel %vm105, %v94, 0
    %v112 = vsel %vm105, %v96, 0
    %v114 = vsel %vm105, %v98, 0
    %v116 = vsel %vm105, %v100, 0
    %v118 = vsel %vm105, %v102, 0
    %v120 = vsel %vm105, %v104, 0
    %122 = vmatprep.subr.mxu0 0.0
    %123 = vmatpush1.msra.mxu0 0.0
    %124 = vmatprep.subr.mxu0 0.0
    %125 = vmatpush1.msra.mxu0 0.0
    %126 = vmatprep.subr.mxu0 0.0
    %127 = vmatpush1.msra.mxu0 0.0
    %128 = vmatprep.subr.mxu0 0.0
    %129 = vmatpush1.msra.mxu0 0.0
    %130 = vmatprep.subr.mxu0 0.0
    %131 = vmatpush1.msra.mxu0 0.0
    %132 = vmatprep.subr.mxu0 0.0
    %133 = vmatpush1.msra.mxu0 0.0
    %134 = vmatprep.subr.mxu0 0.0
    %135 = vmatpush1.msra.mxu0 0.0
    %136 = vmatprep.subr.mxu0 0.0
    %137 = vmatpush1.msra.mxu0 0.0
    %138 = vmatprep.subr.mxu0 0.0
    %139 = vmatpush1.msra.mxu0 0.0
    %140 = vmatprep.subr.mxu0 0.0
    %141 = vmatpush1.msra.mxu0 0.0
    %142 = vmatprep.subr.mxu0 0.0
    %143 = vmatpush1.msra.mxu0 0.0
    %144 = vmatprep.subr.mxu0 0.0
    %145 = vmatpush1.msra.mxu0 0.0
    %146 = vmatprep.subr.mxu0 0.0
    %147 = vmatpush1.msra.mxu0 0.0
    %148 = vmatprep.subr.mxu0 0.0
    %149 = vmatpush1.msra.mxu0 0.0
    %150 = vmatprep.subr.mxu0 0.0
    %151 = vmatpush1.msra.mxu0 0.0
    %152 = vmatprep.subr.mxu0 0.0
    %153 = vmatpush1.msra.mxu0 %v57
    %154 = vmatprep.subr.mxu0 0.0
    %155 = vmatpush2.msra.mxu0 0.0
    %156 = vmatprep.subr.mxu0 0.0
    %157 = vmatpush2.msra.mxu0 0.0
    %158 = vmatprep.subr.mxu0 0.0
    %159 = vmatpush2.msra.mxu0 0.0
    %160 = vmatprep.subr.mxu0 0.0
    %161 = vmatpush2.msra.mxu0 0.0
    %162 = vmatprep.subr.mxu0 0.0
    %163 = vmatpush2.msra.mxu0 0.0
    %164 = vmatprep.subr.mxu0 0.0
    %165 = vmatpush2.msra.mxu0 0.0
    %166 = vmatprep.subr.mxu0 0.0
    %167 = vmatpush2.msra.mxu0 0.0
    %168 = vmatprep.subr.mxu0 0.0
    %169 = vmatpush2.msra.mxu0 0.0
    %170 = vmatprep.subr.mxu0 0.0
    %171 = vmatpush2.msra.mxu0 0.0
    %172 = vmatprep.subr.mxu0 0.0
    %173 = vmatpush2.msra.mxu0 0.0
    %174 = vmatprep.subr.mxu0 0.0
    %175 = vmatpush2.msra.mxu0 0.0
    %176 = vmatprep.subr.mxu0 0.0
    %177 = vmatpush2.msra.mxu0 0.0
    %178 = vmatprep.subr.mxu0 0.0
    %179 = vmatpush2.msra.mxu0 0.0
    %180 = vmatprep.subr.mxu0 0.0
    %181 = vmatpush2.msra.mxu0 0.0
    %182 = vmatprep.subr.mxu0 0.0
    %183 = vmatpush2.msra.mxu0 0.0
    %184 = vmatprep.subr.mxu0 0.0
    %185 = vmatpush2.msra.mxu0 0.0
    %186 = vmatprep.mubr.f32.mxu0 0.0
    %187 = vmatmul.mubr.f32.gmra.mxu0 %v106
    %v188 = vpop.f32.mrf.mxu0
    %v189 = vadd.f32 0.0, %v188
    %v190 = vpop.f32.mrf.mxu0
    %191 = vmatprep.mubr.f32.mxu0 0.0
    %192 = vmatmul.mubr.f32.gmra.mxu0 %v108
    %v193 = vpop.f32.mrf.mxu0
    %v194 = vadd.f32 0.0, %v193
    %v195 = vpop.f32.mrf.mxu0
    %196 = vmatprep.mubr.f32.mxu0 0.0
    %197 = vmatmul.mubr.f32.gmra.mxu0 %v110
    %v198 = vpop.f32.mrf.mxu0
    %v199 = vadd.f32 0.0, %v198
    %v200 = vpop.f32.mrf.mxu0
    %201 = vmatprep.mubr.f32.mxu0 0.0
    %202 = vmatmul.mubr.f32.gmra.mxu0 %v112
    %v203 = vpop.f32.mrf.mxu0
    %v204 = vadd.f32 0.0, %v203
    %v205 = vpop.f32.mrf.mxu0
    %206 = vmatprep.mubr.f32.mxu0 0.0
    %207 = vmatmul.mubr.f32.gmra.mxu0 %v114
    %v208 = vpop.f32.mrf.mxu0
    %v209 = vadd.f32 0.0, %v208
    %v210 = vpop.f32.mrf.mxu0
    %211 = vmatprep.mubr.f32.mxu0 0.0
    %212 = vmatmul.mubr.f32.gmra.mxu0 %v116
    %v213 = vpop.f32.mrf.mxu0
    %v214 = vadd.f32 0.0, %v213
    %v215 = vpop.f32.mrf.mxu0
    %216 = vmatprep.mubr.f32.mxu0 0.0
    %217 = vmatmul.mubr.f32.gmra.mxu0 %v118
    %v218 = vpop.f32.mrf.mxu0
    %v219 = vadd.f32 0.0, %v218
    %v220 = vpop.f32.mrf.mxu0
    %221 = vmatprep.mubr.f32.mxu0 0.0
    %222 = vmatmul.mubr.f32.gmra.mxu0 %v120
    %v223 = vpop.f32.mrf.mxu0
    %v224 = vadd.f32 0.0, %v223
    %v225 = vpop.f32.mrf.mxu0
    %226 = vdwg.mxu0
    %227 = vmatprep.subr.mxu0 0.0
    %228 = vmatpush1.msra.mxu0 0.0
    %229 = vmatprep.subr.mxu0 0.0
    %230 = vmatpush1.msra.mxu0 0.0
    %231 = vmatprep.subr.mxu0 0.0
    %232 = vmatpush1.msra.mxu0 0.0
    %233 = vmatprep.subr.mxu0 0.0
    %234 = vmatpush1.msra.mxu0 0.0
    %235 = vmatprep.subr.mxu0 0.0
    %236 = vmatpush1.msra.mxu0 0.0
    %237 = vmatprep.subr.mxu0 0.0
    %238 = vmatpush1.msra.mxu0 0.0
    %239 = vmatprep.subr.mxu0 0.0
    %240 = vmatpush1.msra.mxu0 0.0
    %241 = vmatprep.subr.mxu0 0.0
    %242 = vmatpush1.msra.mxu0 0.0
    %243 = vmatprep.subr.mxu0 0.0
    %244 = vmatpush1.msra.mxu0 0.0
    %245 = vmatprep.subr.mxu0 0.0
    %246 = vmatpush1.msra.mxu0 0.0
    %247 = vmatprep.subr.mxu0 0.0
    %248 = vmatpush1.msra.mxu0 0.0
    %249 = vmatprep.subr.mxu0 0.0
    %250 = vmatpush1.msra.mxu0 0.0
    %251 = vmatprep.subr.mxu0 0.0
    %252 = vmatpush1.msra.mxu0 0.0
    %253 = vmatprep.subr.mxu0 0.0
    %254 = vmatpush1.msra.mxu0 0.0
    %255 = vmatprep.subr.mxu0 0.0
    %256 = vmatpush1.msra.mxu0 0.0
    %257 = vmatprep.subr.mxu0 0.0
    %258 = vmatpush1.msra.mxu0 %v56
    %259 = vmatprep.subr.mxu0 0.0
    %260 = vmatpush2.msra.mxu0 0.0
    %261 = vmatprep.subr.mxu0 0.0
    %262 = vmatpush2.msra.mxu0 0.0
    %263 = vmatprep.subr.mxu0 0.0
    %264 = vmatpush2.msra.mxu0 0.0
    %265 = vmatprep.subr.mxu0 0.0
    %266 = vmatpush2.msra.mxu0 0.0
    %267 = vmatprep.subr.mxu0 0.0
    %268 = vmatpush2.msra.mxu0 0.0
    %269 = vmatprep.subr.mxu0 0.0
    %270 = vmatpush2.msra.mxu0 0.0
    %271 = vmatprep.subr.mxu0 0.0
    %272 = vmatpush2.msra.mxu0 0.0
    %273 = vmatprep.subr.mxu0 0.0
    %274 = vmatpush2.msra.mxu0 0.0
    %275 = vmatprep.subr.mxu0 0.0
    %276 = vmatpush2.msra.mxu0 0.0
    %277 = vmatprep.subr.mxu0 0.0
    %278 = vmatpush2.msra.mxu0 0.0
    %279 = vmatprep.subr.mxu0 0.0
    %280 = vmatpush2.msra.mxu0 0.0
    %281 = vmatprep.subr.mxu0 0.0
    %282 = vmatpush2.msra.mxu0 0.0
    %283 = vmatprep.subr.mxu0 0.0
    %284 = vmatpush2.msra.mxu0 0.0
    %285 = vmatprep.subr.mxu0 0.0
    %286 = vmatpush2.msra.mxu0 0.0
    %287 = vmatprep.subr.mxu0 0.0
    %288 = vmatpush2.msra.mxu0 0.0
    %289 = vmatprep.subr.mxu0 0.0
    %290 = vmatpush2.msra.mxu0 0.0
    %291 = vmatprep.mubr.f32.mxu0 0.0
    %292 = vmatmul.mubr.f32.gmra.mxu0 %v106
    %v293 = vpop.f32.mrf.mxu0
    %v294 = vadd.f32 0.0, %v293
    %v295 = vpop.f32.mrf.mxu0
    %296 = vmatprep.mubr.f32.mxu0 0.0
    %297 = vmatmul.mubr.f32.gmra.mxu0 %v108
    %v298 = vpop.f32.mrf.mxu0
    %v299 = vadd.f32 0.0, %v298
    %v300 = vpop.f32.mrf.mxu0
    %301 = vmatprep.mubr.f32.mxu0 0.0
    %302 = vmatmul.mubr.f32.gmra.mxu0 %v110
    %v303 = vpop.f32.mrf.mxu0
    %v304 = vadd.f32 0.0, %v303
    %v305 = vpop.f32.mrf.mxu0
    %306 = vmatprep.mubr.f32.mxu0 0.0
    %307 = vmatmul.mubr.f32.gmra.mxu0 %v112
    %v308 = vpop.f32.mrf.mxu0
    %v309 = vadd.f32 0.0, %v308
    %v310 = vpop.f32.mrf.mxu0
    %311 = vmatprep.mubr.f32.mxu0 0.0
    %312 = vmatmul.mubr.f32.gmra.mxu0 %v114
    %v313 = vpop.f32.mrf.mxu0
    %v314 = vadd.f32 0.0, %v313
    %v315 = vpop.f32.mrf.mxu0
    %316 = vmatprep.mubr.f32.mxu0 0.0
    %317 = vmatmul.mubr.f32.gmra.mxu0 %v116
    %v318 = vpop.f32.mrf.mxu0
    %v319 = vadd.f32 0.0, %v318
    %v320 = vpop.f32.mrf.mxu0
    %321 = vmatprep.mubr.f32.mxu0 0.0
    %322 = vmatmul.mubr.f32.gmra.mxu0 %v118
    %v323 = vpop.f32.mrf.mxu0
    %v324 = vadd.f32 0.0, %v323
    %v325 = vpop.f32.mrf.mxu0
    %326 = vmatprep.mubr.f32.mxu0 0.0
    %327 = vmatmul.mubr.f32.gmra.mxu0 %v120
    %v328 = vpop.f32.mrf.mxu0
    %v329 = vadd.f32 0.0, %v328
    %v330 = vpop.f32.mrf.mxu0
    %331 = vdwg.mxu0
    %332 = vmatprep.subr.mxu0 0.0
    %333 = vmatpush1.msra.mxu0 0.0
    %334 = vmatprep.subr.mxu0 0.0
    %335 = vmatpush1.msra.mxu0 0.0
    %336 = vmatprep.subr.mxu0 0.0
    %337 = vmatpush1.msra.mxu0 0.0
    %338 = vmatprep.subr.mxu0 0.0
    %339 = vmatpush1.msra.mxu0 0.0
    %340 = vmatprep.subr.mxu0 0.0
    %341 = vmatpush1.msra.mxu0 0.0
    %342 = vmatprep.subr.mxu0 0.0
    %343 = vmatpush1.msra.mxu0 0.0
    %344 = vmatprep.subr.mxu0 0.0
    %345 = vmatpush1.msra.mxu0 0.0
    %346 = vmatprep.subr.mxu0 0.0
    %347 = vmatpush1.msra.mxu0 0.0
    %348 = vmatprep.subr.mxu0 0.0
    %349 = vmatpush1.msra.mxu0 0.0
    %350 = vmatprep.subr.mxu0 0.0
    %351 = vmatpush1.msra.mxu0 0.0
    %352 = vmatprep.subr.mxu0 0.0
    %353 = vmatpush1.msra.mxu0 0.0
    %354 = vmatprep.subr.mxu0 0.0
    %355 = vmatpush1.msra.mxu0 0.0
    %356 = vmatprep.subr.mxu0 0.0
    %357 = vmatpush1.msra.mxu0 0.0
    %358 = vmatprep.subr.mxu0 0.0
    %359 = vmatpush1.msra.mxu0 0.0
    %360 = vmatprep.subr.mxu0 0.0
    %361 = vmatpush1.msra.mxu0 0.0
    %362 = vmatprep.subr.mxu0 0.0
    %363 = vmatpush1.msra.mxu0 %v55
    %364 = vmatprep.subr.mxu0 0.0
    %365 = vmatpush2.msra.mxu0 0.0
    %366 = vmatprep.subr.mxu0 0.0
    %367 = vmatpush2.msra.mxu0 0.0
    %368 = vmatprep.subr.mxu0 0.0
    %369 = vmatpush2.msra.mxu0 0.0
    %370 = vmatprep.subr.mxu0 0.0
    %371 = vmatpush2.msra.mxu0 0.0
    %372 = vmatprep.subr.mxu0 0.0
    %373 = vmatpush2.msra.mxu0 0.0
    %374 = vmatprep.subr.mxu0 0.0
    %375 = vmatpush2.msra.mxu0 0.0
    %376 = vmatprep.subr.mxu0 0.0
    %377 = vmatpush2.msra.mxu0 0.0
    %378 = vmatprep.subr.mxu0 0.0
    %379 = vmatpush2.msra.mxu0 0.0
    %380 = vmatprep.subr.mxu0 0.0
    %381 = vmatpush2.msra.mxu0 0.0
    %382 = vmatprep.subr.mxu0 0.0
    %383 = vmatpush2.msra.mxu0 0.0
    %384 = vmatprep.subr.mxu0 0.0
    %385 = vmatpush2.msra.mxu0 0.0
    %386 = vmatprep.subr.mxu0 0.0
    %387 = vmatpush2.msra.mxu0 0.0
    %388 = vmatprep.subr.mxu0 0.0
    %389 = vmatpush2.msra.mxu0 0.0
    %390 = vmatprep.subr.mxu0 0.0
    %391 = vmatpush2.msra.mxu0 0.0
    %392 = vmatprep.subr.mxu0 0.0
    %393 = vmatpush2.msra.mxu0 0.0
    %394 = vmatprep.subr.mxu0 0.0
    %395 = vmatpush2.msra.mxu0 0.0
    %396 = vmatprep.mubr.f32.mxu0 0.0
    %397 = vmatmul.mubr.f32.gmra.mxu0 %v106
    %v398 = vpop.f32.mrf.mxu0
    %v399 = vadd.f32 0.0, %v398
    %v400 = vpop.f32.mrf.mxu0
    %401 = vmatprep.mubr.f32.mxu0 0.0
    %402 = vmatmul.mubr.f32.gmra.mxu0 %v108
    %v403 = vpop.f32.mrf.mxu0
    %v404 = vadd.f32 0.0, %v403
    %v405 = vpop.f32.mrf.mxu0
    %406 = vmatprep.mubr.f32.mxu0 0.0
    %407 = vmatmul.mubr.f32.gmra.mxu0 %v110
    %v408 = vpop.f32.mrf.mxu0
    %v409 = vadd.f32 0.0, %v408
    %v410 = vpop.f32.mrf.mxu0
    %411 = vmatprep.mubr.f32.mxu0 0.0
    %412 = vmatmul.mubr.f32.gmra.mxu0 %v112
    %v413 = vpop.f32.mrf.mxu0
    %v414 = vadd.f32 0.0, %v413
    %v415 = vpop.f32.mrf.mxu0
    %416 = vmatprep.mubr.f32.mxu0 0.0
    %417 = vmatmul.mubr.f32.gmra.mxu0 %v114
    %v418 = vpop.f32.mrf.mxu0
    %v419 = vadd.f32 0.0, %v418
    %v420 = vpop.f32.mrf.mxu0
    %421 = vmatprep.mubr.f32.mxu0 0.0
    %422 = vmatmul.mubr.f32.gmra.mxu0 %v116
    %v423 = vpop.f32.mrf.mxu0
    %v424 = vadd.f32 0.0, %v423
    %v425 = vpop.f32.mrf.mxu0
    %426 = vmatprep.mubr.f32.mxu0 0.0
    %427 = vmatmul.mubr.f32.gmra.mxu0 %v118
    %v428 = vpop.f32.mrf.mxu0
    %v429 = vadd.f32 0.0, %v428
    %v430 = vpop.f32.mrf.mxu0
    %431 = vmatprep.mubr.f32.mxu0 0.0
    %432 = vmatmul.mubr.f32.gmra.mxu0 %v120
    %v433 = vpop.f32.mrf.mxu0
    %v434 = vadd.f32 0.0, %v433
    %v435 = vpop.f32.mrf.mxu0
    %436 = vdwg.mxu0
    %v438 = vsel %vm105, %v399, 0
    %v441 = vsel %vm105, %v294, 0
    %443 = vmatprep.subr.mxu0 0.0
    %444 = vmatpush1.xpose.msra.mxu0 0.0
    %445 = vmatprep.subr.mxu0 0.0
    %446 = vmatpush1.xpose.msra.mxu0 0.0
    %447 = vmatprep.subr.mxu0 0.0
    %448 = vmatpush1.xpose.msra.mxu0 0.0
    %449 = vmatprep.subr.mxu0 0.0
    %450 = vmatpush1.xpose.msra.mxu0 0.0
    %451 = vmatprep.subr.mxu0 0.0
    %452 = vmatpush1.xpose.msra.mxu0 0.0
    %453 = vmatprep.subr.mxu0 0.0
    %454 = vmatpush1.xpose.msra.mxu0 0.0
    %455 = vmatprep.subr.mxu0 0.0
    %456 = vmatpush1.xpose.msra.mxu0 0.0
    %457 = vmatprep.subr.mxu0 0.0
    %458 = vmatpush1.xpose.msra.mxu0 0.0
    %459 = vmatprep.subr.mxu0 0.0
    %460 = vmatpush1.xpose.msra.mxu0 0.0
    %461 = vmatprep.subr.mxu0 0.0
    %462 = vmatpush1.xpose.msra.mxu0 0.0
    %463 = vmatprep.subr.mxu0 0.0
    %464 = vmatpush1.xpose.msra.mxu0 0.0
    %465 = vmatprep.subr.mxu0 0.0
    %466 = vmatpush1.xpose.msra.mxu0 0.0
    %467 = vmatprep.subr.mxu0 0.0
    %468 = vmatpush1.xpose.msra.mxu0 0.0
    %469 = vmatprep.subr.mxu0 0.0
    %470 = vmatpush1.xpose.msra.mxu0 0.0
    %471 = vmatprep.subr.mxu0 0.0
    %472 = vmatpush1.xpose.msra.mxu0 0.0
    %473 = vmatprep.subr.mxu0 0.0
    %474 = vmatpush1.xpose.msra.mxu0 %v441
    %475 = vmatprep.subr.mxu0 0.0
    %476 = vmatpush2.xpose.msra.mxu0 0.0
    %477 = vmatprep.subr.mxu0 0.0
    %478 = vmatpush2.xpose.msra.mxu0 0.0
    %479 = vmatprep.subr.mxu0 0.0
    %480 = vmatpush2.xpose.msra.mxu0 0.0
    %481 = vmatprep.subr.mxu0 0.0
    %482 = vmatpush2.xpose.msra.mxu0 0.0
    %483 = vmatprep.subr.mxu0 0.0
    %484 = vmatpush2.xpose.msra.mxu0 0.0
    %485 = vmatprep.subr.mxu0 0.0
    %486 = vmatpush2.xpose.msra.mxu0 0.0
    %487 = vmatprep.subr.mxu0 0.0
    %488 = vmatpush2.xpose.msra.mxu0 0.0
    %489 = vmatprep.subr.mxu0 0.0
    %490 = vmatpush2.xpose.msra.mxu0 0.0
    %491 = vmatprep.subr.mxu0 0.0
    %492 = vmatpush2.xpose.msra.mxu0 0.0
    %493 = vmatprep.subr.mxu0 0.0
    %494 = vmatpush2.xpose.msra.mxu0 0.0
    %495 = vmatprep.subr.mxu0 0.0
    %496 = vmatpush2.xpose.msra.mxu0 0.0
    %497 = vmatprep.subr.mxu0 0.0
    %498 = vmatpush2.xpose.msra.mxu0 0.0
    %499 = vmatprep.subr.mxu0 0.0
    %500 = vmatpush2.xpose.msra.mxu0 0.0
    %501 = vmatprep.subr.mxu0 0.0
    %502 = vmatpush2.xpose.msra.mxu0 0.0
    %503 = vmatprep.subr.mxu0 0.0
    %504 = vmatpush2.xpose.msra.mxu0 0.0
    %505 = vmatprep.subr.mxu0 0.0
    %506 = vmatpush2.xpose.msra.mxu0 0.0
    %507 = vmatprep.mubr.f32.mxu0 0.0
    %508 = vmatmul.mubr.f32.gmra.mxu0 %v438
    %v509 = vpop.f32.mrf.mxu0
    %v510 = vadd.f32 0.0, %v509
    %v511 = vpop.f32.mrf.mxu0
    %512 = vdwg.mxu0
    %v514 = vsel %vm105, %v404, 0
    %v517 = vsel %vm105, %v299, 0
    %519 = vmatprep.subr.mxu0 0.0
    %520 = vmatpush1.xpose.msra.mxu0 0.0
    %521 = vmatprep.subr.mxu0 0.0
    %522 = vmatpush1.xpose.msra.mxu0 0.0
    %523 = vmatprep.subr.mxu0 0.0
    %524 = vmatpush1.xpose.msra.mxu0 0.0
    %525 = vmatprep.subr.mxu0 0.0
    %526 = vmatpush1.xpose.msra.mxu0 0.0
    %527 = vmatprep.subr.mxu0 0.0
    %528 = vmatpush1.xpose.msra.mxu0 0.0
    %529 = vmatprep.subr.mxu0 0.0
    %530 = vmatpush1.xpose.msra.mxu0 0.0
    %531 = vmatprep.subr.mxu0 0.0
    %532 = vmatpush1.xpose.msra.mxu0 0.0
    %533 = vmatprep.subr.mxu0 0.0
    %534 = vmatpush1.xpose.msra.mxu0 0.0
    %535 = vmatprep.subr.mxu0 0.0
    %536 = vmatpush1.xpose.msra.mxu0 0.0
    %537 = vmatprep.subr.mxu0 0.0
    %538 = vmatpush1.xpose.msra.mxu0 0.0
    %539 = vmatprep.subr.mxu0 0.0
    %540 = vmatpush1.xpose.msra.mxu0 0.0
    %541 = vmatprep.subr.mxu0 0.0
    %542 = vmatpush1.xpose.msra.mxu0 0.0
    %543 = vmatprep.subr.mxu0 0.0
    %544 = vmatpush1.xpose.msra.mxu0 0.0
    %545 = vmatprep.subr.mxu0 0.0
    %546 = vmatpush1.xpose.msra.mxu0 0.0
    %547 = vmatprep.subr.mxu0 0.0
    %548 = vmatpush1.xpose.msra.mxu0 0.0
    %549 = vmatprep.subr.mxu0 0.0
    %550 = vmatpush1.xpose.msra.mxu0 %v517
    %551 = vmatprep.subr.mxu0 0.0
    %552 = vmatpush2.xpose.msra.mxu0 0.0
    %553 = vmatprep.subr.mxu0 0.0
    %554 = vmatpush2.xpose.msra.mxu0 0.0
    %555 = vmatprep.subr.mxu0 0.0
    %556 = vmatpush2.xpose.msra.mxu0 0.0
    %557 = vmatprep.subr.mxu0 0.0
    %558 = vmatpush2.xpose.msra.mxu0 0.0
    %559 = vmatprep.subr.mxu0 0.0
    %560 = vmatpush2.xpose.msra.mxu0 0.0
    %561 = vmatprep.subr.mxu0 0.0
    %562 = vmatpush2.xpose.msra.mxu0 0.0
    %563 = vmatprep.subr.mxu0 0.0
    %564 = vmatpush2.xpose.msra.mxu0 0.0
    %565 = vmatprep.subr.mxu0 0.0
    %566 = vmatpush2.xpose.msra.mxu0 0.0
    %567 = vmatprep.subr.mxu0 0.0
    %568 = vmatpush2.xpose.msra.mxu0 0.0
    %569 = vmatprep.subr.mxu0 0.0
    %570 = vmatpush2.xpose.msra.mxu0 0.0
    %571 = vmatprep.subr.mxu0 0.0
    %572 = vmatpush2.xpose.msra.mxu0 0.0
    %573 = vmatprep.subr.mxu0 0.0
    %574 = vmatpush2.xpose.msra.mxu0 0.0
    %575 = vmatprep.subr.mxu0 0.0
    %576 = vmatpush2.xpose.msra.mxu0 0.0
    %577 = vmatprep.subr.mxu0 0.0
    %578 = vmatpush2.xpose.msra.mxu0 0.0
    %579 = vmatprep.subr.mxu0 0.0
    %580 = vmatpush2.xpose.msra.mxu0 0.0
    %581 = vmatprep.subr.mxu0 0.0
    %582 = vmatpush2.xpose.msra.mxu0 0.0
    %583 = vmatprep.mubr.f32.mxu0 0.0
    %584 = vmatmul.mubr.f32.gmra.mxu0 %v514
    %v585 = vpop.f32.mrf.mxu0
    %v586 = vadd.f32 0.0, %v585
    %v587 = vpop.f32.mrf.mxu0
    %588 = vdwg.mxu0
    %v590 = vsel %vm105, %v409, 0
    %v593 = vsel %vm105, %v304, 0
    %595 = vmatprep.subr.mxu0 0.0
    %596 = vmatpush1.xpose.msra.mxu0 0.0
    %597 = vmatprep.subr.mxu0 0.0
    %598 = vmatpush1.xpose.msra.mxu0 0.0
    %599 = vmatprep.subr.mxu0 0.0
    %600 = vmatpush1.xpose.msra.mxu0 0.0
    %601 = vmatprep.subr.mxu0 0.0
    %602 = vmatpush1.xpose.msra.mxu0 0.0
    %603 = vmatprep.subr.mxu0 0.0
    %604 = vmatpush1.xpose.msra.mxu0 0.0
    %605 = vmatprep.subr.mxu0 0.0
    %606 = vmatpush1.xpose.msra.mxu0 0.0
    %607 = vmatprep.subr.mxu0 0.0
    %608 = vmatpush1.xpose.msra.mxu0 0.0
    %609 = vmatprep.subr.mxu0 0.0
    %610 = vmatpush1.xpose.msra.mxu0 0.0
    %611 = vmatprep.subr.mxu0 0.0
    %612 = vmatpush1.xpose.msra.mxu0 0.0
    %613 = vmatprep.subr.mxu0 0.0
    %614 = vmatpush1.xpose.msra.mxu0 0.0
    %615 = vmatprep.subr.mxu0 0.0
    %616 = vmatpush1.xpose.msra.mxu0 0.0
    %617 = vmatprep.subr.mxu0 0.0
    %618 = vmatpush1.xpose.msra.mxu0 0.0
    %619 = vmatprep.subr.mxu0 0.0
    %620 = vmatpush1.xpose.msra.mxu0 0.0
    %621 = vmatprep.subr.mxu0 0.0
    %622 = vmatpush1.xpose.msra.mxu0 0.0
    %623 = vmatprep.subr.mxu0 0.0
    %624 = vmatpush1.xpose.msra.mxu0 0.0
    %625 = vmatprep.subr.mxu0 0.0
    %626 = vmatpush1.xpose.msra.mxu0 %v593
    %627 = vmatprep.subr.mxu0 0.0
    %628 = vmatpush2.xpose.msra.mxu0 0.0
    %629 = vmatprep.subr.mxu0 0.0
    %630 = vmatpush2.xpose.msra.mxu0 0.0
    %631 = vmatprep.subr.mxu0 0.0
    %632 = vmatpush2.xpose.msra.mxu0 0.0
    %633 = vmatprep.subr.mxu0 0.0
    %634 = vmatpush2.xpose.msra.mxu0 0.0
    %635 = vmatprep.subr.mxu0 0.0
    %636 = vmatpush2.xpose.msra.mxu0 0.0
    %637 = vmatprep.subr.mxu0 0.0
    %638 = vmatpush2.xpose.msra.mxu0 0.0
    %639 = vmatprep.subr.mxu0 0.0
    %640 = vmatpush2.xpose.msra.mxu0 0.0
    %641 = vmatprep.subr.mxu0 0.0
    %642 = vmatpush2.xpose.msra.mxu0 0.0
    %643 = vmatprep.subr.mxu0 0.0
    %644 = vmatpush2.xpose.msra.mxu0 0.0
    %645 = vmatprep.subr.mxu0 0.0
    %646 = vmatpush2.xpose.msra.mxu0 0.0
    %647 = vmatprep.subr.mxu0 0.0
    %648 = vmatpush2.xpose.msra.mxu0 0.0
    %649 = vmatprep.subr.mxu0 0.0
    %650 = vmatpush2.xpose.msra.mxu0 0.0
    %651 = vmatprep.subr.mxu0 0.0
    %652 = vmatpush2.xpose.msra.mxu0 0.0
    %653 = vmatprep.subr.mxu0 0.0
    %654 = vmatpush2.xpose.msra.mxu0 0.0
    %655 = vmatprep.subr.mxu0 0.0
    %656 = vmatpush2.xpose.msra.mxu0 0.0
    %657 = vmatprep.subr.mxu0 0.0
    %658 = vmatpush2.xpose.msra.mxu0 0.0
    %659 = vmatprep.mubr.f32.mxu0 0.0
    %660 = vmatmul.mubr.f32.gmra.mxu0 %v590
    %v661 = vpop.f32.mrf.mxu0
    %v662 = vadd.f32 0.0, %v661
    %v663 = vpop.f32.mrf.mxu0
    %664 = vdwg.mxu0
    %v666 = vsel %vm105, %v414, 0
    %v669 = vsel %vm105, %v309, 0
    %671 = vmatprep.subr.mxu0 0.0
    %672 = vmatpush1.xpose.msra.mxu0 0.0
    %673 = vmatprep.subr.mxu0 0.0
    %674 = vmatpush1.xpose.msra.mxu0 0.0
    %675 = vmatprep.subr.mxu0 0.0
    %676 = vmatpush1.xpose.msra.mxu0 0.0
    %677 = vmatprep.subr.mxu0 0.0
    %678 = vmatpush1.xpose.msra.mxu0 0.0
    %679 = vmatprep.subr.mxu0 0.0
    %680 = vmatpush1.xpose.msra.mxu0 0.0
    %681 = vmatprep.subr.mxu0 0.0
    %682 = vmatpush1.xpose.msra.mxu0 0.0
    %683 = vmatprep.subr.mxu0 0.0
    %684 = vmatpush1.xpose.msra.mxu0 0.0
    %685 = vmatprep.subr.mxu0 0.0
    %686 = vmatpush1.xpose.msra.mxu0 0.0
    %687 = vmatprep.subr.mxu0 0.0
    %688 = vmatpush1.xpose.msra.mxu0 0.0
    %689 = vmatprep.subr.mxu0 0.0
    %690 = vmatpush1.xpose.msra.mxu0 0.0
    %691 = vmatprep.subr.mxu0 0.0
    %692 = vmatpush1.xpose.msra.mxu0 0.0
    %693 = vmatprep.subr.mxu0 0.0
    %694 = vmatpush1.xpose.msra.mxu0 0.0
    %695 = vmatprep.subr.mxu0 0.0
    %696 = vmatpush1.xpose.msra.mxu0 0.0
    %697 = vmatprep.subr.mxu0 0.0
    %698 = vmatpush1.xpose.msra.mxu0 0.0
    %699 = vmatprep.subr.mxu0 0.0
    %700 = vmatpush1.xpose.msra.mxu0 0.0
    %701 = vmatprep.subr.mxu0 0.0
    %702 = vmatpush1.xpose.msra.mxu0 %v669
    %703 = vmatprep.subr.mxu0 0.0
    %704 = vmatpush2.xpose.msra.mxu0 0.0
    %705 = vmatprep.subr.mxu0 0.0
    %706 = vmatpush2.xpose.msra.mxu0 0.0
    %707 = vmatprep.subr.mxu0 0.0
    %708 = vmatpush2.xpose.msra.mxu0 0.0
    %709 = vmatprep.subr.mxu0 0.0
    %710 = vmatpush2.xpose.msra.mxu0 0.0
    %711 = vmatprep.subr.mxu0 0.0
    %712 = vmatpush2.xpose.msra.mxu0 0.0
    %713 = vmatprep.subr.mxu0 0.0
    %714 = vmatpush2.xpose.msra.mxu0 0.0
    %715 = vmatprep.subr.mxu0 0.0
    %716 = vmatpush2.xpose.msra.mxu0 0.0
    %717 = vmatprep.subr.mxu0 0.0
    %718 = vmatpush2.xpose.msra.mxu0 0.0
    %719 = vmatprep.subr.mxu0 0.0
    %720 = vmatpush2.xpose.msra.mxu0 0.0
    %721 = vmatprep.subr.mxu0 0.0
    %722 = vmatpush2.xpose.msra.mxu0 0.0
    %723 = vmatprep.subr.mxu0 0.0
    %724 = vmatpush2.xpose.msra.mxu0 0.0
    %725 = vmatprep.subr.mxu0 0.0
    %726 = vmatpush2.xpose.msra.mxu0 0.0
    %727 = vmatprep.subr.mxu0 0.0
    %728 = vmatpush2.xpose.msra.mxu0 0.0
    %729 = vmatprep.subr.mxu0 0.0
    %730 = vmatpush2.xpose.msra.mxu0 0.0
    %731 = vmatprep.subr.mxu0 0.0
    %732 = vmatpush2.xpose.msra.mxu0 0.0
    %733 = vmatprep.subr.mxu0 0.0
    %734 = vmatpush2.xpose.msra.mxu0 0.0
    %735 = vmatprep.mubr.f32.mxu0 0.0
    %736 = vmatmul.mubr.f32.gmra.mxu0 %v666
    %v737 = vpop.f32.mrf.mxu0
    %v738 = vadd.f32 0.0, %v737
    %v739 = vpop.f32.mrf.mxu0
    %740 = vdwg.mxu0
    %v742 = vsel %vm105, %v419, 0
    %v745 = vsel %vm105, %v314, 0
    %747 = vmatprep.subr.mxu0 0.0
    %748 = vmatpush1.xpose.msra.mxu0 0.0
    %749 = vmatprep.subr.mxu0 0.0
    %750 = vmatpush1.xpose.msra.mxu0 0.0
    %751 = vmatprep.subr.mxu0 0.0
    %752 = vmatpush1.xpose.msra.mxu0 0.0
    %753 = vmatprep.subr.mxu0 0.0
    %754 = vmatpush1.xpose.msra.mxu0 0.0
    %755 = vmatprep.subr.mxu0 0.0
    %756 = vmatpush1.xpose.msra.mxu0 0.0
    %757 = vmatprep.subr.mxu0 0.0
    %758 = vmatpush1.xpose.msra.mxu0 0.0
    %759 = vmatprep.subr.mxu0 0.0
    %760 = vmatpush1.xpose.msra.mxu0 0.0
    %761 = vmatprep.subr.mxu0 0.0
    %762 = vmatpush1.xpose.msra.mxu0 0.0
    %763 = vmatprep.subr.mxu0 0.0
    %764 = vmatpush1.xpose.msra.mxu0 0.0
    %765 = vmatprep.subr.mxu0 0.0
    %766 = vmatpush1.xpose.msra.mxu0 0.0
    %767 = vmatprep.subr.mxu0 0.0
    %768 = vmatpush1.xpose.msra.mxu0 0.0
    %769 = vmatprep.subr.mxu0 0.0
    %770 = vmatpush1.xpose.msra.mxu0 0.0
    %771 = vmatprep.subr.mxu0 0.0
    %772 = vmatpush1.xpose.msra.mxu0 0.0
    %773 = vmatprep.subr.mxu0 0.0
    %774 = vmatpush1.xpose.msra.mxu0 0.0
    %775 = vmatprep.subr.mxu0 0.0
    %776 = vmatpush1.xpose.msra.mxu0 0.0
    %777 = vmatprep.subr.mxu0 0.0
    %778 = vmatpush1.xpose.msra.mxu0 %v745
    %779 = vmatprep.subr.mxu0 0.0
    %780 = vmatpush2.xpose.msra.mxu0 0.0
    %781 = vmatprep.subr.mxu0 0.0
    %782 = vmatpush2.xpose.msra.mxu0 0.0
    %783 = vmatprep.subr.mxu0 0.0
    %784 = vmatpush2.xpose.msra.mxu0 0.0
    %785 = vmatprep.subr.mxu0 0.0
    %786 = vmatpush2.xpose.msra.mxu0 0.0
    %787 = vmatprep.subr.mxu0 0.0
    %788 = vmatpush2.xpose.msra.mxu0 0.0
    %789 = vmatprep.subr.mxu0 0.0
    %790 = vmatpush2.xpose.msra.mxu0 0.0
    %791 = vmatprep.subr.mxu0 0.0
    %792 = vmatpush2.xpose.msra.mxu0 0.0
    %793 = vmatprep.subr.mxu0 0.0
    %794 = vmatpush2.xpose.msra.mxu0 0.0
    %795 = vmatprep.subr.mxu0 0.0
    %796 = vmatpush2.xpose.msra.mxu0 0.0
    %797 = vmatprep.subr.mxu0 0.0
    %798 = vmatpush2.xpose.msra.mxu0 0.0
    %799 = vmatprep.subr.mxu0 0.0
    %800 = vmatpush2.xpose.msra.mxu0 0.0
    %801 = vmatprep.subr.mxu0 0.0
    %802 = vmatpush2.xpose.msra.mxu0 0.0
    %803 = vmatprep.subr.mxu0 0.0
    %804 = vmatpush2.xpose.msra.mxu0 0.0
    %805 = vmatprep.subr.mxu0 0.0
    %806 = vmatpush2.xpose.msra.mxu0 0.0
    %807 = vmatprep.subr.mxu0 0.0
    %808 = vmatpush2.xpose.msra.mxu0 0.0
    %809 = vmatprep.subr.mxu0 0.0
    %810 = vmatpush2.xpose.msra.mxu0 0.0
    %811 = vmatprep.mubr.f32.mxu0 0.0
    %812 = vmatmul.mubr.f32.gmra.mxu0 %v742
    %v813 = vpop.f32.mrf.mxu0
    %v814 = vadd.f32 0.0, %v813
    %v815 = vpop.f32.mrf.mxu0
    %816 = vdwg.mxu0
    %v818 = vsel %vm105, %v424, 0
    %v821 = vsel %vm105, %v319, 0
    %823 = vmatprep.subr.mxu0 0.0
    %824 = vmatpush1.xpose.msra.mxu0 0.0
    %825 = vmatprep.subr.mxu0 0.0
    %826 = vmatpush1.xpose.msra.mxu0 0.0
    %827 = vmatprep.subr.mxu0 0.0
    %828 = vmatpush1.xpose.msra.mxu0 0.0
    %829 = vmatprep.subr.mxu0 0.0
    %830 = vmatpush1.xpose.msra.mxu0 0.0
    %831 = vmatprep.subr.mxu0 0.0
    %832 = vmatpush1.xpose.msra.mxu0 0.0
    %833 = vmatprep.subr.mxu0 0.0
    %834 = vmatpush1.xpose.msra.mxu0 0.0
    %835 = vmatprep.subr.mxu0 0.0
    %836 = vmatpush1.xpose.msra.mxu0 0.0
    %837 = vmatprep.subr.mxu0 0.0
    %838 = vmatpush1.xpose.msra.mxu0 0.0
    %839 = vmatprep.subr.mxu0 0.0
    %840 = vmatpush1.xpose.msra.mxu0 0.0
    %841 = vmatprep.subr.mxu0 0.0
    %842 = vmatpush1.xpose.msra.mxu0 0.0
    %843 = vmatprep.subr.mxu0 0.0
    %844 = vmatpush1.xpose.msra.mxu0 0.0
    %845 = vmatprep.subr.mxu0 0.0
    %846 = vmatpush1.xpose.msra.mxu0 0.0
    %847 = vmatprep.subr.mxu0 0.0
    %848 = vmatpush1.xpose.msra.mxu0 0.0
    %849 = vmatprep.subr.mxu0 0.0
    %850 = vmatpush1.xpose.msra.mxu0 0.0
    %851 = vmatprep.subr.mxu0 0.0
    %852 = vmatpush1.xpose.msra.mxu0 0.0
    %853 = vmatprep.subr.mxu0 0.0
    %854 = vmatpush1.xpose.msra.mxu0 %v821
    %855 = vmatprep.subr.mxu0 0.0
    %856 = vmatpush2.xpose.msra.mxu0 0.0
    %857 = vmatprep.subr.mxu0 0.0
    %858 = vmatpush2.xpose.msra.mxu0 0.0
    %859 = vmatprep.subr.mxu0 0.0
    %860 = vmatpush2.xpose.msra.mxu0 0.0
    %861 = vmatprep.subr.mxu0 0.0
    %862 = vmatpush2.xpose.msra.mxu0 0.0
    %863 = vmatprep.subr.mxu0 0.0
    %864 = vmatpush2.xpose.msra.mxu0 0.0
    %865 = vmatprep.subr.mxu0 0.0
    %866 = vmatpush2.xpose.msra.mxu0 0.0
    %867 = vmatprep.subr.mxu0 0.0
    %868 = vmatpush2.xpose.msra.mxu0 0.0
    %869 = vmatprep.subr.mxu0 0.0
    %870 = vmatpush2.xpose.msra.mxu0 0.0
    %871 = vmatprep.subr.mxu0 0.0
    %872 = vmatpush2.xpose.msra.mxu0 0.0
    %873 = vmatprep.subr.mxu0 0.0
    %874 = vmatpush2.xpose.msra.mxu0 0.0
    %875 = vmatprep.subr.mxu0 0.0
    %876 = vmatpush2.xpose.msra.mxu0 0.0
    %877 = vmatprep.subr.mxu0 0.0
    %878 = vmatpush2.xpose.msra.mxu0 0.0
    %879 = vmatprep.subr.mxu0 0.0
    %880 = vmatpush2.xpose.msra.mxu0 0.0
    %881 = vmatprep.subr.mxu0 0.0
    %882 = vmatpush2.xpose.msra.mxu0 0.0
    %883 = vmatprep.subr.mxu0 0.0
    %884 = vmatpush2.xpose.msra.mxu0 0.0
    %885 = vmatprep.subr.mxu0 0.0
    %886 = vmatpush2.xpose.msra.mxu0 0.0
    %887 = vmatprep.mubr.f32.mxu0 0.0
    %888 = vmatmul.mubr.f32.gmra.mxu0 %v818
    %v889 = vpop.f32.mrf.mxu0
    %v890 = vadd.f32 0.0, %v889
    %v891 = vpop.f32.mrf.mxu0
    %892 = vdwg.mxu0
    %v894 = vsel %vm105, %v429, 0
    %v897 = vsel %vm105, %v324, 0
    %899 = vmatprep.subr.mxu0 0.0
    %900 = vmatpush1.xpose.msra.mxu0 0.0
    %901 = vmatprep.subr.mxu0 0.0
    %902 = vmatpush1.xpose.msra.mxu0 0.0
    %903 = vmatprep.subr.mxu0 0.0
    %904 = vmatpush1.xpose.msra.mxu0 0.0
    %905 = vmatprep.subr.mxu0 0.0
    %906 = vmatpush1.xpose.msra.mxu0 0.0
    %907 = vmatprep.subr.mxu0 0.0
    %908 = vmatpush1.xpose.msra.mxu0 0.0
    %909 = vmatprep.subr.mxu0 0.0
    %910 = vmatpush1.xpose.msra.mxu0 0.0
    %911 = vmatprep.subr.mxu0 0.0
    %912 = vmatpush1.xpose.msra.mxu0 0.0
    %913 = vmatprep.subr.mxu0 0.0
    %914 = vmatpush1.xpose.msra.mxu0 0.0
    %915 = vmatprep.subr.mxu0 0.0
    %916 = vmatpush1.xpose.msra.mxu0 0.0
    %917 = vmatprep.subr.mxu0 0.0
    %918 = vmatpush1.xpose.msra.mxu0 0.0
    %919 = vmatprep.subr.mxu0 0.0
    %920 = vmatpush1.xpose.msra.mxu0 0.0
    %921 = vmatprep.subr.mxu0 0.0
    %922 = vmatpush1.xpose.msra.mxu0 0.0
    %923 = vmatprep.subr.mxu0 0.0
    %924 = vmatpush1.xpose.msra.mxu0 0.0
    %925 = vmatprep.subr.mxu0 0.0
    %926 = vmatpush1.xpose.msra.mxu0 0.0
    %927 = vmatprep.subr.mxu0 0.0
    %928 = vmatpush1.xpose.msra.mxu0 0.0
    %929 = vmatprep.subr.mxu0 0.0
    %930 = vmatpush1.xpose.msra.mxu0 %v897
    %931 = vmatprep.subr.mxu0 0.0
    %932 = vmatpush2.xpose.msra.mxu0 0.0
    %933 = vmatprep.subr.mxu0 0.0
    %934 = vmatpush2.xpose.msra.mxu0 0.0
    %935 = vmatprep.subr.mxu0 0.0
    %936 = vmatpush2.xpose.msra.mxu0 0.0
    %937 = vmatprep.subr.mxu0 0.0
    %938 = vmatpush2.xpose.msra.mxu0 0.0
    %939 = vmatprep.subr.mxu0 0.0
    %940 = vmatpush2.xpose.msra.mxu0 0.0
    %941 = vmatprep.subr.mxu0 0.0
    %942 = vmatpush2.xpose.msra.mxu0 0.0
    %943 = vmatprep.subr.mxu0 0.0
    %944 = vmatpush2.xpose.msra.mxu0 0.0
    %945 = vmatprep.subr.mxu0 0.0
    %946 = vmatpush2.xpose.msra.mxu0 0.0
    %947 = vmatprep.subr.mxu0 0.0
    %948 = vmatpush2.xpose.msra.mxu0 0.0
    %949 = vmatprep.subr.mxu0 0.0
    %950 = vmatpush2.xpose.msra.mxu0 0.0
    %951 = vmatprep.subr.mxu0 0.0
    %952 = vmatpush2.xpose.msra.mxu0 0.0
    %953 = vmatprep.subr.mxu0 0.0
    %954 = vmatpush2.xpose.msra.mxu0 0.0
    %955 = vmatprep.subr.mxu0 0.0
    %956 = vmatpush2.xpose.msra.mxu0 0.0
    %957 = vmatprep.subr.mxu0 0.0
    %958 = vmatpush2.xpose.msra.mxu0 0.0
    %959 = vmatprep.subr.mxu0 0.0
    %960 = vmatpush2.xpose.msra.mxu0 0.0
    %961 = vmatprep.subr.mxu0 0.0
    %962 = vmatpush2.xpose.msra.mxu0 0.0
    %963 = vmatprep.mubr.f32.mxu0 0.0
    %964 = vmatmul.mubr.f32.gmra.mxu0 %v894
    %v965 = vpop.f32.mrf.mxu0
    %v966 = vadd.f32 0.0, %v965
    %v967 = vpop.f32.mrf.mxu0
    %968 = vdwg.mxu0
    %v970 = vsel %vm105, %v434, 0
    %v973 = vsel %vm105, %v329, 0
    %975 = vmatprep.subr.mxu0 0.0
    %976 = vmatpush1.xpose.msra.mxu0 0.0
    %977 = vmatprep.subr.mxu0 0.0
    %978 = vmatpush1.xpose.msra.mxu0 0.0
    %979 = vmatprep.subr.mxu0 0.0
    %980 = vmatpush1.xpose.msra.mxu0 0.0
    %981 = vmatprep.subr.mxu0 0.0
    %982 = vmatpush1.xpose.msra.mxu0 0.0
    %983 = vmatprep.subr.mxu0 0.0
    %984 = vmatpush1.xpose.msra.mxu0 0.0
    %985 = vmatprep.subr.mxu0 0.0
    %986 = vmatpush1.xpose.msra.mxu0 0.0
    %987 = vmatprep.subr.mxu0 0.0
    %988 = vmatpush1.xpose.msra.mxu0 0.0
    %989 = vmatprep.subr.mxu0 0.0
    %990 = vmatpush1.xpose.msra.mxu0 0.0
    %991 = vmatprep.subr.mxu0 0.0
    %992 = vmatpush1.xpose.msra.mxu0 0.0
    %993 = vmatprep.subr.mxu0 0.0
    %994 = vmatpush1.xpose.msra.mxu0 0.0
    %995 = vmatprep.subr.mxu0 0.0
    %996 = vmatpush1.xpose.msra.mxu0 0.0
    %997 = vmatprep.subr.mxu0 0.0
    %998 = vmatpush1.xpose.msra.mxu0 0.0
    %999 = vmatprep.subr.mxu0 0.0
    %1000 = vmatpush1.xpose.msra.mxu0 0.0
    %1001 = vmatprep.subr.mxu0 0.0
    %1002 = vmatpush1.xpose.msra.mxu0 0.0
    %1003 = vmatprep.subr.mxu0 0.0
    %1004 = vmatpush1.xpose.msra.mxu0 0.0
    %1005 = vmatprep.subr.mxu0 0.0
    %1006 = vmatpush1.xpose.msra.mxu0 %v973
    %1007 = vmatprep.subr.mxu0 0.0
    %1008 = vmatpush2.xpose.msra.mxu0 0.0
    %1009 = vmatprep.subr.mxu0 0.0
    %1010 = vmatpush2.xpose.msra.mxu0 0.0
    %1011 = vmatprep.subr.mxu0 0.0
    %1012 = vmatpush2.xpose.msra.mxu0 0.0
    %1013 = vmatprep.subr.mxu0 0.0
    %1014 = vmatpush2.xpose.msra.mxu0 0.0
    %1015 = vmatprep.subr.mxu0 0.0
    %1016 = vmatpush2.xpose.msra.mxu0 0.0
    %1017 = vmatprep.subr.mxu0 0.0
    %1018 = vmatpush2.xpose.msra.mxu0 0.0
    %1019 = vmatprep.subr.mxu0 0.0
    %1020 = vmatpush2.xpose.msra.mxu0 0.0
    %1021 = vmatprep.subr.mxu0 0.0
    %1022 = vmatpush2.xpose.msra.mxu0 0.0
    %1023 = vmatprep.subr.mxu0 0.0
    %1024 = vmatpush2.xpose.msra.mxu0 0.0
    %1025 = vmatprep.subr.mxu0 0.0
    %1026 = vmatpush2.xpose.msra.mxu0 0.0
    %1027 = vmatprep.subr.mxu0 0.0
    %1028 = vmatpush2.xpose.msra.mxu0 0.0
    %1029 = vmatprep.subr.mxu0 0.0
    %1030 = vmatpush2.xpose.msra.mxu0 0.0
    %1031 = vmatprep.subr.mxu0 0.0
    %1032 = vmatpush2.xpose.msra.mxu0 0.0
    %1033 = vmatprep.subr.mxu0 0.0
    %1034 = vmatpush2.xpose.msra.mxu0 0.0
    %1035 = vmatprep.subr.mxu0 0.0
    %1036 = vmatpush2.xpose.msra.mxu0 0.0
    %1037 = vmatprep.subr.mxu0 0.0
    %1038 = vmatpush2.xpose.msra.mxu0 0.0
    %1039 = vmatprep.mubr.f32.mxu0 0.0
    %1040 = vmatmul.mubr.f32.gmra.mxu0 %v970
    %v1041 = vpop.f32.mrf.mxu0
    %v1042 = vadd.f32 0.0, %v1041
    %v1043 = vpop.f32.mrf.mxu0
    %1044 = vdwg.mxu0
    %v1045 = vadd.f32 %v510, %v87
    %v1046 = vadd.f32 %v586, %v88
    %v1047 = vadd.f32 %v662, %v87
    %v1048 = vadd.f32 %v738, %v88
    %v1049 = vadd.f32 %v814, %v87
    %v1050 = vadd.f32 %v890, %v88
    %v1051 = vadd.f32 %v966, %v87
    %v1052 = vadd.f32 %v1042, %v88
    %v1053 = vsel %vm105, %v1045, -inf
    %1054 = vmax.xlane.f32.xlu0 %v1053
    %v1055 = vpop.xlane.xlu0 %1054
    %v1056 = vsel %vm105, %v1046, -inf
    %1057 = vmax.xlane.f32.xlu0 %v1056
    %v1058 = vpop.xlane.xlu0 %1057
    %v1059 = vsel %vm105, %v1047, -inf
    %1060 = vmax.xlane.f32.xlu0 %v1059
    %v1061 = vpop.xlane.xlu0 %1060
    %v1062 = vsel %vm105, %v1048, -inf
    %1063 = vmax.xlane.f32.xlu0 %v1062
    %v1064 = vpop.xlane.xlu0 %1063
    %v1065 = vsel %vm105, %v1049, -inf
    %1066 = vmax.xlane.f32.xlu0 %v1065
    %v1067 = vpop.xlane.xlu0 %1066
    %v1068 = vsel %vm105, %v1050, -inf
    %1069 = vmax.xlane.f32.xlu0 %v1068
    %v1070 = vpop.xlane.xlu0 %1069
    %v1071 = vsel %vm105, %v1051, -inf
    %1072 = vmax.xlane.f32.xlu0 %v1071
    %v1073 = vpop.xlane.xlu0 %1072
    %v1074 = vsel %vm105, %v1052, -inf
    %1075 = vmax.xlane.f32.xlu0 %v1074
    %v1076 = vpop.xlane.xlu0 %1075
    %v1077 = vsub.f32 %v1045, %v1055
    %v1078 = vsub.f32 %v1046, %v1058
    %v1079 = vsub.f32 %v1047, %v1061
    %v1080 = vsub.f32 %v1048, %v1064
    %v1081 = vsub.f32 %v1049, %v1067
    %v1082 = vsub.f32 %v1050, %v1070
    %v1083 = vsub.f32 %v1051, %v1073
    %v1084 = vsub.f32 %v1052, %v1076
    %v1085 = vmul.f32 %v1077, 1.442695
    %v1086 = vpow.pop %v1085
    %v1087 = vmul.f32 %v1078, 1.442695
    %v1088 = vpow.pop %v1087
    %v1089 = vmul.f32 %v1079, 1.442695
    %v1090 = vpow.pop %v1089
    %v1091 = vmul.f32 %v1080, 1.442695
    %v1092 = vpow.pop %v1091
    %v1093 = vmul.f32 %v1081, 1.442695
    %v1094 = vpow.pop %v1093
    %v1095 = vmul.f32 %v1082, 1.442695
    %v1096 = vpow.pop %v1095
    %v1097 = vmul.f32 %v1083, 1.442695
    %v1098 = vpow.pop %v1097
    %v1099 = vmul.f32 %v1084, 1.442695
    %v1100 = vpow.pop %v1099
    %v1101 = vsel %vm105, %v1086, 0.0
    %1102 = vadd.xlane.f32.xlu0 %v1101
    %v1103 = vpop.xlane.xlu0 %1102
    %v1104 = vsel %vm105, %v1088, 0.0
    %1105 = vadd.xlane.f32.xlu0 %v1104
    %v1106 = vpop.xlane.xlu0 %1105
    %v1107 = vsel %vm105, %v1090, 0.0
    %1108 = vadd.xlane.f32.xlu0 %v1107
    %v1109 = vpop.xlane.xlu0 %1108
    %v1110 = vsel %vm105, %v1092, 0.0
    %1111 = vadd.xlane.f32.xlu0 %v1110
    %v1112 = vpop.xlane.xlu0 %1111
    %v1113 = vsel %vm105, %v1094, 0.0
    %1114 = vadd.xlane.f32.xlu0 %v1113
    %v1115 = vpop.xlane.xlu0 %1114
    %v1116 = vsel %vm105, %v1096, 0.0
    %1117 = vadd.xlane.f32.xlu0 %v1116
    %v1118 = vpop.xlane.xlu0 %1117
    %v1119 = vsel %vm105, %v1098, 0.0
    %1120 = vadd.xlane.f32.xlu0 %v1119
    %v1121 = vpop.xlane.xlu0 %1120
    %v1122 = vsel %vm105, %v1100, 0.0
    %1123 = vadd.xlane.f32.xlu0 %v1122
    %v1124 = vpop.xlane.xlu0 %1123
    %v1125 = vrcp.pop %v1103
    %v1126 = vrcp.pop %v1106
    %v1127 = vrcp.pop %v1109
    %v1128 = vrcp.pop %v1112
    %v1129 = vrcp.pop %v1115
    %v1130 = vrcp.pop %v1118
    %v1131 = vrcp.pop %v1121
    %v1132 = vrcp.pop %v1124
    %v1133 = vmul.f32 %v1086, %v1125
    %v1134 = vmul.f32 %v1088, %v1126
    %v1135 = vmul.f32 %v1090, %v1127
    %v1136 = vmul.f32 %v1092, %v1128
    %v1137 = vmul.f32 %v1094, %v1129
    %v1138 = vmul.f32 %v1096, %v1130
    %v1139 = vmul.f32 %v1098, %v1131
    %v1140 = vmul.f32 %v1100, %v1132
    %v1142 = vsel %vm105, %v1133, 0
    %1144 = vmatprep.subr.mxu0 0.0
    %1145 = vmatpush1.msra.mxu0 0.0
    %1146 = vmatprep.subr.mxu0 0.0
    %1147 = vmatpush1.msra.mxu0 0.0
    %1148 = vmatprep.subr.mxu0 0.0
    %1149 = vmatpush1.msra.mxu0 0.0
    %1150 = vmatprep.subr.mxu0 0.0
    %1151 = vmatpush1.msra.mxu0 0.0
    %1152 = vmatprep.subr.mxu0 0.0
    %1153 = vmatpush1.msra.mxu0 0.0
    %1154 = vmatprep.subr.mxu0 0.0
    %1155 = vmatpush1.msra.mxu0 0.0
    %1156 = vmatprep.subr.mxu0 0.0
    %1157 = vmatpush1.msra.mxu0 0.0
    %1158 = vmatprep.subr.mxu0 0.0
    %1159 = vmatpush1.msra.mxu0 0.0
    %1160 = vmatprep.subr.mxu0 0.0
    %1161 = vmatpush1.msra.mxu0 0.0
    %1162 = vmatprep.subr.mxu0 0.0
    %1163 = vmatpush1.msra.mxu0 0.0
    %1164 = vmatprep.subr.mxu0 0.0
    %1165 = vmatpush1.msra.mxu0 0.0
    %1166 = vmatprep.subr.mxu0 0.0
    %1167 = vmatpush1.msra.mxu0 0.0
    %1168 = vmatprep.subr.mxu0 0.0
    %1169 = vmatpush1.msra.mxu0 0.0
    %1170 = vmatprep.subr.mxu0 0.0
    %1171 = vmatpush1.msra.mxu0 0.0
    %1172 = vmatprep.subr.mxu0 0.0
    %1173 = vmatpush1.msra.mxu0 0.0
    %1174 = vmatprep.subr.mxu0 0.0
    %1175 = vmatpush1.msra.mxu0 %v189
    %1176 = vmatprep.subr.mxu0 0.0
    %1177 = vmatpush2.msra.mxu0 0.0
    %1178 = vmatprep.subr.mxu0 0.0
    %1179 = vmatpush2.msra.mxu0 0.0
    %1180 = vmatprep.subr.mxu0 0.0
    %1181 = vmatpush2.msra.mxu0 0.0
    %1182 = vmatprep.subr.mxu0 0.0
    %1183 = vmatpush2.msra.mxu0 0.0
    %1184 = vmatprep.subr.mxu0 0.0
    %1185 = vmatpush2.msra.mxu0 0.0
    %1186 = vmatprep.subr.mxu0 0.0
    %1187 = vmatpush2.msra.mxu0 0.0
    %1188 = vmatprep.subr.mxu0 0.0
    %1189 = vmatpush2.msra.mxu0 0.0
    %1190 = vmatprep.subr.mxu0 0.0
    %1191 = vmatpush2.msra.mxu0 0.0
    %1192 = vmatprep.subr.mxu0 0.0
    %1193 = vmatpush2.msra.mxu0 0.0
    %1194 = vmatprep.subr.mxu0 0.0
    %1195 = vmatpush2.msra.mxu0 0.0
    %1196 = vmatprep.subr.mxu0 0.0
    %1197 = vmatpush2.msra.mxu0 0.0
    %1198 = vmatprep.subr.mxu0 0.0
    %1199 = vmatpush2.msra.mxu0 0.0
    %1200 = vmatprep.subr.mxu0 0.0
    %1201 = vmatpush2.msra.mxu0 0.0
    %1202 = vmatprep.subr.mxu0 0.0
    %1203 = vmatpush2.msra.mxu0 0.0
    %1204 = vmatprep.subr.mxu0 0.0
    %1205 = vmatpush2.msra.mxu0 0.0
    %1206 = vmatprep.subr.mxu0 0.0
    %1207 = vmatpush2.msra.mxu0 0.0
    %1208 = vmatprep.mubr.f32.mxu0 0.0
    %1209 = vmatmul.mubr.f32.gmra.mxu0 %v1142
    %v1210 = vpop.f32.mrf.mxu0
    %v1211 = vadd.f32 0.0, %v1210
    %v1212 = vpop.f32.mrf.mxu0
    %1213 = vdwg.mxu0
    %v1215 = vsel %vm105, %v1134, 0
    %1217 = vmatprep.subr.mxu0 0.0
    %1218 = vmatpush1.msra.mxu0 0.0
    %1219 = vmatprep.subr.mxu0 0.0
    %1220 = vmatpush1.msra.mxu0 0.0
    %1221 = vmatprep.subr.mxu0 0.0
    %1222 = vmatpush1.msra.mxu0 0.0
    %1223 = vmatprep.subr.mxu0 0.0
    %1224 = vmatpush1.msra.mxu0 0.0
    %1225 = vmatprep.subr.mxu0 0.0
    %1226 = vmatpush1.msra.mxu0 0.0
    %1227 = vmatprep.subr.mxu0 0.0
    %1228 = vmatpush1.msra.mxu0 0.0
    %1229 = vmatprep.subr.mxu0 0.0
    %1230 = vmatpush1.msra.mxu0 0.0
    %1231 = vmatprep.subr.mxu0 0.0
    %1232 = vmatpush1.msra.mxu0 0.0
    %1233 = vmatprep.subr.mxu0 0.0
    %1234 = vmatpush1.msra.mxu0 0.0
    %1235 = vmatprep.subr.mxu0 0.0
    %1236 = vmatpush1.msra.mxu0 0.0
    %1237 = vmatprep.subr.mxu0 0.0
    %1238 = vmatpush1.msra.mxu0 0.0
    %1239 = vmatprep.subr.mxu0 0.0
    %1240 = vmatpush1.msra.mxu0 0.0
    %1241 = vmatprep.subr.mxu0 0.0
    %1242 = vmatpush1.msra.mxu0 0.0
    %1243 = vmatprep.subr.mxu0 0.0
    %1244 = vmatpush1.msra.mxu0 0.0
    %1245 = vmatprep.subr.mxu0 0.0
    %1246 = vmatpush1.msra.mxu0 0.0
    %1247 = vmatprep.subr.mxu0 0.0
    %1248 = vmatpush1.msra.mxu0 %v194
    %1249 = vmatprep.subr.mxu0 0.0
    %1250 = vmatpush2.msra.mxu0 0.0
    %1251 = vmatprep.subr.mxu0 0.0
    %1252 = vmatpush2.msra.mxu0 0.0
    %1253 = vmatprep.subr.mxu0 0.0
    %1254 = vmatpush2.msra.mxu0 0.0
    %1255 = vmatprep.subr.mxu0 0.0
    %1256 = vmatpush2.msra.mxu0 0.0
    %1257 = vmatprep.subr.mxu0 0.0
    %1258 = vmatpush2.msra.mxu0 0.0
    %1259 = vmatprep.subr.mxu0 0.0
    %1260 = vmatpush2.msra.mxu0 0.0
    %1261 = vmatprep.subr.mxu0 0.0
    %1262 = vmatpush2.msra.mxu0 0.0
    %1263 = vmatprep.subr.mxu0 0.0
    %1264 = vmatpush2.msra.mxu0 0.0
    %1265 = vmatprep.subr.mxu0 0.0
    %1266 = vmatpush2.msra.mxu0 0.0
    %1267 = vmatprep.subr.mxu0 0.0
    %1268 = vmatpush2.msra.mxu0 0.0
    %1269 = vmatprep.subr.mxu0 0.0
    %1270 = vmatpush2.msra.mxu0 0.0
    %1271 = vmatprep.subr.mxu0 0.0
    %1272 = vmatpush2.msra.mxu0 0.0
    %1273 = vmatprep.subr.mxu0 0.0
    %1274 = vmatpush2.msra.mxu0 0.0
    %1275 = vmatprep.subr.mxu0 0.0
    %1276 = vmatpush2.msra.mxu0 0.0
    %1277 = vmatprep.subr.mxu0 0.0
    %1278 = vmatpush2.msra.mxu0 0.0
    %1279 = vmatprep.subr.mxu0 0.0
    %1280 = vmatpush2.msra.mxu0 0.0
    %1281 = vmatprep.mubr.f32.mxu0 0.0
    %1282 = vmatmul.mubr.f32.gmra.mxu0 %v1215
    %v1283 = vpop.f32.mrf.mxu0
    %v1284 = vadd.f32 0.0, %v1283
    %v1285 = vpop.f32.mrf.mxu0
    %1286 = vdwg.mxu0
    %v1288 = vsel %vm105, %v1135, 0
    %1290 = vmatprep.subr.mxu0 0.0
    %1291 = vmatpush1.msra.mxu0 0.0
    %1292 = vmatprep.subr.mxu0 0.0
    %1293 = vmatpush1.msra.mxu0 0.0
    %1294 = vmatprep.subr.mxu0 0.0
    %1295 = vmatpush1.msra.mxu0 0.0
    %1296 = vmatprep.subr.mxu0 0.0
    %1297 = vmatpush1.msra.mxu0 0.0
    %1298 = vmatprep.subr.mxu0 0.0
    %1299 = vmatpush1.msra.mxu0 0.0
    %1300 = vmatprep.subr.mxu0 0.0
    %1301 = vmatpush1.msra.mxu0 0.0
    %1302 = vmatprep.subr.mxu0 0.0
    %1303 = vmatpush1.msra.mxu0 0.0
    %1304 = vmatprep.subr.mxu0 0.0
    %1305 = vmatpush1.msra.mxu0 0.0
    %1306 = vmatprep.subr.mxu0 0.0
    %1307 = vmatpush1.msra.mxu0 0.0
    %1308 = vmatprep.subr.mxu0 0.0
    %1309 = vmatpush1.msra.mxu0 0.0
    %1310 = vmatprep.subr.mxu0 0.0
    %1311 = vmatpush1.msra.mxu0 0.0
    %1312 = vmatprep.subr.mxu0 0.0
    %1313 = vmatpush1.msra.mxu0 0.0
    %1314 = vmatprep.subr.mxu0 0.0
    %1315 = vmatpush1.msra.mxu0 0.0
    %1316 = vmatprep.subr.mxu0 0.0
    %1317 = vmatpush1.msra.mxu0 0.0
    %1318 = vmatprep.subr.mxu0 0.0
    %1319 = vmatpush1.msra.mxu0 0.0
    %1320 = vmatprep.subr.mxu0 0.0
    %1321 = vmatpush1.msra.mxu0 %v199
    %1322 = vmatprep.subr.mxu0 0.0
    %1323 = vmatpush2.msra.mxu0 0.0
    %1324 = vmatprep.subr.mxu0 0.0
    %1325 = vmatpush2.msra.mxu0 0.0
    %1326 = vmatprep.subr.mxu0 0.0
    %1327 = vmatpush2.msra.mxu0 0.0
    %1328 = vmatprep.subr.mxu0 0.0
    %1329 = vmatpush2.msra.mxu0 0.0
    %1330 = vmatprep.subr.mxu0 0.0
    %1331 = vmatpush2.msra.mxu0 0.0
    %1332 = vmatprep.subr.mxu0 0.0
    %1333 = vmatpush2.msra.mxu0 0.0
    %1334 = vmatprep.subr.mxu0 0.0
    %1335 = vmatpush2.msra.mxu0 0.0
    %1336 = vmatprep.subr.mxu0 0.0
    %1337 = vmatpush2.msra.mxu0 0.0
    %1338 = vmatprep.subr.mxu0 0.0
    %1339 = vmatpush2.msra.mxu0 0.0
    %1340 = vmatprep.subr.mxu0 0.0
    %1341 = vmatpush2.msra.mxu0 0.0
    %1342 = vmatprep.subr.mxu0 0.0
    %1343 = vmatpush2.msra.mxu0 0.0
    %1344 = vmatprep.subr.mxu0 0.0
    %1345 = vmatpush2.msra.mxu0 0.0
    %1346 = vmatprep.subr.mxu0 0.0
    %1347 = vmatpush2.msra.mxu0 0.0
    %1348 = vmatprep.subr.mxu0 0.0
    %1349 = vmatpush2.msra.mxu0 0.0
    %1350 = vmatprep.subr.mxu0 0.0
    %1351 = vmatpush2.msra.mxu0 0.0
    %1352 = vmatprep.subr.mxu0 0.0
    %1353 = vmatpush2.msra.mxu0 0.0
    %1354 = vmatprep.mubr.f32.mxu0 0.0
    %1355 = vmatmul.mubr.f32.gmra.mxu0 %v1288
    %v1356 = vpop.f32.mrf.mxu0
    %v1357 = vadd.f32 0.0, %v1356
    %v1358 = vpop.f32.mrf.mxu0
    %1359 = vdwg.mxu0
    %v1361 = vsel %vm105, %v1136, 0
    %1363 = vmatprep.subr.mxu0 0.0
    %1364 = vmatpush1.msra.mxu0 0.0
    %1365 = vmatprep.subr.mxu0 0.0
    %1366 = vmatpush1.msra.mxu0 0.0
    %1367 = vmatprep.subr.mxu0 0.0
    %1368 = vmatpush1.msra.mxu0 0.0
    %1369 = vmatprep.subr.mxu0 0.0
    %1370 = vmatpush1.msra.mxu0 0.0
    %1371 = vmatprep.subr.mxu0 0.0
    %1372 = vmatpush1.msra.mxu0 0.0
    %1373 = vmatprep.subr.mxu0 0.0
    %1374 = vmatpush1.msra.mxu0 0.0
    %1375 = vmatprep.subr.mxu0 0.0
    %1376 = vmatpush1.msra.mxu0 0.0
    %1377 = vmatprep.subr.mxu0 0.0
    %1378 = vmatpush1.msra.mxu0 0.0
    %1379 = vmatprep.subr.mxu0 0.0
    %1380 = vmatpush1.msra.mxu0 0.0
    %1381 = vmatprep.subr.mxu0 0.0
    %1382 = vmatpush1.msra.mxu0 0.0
    %1383 = vmatprep.subr.mxu0 0.0
    %1384 = vmatpush1.msra.mxu0 0.0
    %1385 = vmatprep.subr.mxu0 0.0
    %1386 = vmatpush1.msra.mxu0 0.0
    %1387 = vmatprep.subr.mxu0 0.0
    %1388 = vmatpush1.msra.mxu0 0.0
    %1389 = vmatprep.subr.mxu0 0.0
    %1390 = vmatpush1.msra.mxu0 0.0
    %1391 = vmatprep.subr.mxu0 0.0
    %1392 = vmatpush1.msra.mxu0 0.0
    %1393 = vmatprep.subr.mxu0 0.0
    %1394 = vmatpush1.msra.mxu0 %v204
    %1395 = vmatprep.subr.mxu0 0.0
    %1396 = vmatpush2.msra.mxu0 0.0
    %1397 = vmatprep.subr.mxu0 0.0
    %1398 = vmatpush2.msra.mxu0 0.0
    %1399 = vmatprep.subr.mxu0 0.0
    %1400 = vmatpush2.msra.mxu0 0.0
    %1401 = vmatprep.subr.mxu0 0.0
    %1402 = vmatpush2.msra.mxu0 0.0
    %1403 = vmatprep.subr.mxu0 0.0
    %1404 = vmatpush2.msra.mxu0 0.0
    %1405 = vmatprep.subr.mxu0 0.0
    %1406 = vmatpush2.msra.mxu0 0.0
    %1407 = vmatprep.subr.mxu0 0.0
    %1408 = vmatpush2.msra.mxu0 0.0
    %1409 = vmatprep.subr.mxu0 0.0
    %1410 = vmatpush2.msra.mxu0 0.0
    %1411 = vmatprep.subr.mxu0 0.0
    %1412 = vmatpush2.msra.mxu0 0.0
    %1413 = vmatprep.subr.mxu0 0.0
    %1414 = vmatpush2.msra.mxu0 0.0
    %1415 = vmatprep.subr.mxu0 0.0
    %1416 = vmatpush2.msra.mxu0 0.0
    %1417 = vmatprep.subr.mxu0 0.0
    %1418 = vmatpush2.msra.mxu0 0.0
    %1419 = vmatprep.subr.mxu0 0.0
    %1420 = vmatpush2.msra.mxu0 0.0
    %1421 = vmatprep.subr.mxu0 0.0
    %1422 = vmatpush2.msra.mxu0 0.0
    %1423 = vmatprep.subr.mxu0 0.0
    %1424 = vmatpush2.msra.mxu0 0.0
    %1425 = vmatprep.subr.mxu0 0.0
    %1426 = vmatpush2.msra.mxu0 0.0
    %1427 = vmatprep.mubr.f32.mxu0 0.0
    %1428 = vmatmul.mubr.f32.gmra.mxu0 %v1361
    %v1429 = vpop.f32.mrf.mxu0
    %v1430 = vadd.f32 0.0, %v1429
    %v1431 = vpop.f32.mrf.mxu0
    %1432 = vdwg.mxu0
    %v1434 = vsel %vm105, %v1137, 0
    %1436 = vmatprep.subr.mxu0 0.0
    %1437 = vmatpush1.msra.mxu0 0.0
    %1438 = vmatprep.subr.mxu0 0.0
    %1439 = vmatpush1.msra.mxu0 0.0
    %1440 = vmatprep.subr.mxu0 0.0
    %1441 = vmatpush1.msra.mxu0 0.0
    %1442 = vmatprep.subr.mxu0 0.0
    %1443 = vmatpush1.msra.mxu0 0.0
    %1444 = vmatprep.subr.mxu0 0.0
    %1445 = vmatpush1.msra.mxu0 0.0
    %1446 = vmatprep.subr.mxu0 0.0
    %1447 = vmatpush1.msra.mxu0 0.0
    %1448 = vmatprep.subr.mxu0 0.0
    %1449 = vmatpush1.msra.mxu0 0.0
    %1450 = vmatprep.subr.mxu0 0.0
    %1451 = vmatpush1.msra.mxu0 0.0
    %1452 = vmatprep.subr.mxu0 0.0
    %1453 = vmatpush1.msra.mxu0 0.0
    %1454 = vmatprep.subr.mxu0 0.0
    %1455 = vmatpush1.msra.mxu0 0.0
    %1456 = vmatprep.subr.mxu0 0.0
    %1457 = vmatpush1.msra.mxu0 0.0
    %1458 = vmatprep.subr.mxu0 0.0
    %1459 = vmatpush1.msra.mxu0 0.0
    %1460 = vmatprep.subr.mxu0 0.0
    %1461 = vmatpush1.msra.mxu0 0.0
    %1462 = vmatprep.subr.mxu0 0.0
    %1463 = vmatpush1.msra.mxu0 0.0
    %1464 = vmatprep.subr.mxu0 0.0
    %1465 = vmatpush1.msra.mxu0 0.0
    %1466 = vmatprep.subr.mxu0 0.0
    %1467 = vmatpush1.msra.mxu0 %v209
    %1468 = vmatprep.subr.mxu0 0.0
    %1469 = vmatpush2.msra.mxu0 0.0
    %1470 = vmatprep.subr.mxu0 0.0
    %1471 = vmatpush2.msra.mxu0 0.0
    %1472 = vmatprep.subr.mxu0 0.0
    %1473 = vmatpush2.msra.mxu0 0.0
    %1474 = vmatprep.subr.mxu0 0.0
    %1475 = vmatpush2.msra.mxu0 0.0
    %1476 = vmatprep.subr.mxu0 0.0
    %1477 = vmatpush2.msra.mxu0 0.0
    %1478 = vmatprep.subr.mxu0 0.0
    %1479 = vmatpush2.msra.mxu0 0.0
    %1480 = vmatprep.subr.mxu0 0.0
    %1481 = vmatpush2.msra.mxu0 0.0
    %1482 = vmatprep.subr.mxu0 0.0
    %1483 = vmatpush2.msra.mxu0 0.0
    %1484 = vmatprep.subr.mxu0 0.0
    %1485 = vmatpush2.msra.mxu0 0.0
    %1486 = vmatprep.subr.mxu0 0.0
    %1487 = vmatpush2.msra.mxu0 0.0
    %1488 = vmatprep.subr.mxu0 0.0
    %1489 = vmatpush2.msra.mxu0 0.0
    %1490 = vmatprep.subr.mxu0 0.0
    %1491 = vmatpush2.msra.mxu0 0.0
    %1492 = vmatprep.subr.mxu0 0.0
    %1493 = vmatpush2.msra.mxu0 0.0
    %1494 = vmatprep.subr.mxu0 0.0
    %1495 = vmatpush2.msra.mxu0 0.0
    %1496 = vmatprep.subr.mxu0 0.0
    %1497 = vmatpush2.msra.mxu0 0.0
    %1498 = vmatprep.subr.mxu0 0.0
    %1499 = vmatpush2.msra.mxu0 0.0
    %1500 = vmatprep.mubr.f32.mxu0 0.0
    %1501 = vmatmul.mubr.f32.gmra.mxu0 %v1434
    %v1502 = vpop.f32.mrf.mxu0
    %v1503 = vadd.f32 0.0, %v1502
    %v1504 = vpop.f32.mrf.mxu0
    %1505 = vdwg.mxu0
    %v1507 = vsel %vm105, %v1138, 0
    %1509 = vmatprep.subr.mxu0 0.0
    %1510 = vmatpush1.msra.mxu0 0.0
    %1511 = vmatprep.subr.mxu0 0.0
    %1512 = vmatpush1.msra.mxu0 0.0
    %1513 = vmatprep.subr.mxu0 0.0
    %1514 = vmatpush1.msra.mxu0 0.0
    %1515 = vmatprep.subr.mxu0 0.0
    %1516 = vmatpush1.msra.mxu0 0.0
    %1517 = vmatprep.subr.mxu0 0.0
    %1518 = vmatpush1.msra.mxu0 0.0
    %1519 = vmatprep.subr.mxu0 0.0
    %1520 = vmatpush1.msra.mxu0 0.0
    %1521 = vmatprep.subr.mxu0 0.0
    %1522 = vmatpush1.msra.mxu0 0.0
    %1523 = vmatprep.subr.mxu0 0.0
    %1524 = vmatpush1.msra.mxu0 0.0
    %1525 = vmatprep.subr.mxu0 0.0
    %1526 = vmatpush1.msra.mxu0 0.0
    %1527 = vmatprep.subr.mxu0 0.0
    %1528 = vmatpush1.msra.mxu0 0.0
    %1529 = vmatprep.subr.mxu0 0.0
    %1530 = vmatpush1.msra.mxu0 0.0
    %1531 = vmatprep.subr.mxu0 0.0
    %1532 = vmatpush1.msra.mxu0 0.0
    %1533 = vmatprep.subr.mxu0 0.0
    %1534 = vmatpush1.msra.mxu0 0.0
    %1535 = vmatprep.subr.mxu0 0.0
    %1536 = vmatpush1.msra.mxu0 0.0
    %1537 = vmatprep.subr.mxu0 0.0
    %1538 = vmatpush1.msra.mxu0 0.0
    %1539 = vmatprep.subr.mxu0 0.0
    %1540 = vmatpush1.msra.mxu0 %v214
    %1541 = vmatprep.subr.mxu0 0.0
    %1542 = vmatpush2.msra.mxu0 0.0
    %1543 = vmatprep.subr.mxu0 0.0
    %1544 = vmatpush2.msra.mxu0 0.0
    %1545 = vmatprep.subr.mxu0 0.0
    %1546 = vmatpush2.msra.mxu0 0.0
    %1547 = vmatprep.subr.mxu0 0.0
    %1548 = vmatpush2.msra.mxu0 0.0
    %1549 = vmatprep.subr.mxu0 0.0
    %1550 = vmatpush2.msra.mxu0 0.0
    %1551 = vmatprep.subr.mxu0 0.0
    %1552 = vmatpush2.msra.mxu0 0.0
    %1553 = vmatprep.subr.mxu0 0.0
    %1554 = vmatpush2.msra.mxu0 0.0
    %1555 = vmatprep.subr.mxu0 0.0
    %1556 = vmatpush2.msra.mxu0 0.0
    %1557 = vmatprep.subr.mxu0 0.0
    %1558 = vmatpush2.msra.mxu0 0.0
    %1559 = vmatprep.subr.mxu0 0.0
    %1560 = vmatpush2.msra.mxu0 0.0
    %1561 = vmatprep.subr.mxu0 0.0
    %1562 = vmatpush2.msra.mxu0 0.0
    %1563 = vmatprep.subr.mxu0 0.0
    %1564 = vmatpush2.msra.mxu0 0.0
    %1565 = vmatprep.subr.mxu0 0.0
    %1566 = vmatpush2.msra.mxu0 0.0
    %1567 = vmatprep.subr.mxu0 0.0
    %1568 = vmatpush2.msra.mxu0 0.0
    %1569 = vmatprep.subr.mxu0 0.0
    %1570 = vmatpush2.msra.mxu0 0.0
    %1571 = vmatprep.subr.mxu0 0.0
    %1572 = vmatpush2.msra.mxu0 0.0
    %1573 = vmatprep.mubr.f32.mxu0 0.0
    %1574 = vmatmul.mubr.f32.gmra.mxu0 %v1507
    %v1575 = vpop.f32.mrf.mxu0
    %v1576 = vadd.f32 0.0, %v1575
    %v1577 = vpop.f32.mrf.mxu0
    %1578 = vdwg.mxu0
    %v1580 = vsel %vm105, %v1139, 0
    %1582 = vmatprep.subr.mxu0 0.0
    %1583 = vmatpush1.msra.mxu0 0.0
    %1584 = vmatprep.subr.mxu0 0.0
    %1585 = vmatpush1.msra.mxu0 0.0
    %1586 = vmatprep.subr.mxu0 0.0
    %1587 = vmatpush1.msra.mxu0 0.0
    %1588 = vmatprep.subr.mxu0 0.0
    %1589 = vmatpush1.msra.mxu0 0.0
    %1590 = vmatprep.subr.mxu0 0.0
    %1591 = vmatpush1.msra.mxu0 0.0
    %1592 = vmatprep.subr.mxu0 0.0
    %1593 = vmatpush1.msra.mxu0 0.0
    %1594 = vmatprep.subr.mxu0 0.0
    %1595 = vmatpush1.msra.mxu0 0.0
    %1596 = vmatprep.subr.mxu0 0.0
    %1597 = vmatpush1.msra.mxu0 0.0
    %1598 = vmatprep.subr.mxu0 0.0
    %1599 = vmatpush1.msra.mxu0 0.0
    %1600 = vmatprep.subr.mxu0 0.0
    %1601 = vmatpush1.msra.mxu0 0.0
    %1602 = vmatprep.subr.mxu0 0.0
    %1603 = vmatpush1.msra.mxu0 0.0
    %1604 = vmatprep.subr.mxu0 0.0
    %1605 = vmatpush1.msra.mxu0 0.0
    %1606 = vmatprep.subr.mxu0 0.0
    %1607 = vmatpush1.msra.mxu0 0.0
    %1608 = vmatprep.subr.mxu0 0.0
    %1609 = vmatpush1.msra.mxu0 0.0
    %1610 = vmatprep.subr.mxu0 0.0
    %1611 = vmatpush1.msra.mxu0 0.0
    %1612 = vmatprep.subr.mxu0 0.0
    %1613 = vmatpush1.msra.mxu0 %v219
    %1614 = vmatprep.subr.mxu0 0.0
    %1615 = vmatpush2.msra.mxu0 0.0
    %1616 = vmatprep.subr.mxu0 0.0
    %1617 = vmatpush2.msra.mxu0 0.0
    %1618 = vmatprep.subr.mxu0 0.0
    %1619 = vmatpush2.msra.mxu0 0.0
    %1620 = vmatprep.subr.mxu0 0.0
    %1621 = vmatpush2.msra.mxu0 0.0
    %1622 = vmatprep.subr.mxu0 0.0
    %1623 = vmatpush2.msra.mxu0 0.0
    %1624 = vmatprep.subr.mxu0 0.0
    %1625 = vmatpush2.msra.mxu0 0.0
    %1626 = vmatprep.subr.mxu0 0.0
    %1627 = vmatpush2.msra.mxu0 0.0
    %1628 = vmatprep.subr.mxu0 0.0
    %1629 = vmatpush2.msra.mxu0 0.0
    %1630 = vmatprep.subr.mxu0 0.0
    %1631 = vmatpush2.msra.mxu0 0.0
    %1632 = vmatprep.subr.mxu0 0.0
    %1633 = vmatpush2.msra.mxu0 0.0
    %1634 = vmatprep.subr.mxu0 0.0
    %1635 = vmatpush2.msra.mxu0 0.0
    %1636 = vmatprep.subr.mxu0 0.0
    %1637 = vmatpush2.msra.mxu0 0.0
    %1638 = vmatprep.subr.mxu0 0.0
    %1639 = vmatpush2.msra.mxu0 0.0
    %1640 = vmatprep.subr.mxu0 0.0
    %1641 = vmatpush2.msra.mxu0 0.0
    %1642 = vmatprep.subr.mxu0 0.0
    %1643 = vmatpush2.msra.mxu0 0.0
    %1644 = vmatprep.subr.mxu0 0.0
    %1645 = vmatpush2.msra.mxu0 0.0
    %1646 = vmatprep.mubr.f32.mxu0 0.0
    %1647 = vmatmul.mubr.f32.gmra.mxu0 %v1580
    %v1648 = vpop.f32.mrf.mxu0
    %v1649 = vadd.f32 0.0, %v1648
    %v1650 = vpop.f32.mrf.mxu0
    %1651 = vdwg.mxu0
    %v1653 = vsel %vm105, %v1140, 0
    %1655 = vmatprep.subr.mxu0 0.0
    %1656 = vmatpush1.msra.mxu0 0.0
    %1657 = vmatprep.subr.mxu0 0.0
    %1658 = vmatpush1.msra.mxu0 0.0
    %1659 = vmatprep.subr.mxu0 0.0
    %1660 = vmatpush1.msra.mxu0 0.0
    %1661 = vmatprep.subr.mxu0 0.0
    %1662 = vmatpush1.msra.mxu0 0.0
    %1663 = vmatprep.subr.mxu0 0.0
    %1664 = vmatpush1.msra.mxu0 0.0
    %1665 = vmatprep.subr.mxu0 0.0
    %1666 = vmatpush1.msra.mxu0 0.0
    %1667 = vmatprep.subr.mxu0 0.0
    %1668 = vmatpush1.msra.mxu0 0.0
    %1669 = vmatprep.subr.mxu0 0.0
    %1670 = vmatpush1.msra.mxu0 0.0
    %1671 = vmatprep.subr.mxu0 0.0
    %1672 = vmatpush1.msra.mxu0 0.0
    %1673 = vmatprep.subr.mxu0 0.0
    %1674 = vmatpush1.msra.mxu0 0.0
    %1675 = vmatprep.subr.mxu0 0.0
    %1676 = vmatpush1.msra.mxu0 0.0
    %1677 = vmatprep.subr.mxu0 0.0
    %1678 = vmatpush1.msra.mxu0 0.0
    %1679 = vmatprep.subr.mxu0 0.0
    %1680 = vmatpush1.msra.mxu0 0.0
    %1681 = vmatprep.subr.mxu0 0.0
    %1682 = vmatpush1.msra.mxu0 0.0
    %1683 = vmatprep.subr.mxu0 0.0
    %1684 = vmatpush1.msra.mxu0 0.0
    %1685 = vmatprep.subr.mxu0 0.0
    %1686 = vmatpush1.msra.mxu0 %v224
    %1687 = vmatprep.subr.mxu0 0.0
    %1688 = vmatpush2.msra.mxu0 0.0
    %1689 = vmatprep.subr.mxu0 0.0
    %1690 = vmatpush2.msra.mxu0 0.0
    %1691 = vmatprep.subr.mxu0 0.0
    %1692 = vmatpush2.msra.mxu0 0.0
    %1693 = vmatprep.subr.mxu0 0.0
    %1694 = vmatpush2.msra.mxu0 0.0
    %1695 = vmatprep.subr.mxu0 0.0
    %1696 = vmatpush2.msra.mxu0 0.0
    %1697 = vmatprep.subr.mxu0 0.0
    %1698 = vmatpush2.msra.mxu0 0.0
    %1699 = vmatprep.subr.mxu0 0.0
    %1700 = vmatpush2.msra.mxu0 0.0
    %1701 = vmatprep.subr.mxu0 0.0
    %1702 = vmatpush2.msra.mxu0 0.0
    %1703 = vmatprep.subr.mxu0 0.0
    %1704 = vmatpush2.msra.mxu0 0.0
    %1705 = vmatprep.subr.mxu0 0.0
    %1706 = vmatpush2.msra.mxu0 0.0
    %1707 = vmatprep.subr.mxu0 0.0
    %1708 = vmatpush2.msra.mxu0 0.0
    %1709 = vmatprep.subr.mxu0 0.0
    %1710 = vmatpush2.msra.mxu0 0.0
    %1711 = vmatprep.subr.mxu0 0.0
    %1712 = vmatpush2.msra.mxu0 0.0
    %1713 = vmatprep.subr.mxu0 0.0
    %1714 = vmatpush2.msra.mxu0 0.0
    %1715 = vmatprep.subr.mxu0 0.0
    %1716 = vmatpush2.msra.mxu0 0.0
    %1717 = vmatprep.subr.mxu0 0.0
    %1718 = vmatpush2.msra.mxu0 0.0
    %1719 = vmatprep.mubr.f32.mxu0 0.0
    %1720 = vmatmul.mubr.f32.gmra.mxu0 %v1653
    %v1721 = vpop.f32.mrf.mxu0
    %v1722 = vadd.f32 0.0, %v1721
    %v1723 = vpop.f32.mrf.mxu0
    %1724 = vdwg.mxu0
    %1727 = vrot.lane.b32.xlu0 %v1357, 8
    %v1728 = vpop.permute.xlu0 %1727
    %1729 = vrot.lane.b32.xlu0 %v1430, 8
    %v1730 = vpop.permute.xlu0 %1729
    %1735 = vrot.lane.b32.xlu0 %v1503, 16
    %v1736 = vpop.permute.xlu0 %1735
    %1737 = vrot.lane.b32.xlu0 %v1576, 16
    %v1738 = vpop.permute.xlu0 %1737
    %1743 = vrot.lane.b32.xlu0 %v1649, 24
    %v1744 = vpop.permute.xlu0 %1743
    %1745 = vrot.lane.b32.xlu0 %v1722, 24
    %v1746 = vpop.permute.xlu0 %1745
    %v1749 = vsel %vm105, %v1211, %v1728
    %v1750 = vsel %vm105, %v1284, %v1730
    %vm1751 = vcmask 130048
    %v1752 = vsel %vm1751, %v1749, %v1736
    %v1753 = vsel %vm1751, %v1750, %v1738
    %vm1754 = vcmask 195584
    %v1755 = vsel %vm1754, %v1752, %v1744
    %v1756 = vsel %vm1754, %v1753, %v1746
    %v1757 = vlaneseq
    %v1758 = vshrl.u32 %v1757, 7
    %v1759 = vsub.s32 0, %v1758
    %v1760 = vrot.slane %v85, %v1759
    %vm1761 = vcmask 261120
    %v1763 = vsel %vm1761, %v1755, 0
    %v1766 = vsel %vm1761, %v1756, 0
    %1768 = vmatprep.subr.mxu0 0.0
    %1769 = vmatpush1.msra.mxu0 0.0
    %1770 = vmatprep.subr.mxu0 0.0
    %1771 = vmatpush1.msra.mxu0 0.0
    %1772 = vmatprep.subr.mxu0 0.0
    %1773 = vmatpush1.msra.mxu0 0.0
    %1774 = vmatprep.subr.mxu0 0.0
    %1775 = vmatpush1.msra.mxu0 0.0
    %1776 = vmatprep.subr.mxu0 0.0
    %1777 = vmatpush1.msra.mxu0 0.0
    %1778 = vmatprep.subr.mxu0 0.0
    %1779 = vmatpush1.msra.mxu0 0.0
    %1780 = vmatprep.subr.mxu0 0.0
    %1781 = vmatpush1.msra.mxu0 0.0
    %1782 = vmatprep.subr.mxu0 0.0
    %1783 = vmatpush1.msra.mxu0 0.0
    %1784 = vmatprep.subr.mxu0 0.0
    %1785 = vmatpush1.msra.mxu0 0.0
    %1786 = vmatprep.subr.mxu0 0.0
    %1787 = vmatpush1.msra.mxu0 0.0
    %1788 = vmatprep.subr.mxu0 0.0
    %1789 = vmatpush1.msra.mxu0 0.0
    %1790 = vmatprep.subr.mxu0 0.0
    %1791 = vmatpush1.msra.mxu0 0.0
    %1792 = vmatprep.subr.mxu0 0.0
    %1793 = vmatpush1.msra.mxu0 %v64
    %1794 = vmatprep.subr.mxu0 0.0
    %1795 = vmatpush1.msra.mxu0 %v63
    %1796 = vmatprep.subr.mxu0 0.0
    %1797 = vmatpush1.msra.mxu0 %v62
    %1798 = vmatprep.subr.mxu0 0.0
    %1799 = vmatpush1.msra.mxu0 %v61
    %1800 = vmatprep.subr.mxu0 0.0
    %1801 = vmatpush2.msra.mxu0 0.0
    %1802 = vmatprep.subr.mxu0 0.0
    %1803 = vmatpush2.msra.mxu0 0.0
    %1804 = vmatprep.subr.mxu0 0.0
    %1805 = vmatpush2.msra.mxu0 0.0
    %1806 = vmatprep.subr.mxu0 0.0
    %1807 = vmatpush2.msra.mxu0 0.0
    %1808 = vmatprep.subr.mxu0 0.0
    %1809 = vmatpush2.msra.mxu0 0.0
    %1810 = vmatprep.subr.mxu0 0.0
    %1811 = vmatpush2.msra.mxu0 0.0
    %1812 = vmatprep.subr.mxu0 0.0
    %1813 = vmatpush2.msra.mxu0 0.0
    %1814 = vmatprep.subr.mxu0 0.0
    %1815 = vmatpush2.msra.mxu0 0.0
    %1816 = vmatprep.subr.mxu0 0.0
    %1817 = vmatpush2.msra.mxu0 0.0
    %1818 = vmatprep.subr.mxu0 0.0
    %1819 = vmatpush2.msra.mxu0 0.0
    %1820 = vmatprep.subr.mxu0 0.0
    %1821 = vmatpush2.msra.mxu0 0.0
    %1822 = vmatprep.subr.mxu0 0.0
    %1823 = vmatpush2.msra.mxu0 0.0
    %1824 = vmatprep.subr.mxu0 0.0
    %1825 = vmatpush2.msra.mxu0 0.0
    %1826 = vmatprep.subr.mxu0 0.0
    %1827 = vmatpush2.msra.mxu0 0.0
    %1828 = vmatprep.subr.mxu0 0.0
    %1829 = vmatpush2.msra.mxu0 0.0
    %1830 = vmatprep.subr.mxu0 0.0
    %1831 = vmatpush2.msra.mxu0 0.0
    %1832 = vmatprep.mubr.f32.mxu0 0.0
    %1833 = vmatmul.mubr.f32.gmra.mxu0 %v1763
    %v1834 = vpop.f32.mrf.mxu0
    %v1835 = vadd.f32 %v1760, %v1834
    %v1836 = vpop.f32.mrf.mxu0
    %1837 = vmatprep.mubr.f32.mxu0 0.0
    %1838 = vmatmul.mubr.f32.gmra.mxu0 %v1766
    %v1839 = vpop.f32.mrf.mxu0
    %v1840 = vadd.f32 %v1760, %v1839
    %v1841 = vpop.f32.mrf.mxu0
    %1842 = vdwg.mxu0
    %v1843 = vadd.f32 %v1835, %v49
    %v1844 = vadd.f32 %v1840, %v50
    %v1845 = vsel %vm1761, %v1843, 0.0
    %1846 = vadd.xlane.f32.xlu0 %v1845
    %v1847 = vpop.xlane.xlu0 %1846
    %v1848 = vsel %vm1761, %v1844, 0.0
    %1849 = vadd.xlane.f32.xlu0 %v1848
    %v1850 = vpop.xlane.xlu0 %1849
    %v1851 = vrcp.pop 32.0
    %v1852 = vmul.f32 %v1847, %v1851
    %v1853 = vmul.f32 %v1850, %v1851
    %v1854 = vsub.f32 %v1843, %v1852
    %v1855 = vsub.f32 %v1844, %v1853
    %v1856 = vmul.f32 %v1854, %v1854
    %v1857 = vmul.f32 %v1855, %v1855
    %v1858 = vsel %vm1761, %v1856, 0.0
    %1859 = vadd.xlane.f32.xlu0 %v1858
    %v1860 = vpop.xlane.xlu0 %1859
    %v1861 = vsel %vm1761, %v1857, 0.0
    %1862 = vadd.xlane.f32.xlu0 %v1861
    %v1863 = vpop.xlane.xlu0 %1862
    %v1864 = vmul.f32 %v1860, %v1851
    %v1865 = vmul.f32 %v1863, %v1851
    %v1866 = vadd.f32 %v1864, 1e-05
    %v1867 = vadd.f32 %v1865, 1e-05
    %v1868 = vrsqrt.pop %v1866
    %v1869 = vrsqrt.pop %v1867
    %v1870 = vmul.f32 %v1854, %v1868
    %v1871 = vmul.f32 %v1855, %v1869
    %v1872 = vlaneseq
    %v1873 = vshrl.u32 %v1872, 7
    %v1874 = vsub.s32 2, %v1873
    %v1875 = vrot.slane %v85, %v1874
    %v1876 = vmul.f32 %v1870, %v1875
    %v1877 = vmul.f32 %v1871, %v1875
    %v1878 = vlaneseq
    %v1879 = vshrl.u32 %v1878, 7
    %v1880 = vsub.s32 3, %v1879
    %v1881 = vrot.slane %v85, %v1880
    %v1882 = vadd.f32 %v1876, %v1881
    %v1883 = vadd.f32 %v1877, %v1881
    %1886 = vrot.lane.b32.xlu0 %v51, 120
    %v1887 = vpop.permute.xlu0 %1886
    %1888 = vrot.lane.b32.xlu0 %v52, 120
    %v1889 = vpop.permute.xlu0 %1888
    %1890 = vrot.lane.b32.xlu0 %v51, 112
    %v1891 = vpop.permute.xlu0 %1890
    %1892 = vrot.lane.b32.xlu0 %v52, 112
    %v1893 = vpop.permute.xlu0 %1892
    %1894 = vrot.lane.b32.xlu0 %v51, 104
    %v1895 = vpop.permute.xlu0 %1894
    %1896 = vrot.lane.b32.xlu0 %v52, 104
    %v1897 = vpop.permute.xlu0 %1896
    %1900 = vrot.lane.b32.xlu0 %v53, 120
    %v1901 = vpop.permute.xlu0 %1900
    %1902 = vrot.lane.b32.xlu0 %v54, 120
    %v1903 = vpop.permute.xlu0 %1902
    %1904 = vrot.lane.b32.xlu0 %v53, 112
    %v1905 = vpop.permute.xlu0 %1904
    %1906 = vrot.lane.b32.xlu0 %v54, 112
    %v1907 = vpop.permute.xlu0 %1906
    %1908 = vrot.lane.b32.xlu0 %v53, 104
    %v1909 = vpop.permute.xlu0 %1908
    %1910 = vrot.lane.b32.xlu0 %v54, 104
    %v1911 = vpop.permute.xlu0 %1910
    %1914 = vrot.lane.b32.xlu0 %v1882, 120
    %v1915 = vpop.permute.xlu0 %1914
    %1916 = vrot.lane.b32.xlu0 %v1883, 120
    %v1917 = vpop.permute.xlu0 %1916
    %1918 = vrot.lane.b32.xlu0 %v1882, 112
    %v1919 = vpop.permute.xlu0 %1918
    %1920 = vrot.lane.b32.xlu0 %v1883, 112
    %v1921 = vpop.permute.xlu0 %1920
    %1922 = vrot.lane.b32.xlu0 %v1882, 104
    %v1923 = vpop.permute.xlu0 %1922
    %1924 = vrot.lane.b32.xlu0 %v1883, 104
    %v1925 = vpop.permute.xlu0 %1924
    %v1926 = vsel %vm105, %v51, 0
    %v1928 = vsel %vm105, %v52, 0
    %v1930 = vsel %vm105, %v1887, 0
    %v1932 = vsel %vm105, %v1889, 0
    %v1934 = vsel %vm105, %v1891, 0
    %v1936 = vsel %vm105, %v1893, 0
    %v1938 = vsel %vm105, %v1895, 0
    %v1940 = vsel %vm105, %v1897, 0
    %1942 = vmatprep.subr.mxu0 0.0
    %1943 = vmatpush1.msra.mxu0 0.0
    %1944 = vmatprep.subr.mxu0 0.0
    %1945 = vmatpush1.msra.mxu0 0.0
    %1946 = vmatprep.subr.mxu0 0.0
    %1947 = vmatpush1.msra.mxu0 0.0
    %1948 = vmatprep.subr.mxu0 0.0
    %1949 = vmatpush1.msra.mxu0 0.0
    %1950 = vmatprep.subr.mxu0 0.0
    %1951 = vmatpush1.msra.mxu0 0.0
    %1952 = vmatprep.subr.mxu0 0.0
    %1953 = vmatpush1.msra.mxu0 0.0
    %1954 = vmatprep.subr.mxu0 0.0
    %1955 = vmatpush1.msra.mxu0 0.0
    %1956 = vmatprep.subr.mxu0 0.0
    %1957 = vmatpush1.msra.mxu0 0.0
    %1958 = vmatprep.subr.mxu0 0.0
    %1959 = vmatpush1.msra.mxu0 0.0
    %1960 = vmatprep.subr.mxu0 0.0
    %1961 = vmatpush1.msra.mxu0 0.0
    %1962 = vmatprep.subr.mxu0 0.0
    %1963 = vmatpush1.msra.mxu0 0.0
    %1964 = vmatprep.subr.mxu0 0.0
    %1965 = vmatpush1.msra.mxu0 0.0
    %1966 = vmatprep.subr.mxu0 0.0
    %1967 = vmatpush1.msra.mxu0 0.0
    %1968 = vmatprep.subr.mxu0 0.0
    %1969 = vmatpush1.msra.mxu0 0.0
    %1970 = vmatprep.subr.mxu0 0.0
    %1971 = vmatpush1.msra.mxu0 0.0
    %1972 = vmatprep.subr.mxu0 0.0
    %1973 = vmatpush1.msra.mxu0 %v60
    %1974 = vmatprep.subr.mxu0 0.0
    %1975 = vmatpush2.msra.mxu0 0.0
    %1976 = vmatprep.subr.mxu0 0.0
    %1977 = vmatpush2.msra.mxu0 0.0
    %1978 = vmatprep.subr.mxu0 0.0
    %1979 = vmatpush2.msra.mxu0 0.0
    %1980 = vmatprep.subr.mxu0 0.0
    %1981 = vmatpush2.msra.mxu0 0.0
    %1982 = vmatprep.subr.mxu0 0.0
    %1983 = vmatpush2.msra.mxu0 0.0
    %1984 = vmatprep.subr.mxu0 0.0
    %1985 = vmatpush2.msra.mxu0 0.0
    %1986 = vmatprep.subr.mxu0 0.0
    %1987 = vmatpush2.msra.mxu0 0.0
    %1988 = vmatprep.subr.mxu0 0.0
    %1989 = vmatpush2.msra.mxu0 0.0
    %1990 = vmatprep.subr.mxu0 0.0
    %1991 = vmatpush2.msra.mxu0 0.0
    %1992 = vmatprep.subr.mxu0 0.0
    %1993 = vmatpush2.msra.mxu0 0.0
    %1994 = vmatprep.subr.mxu0 0.0
    %1995 = vmatpush2.msra.mxu0 0.0
    %1996 = vmatprep.subr.mxu0 0.0
    %1997 = vmatpush2.msra.mxu0 0.0
    %1998 = vmatprep.subr.mxu0 0.0
    %1999 = vmatpush2.msra.mxu0 0.0
    %2000 = vmatprep.subr.mxu0 0.0
    %2001 = vmatpush2.msra.mxu0 0.0
    %2002 = vmatprep.subr.mxu0 0.0
    %2003 = vmatpush2.msra.mxu0 0.0
    %2004 = vmatprep.subr.mxu0 0.0
    %2005 = vmatpush2.msra.mxu0 0.0
    %2006 = vmatprep.mubr.f32.mxu0 0.0
    %2007 = vmatmul.mubr.f32.gmra.mxu0 %v1926
    %v2008 = vpop.f32.mrf.mxu0
    %v2009 = vadd.f32 0.0, %v2008
    %v2010 = vpop.f32.mrf.mxu0
    %2011 = vmatprep.mubr.f32.mxu0 0.0
    %2012 = vmatmul.mubr.f32.gmra.mxu0 %v1928
    %v2013 = vpop.f32.mrf.mxu0
    %v2014 = vadd.f32 0.0, %v2013
    %v2015 = vpop.f32.mrf.mxu0
    %2016 = vmatprep.mubr.f32.mxu0 0.0
    %2017 = vmatmul.mubr.f32.gmra.mxu0 %v1930
    %v2018 = vpop.f32.mrf.mxu0
    %v2019 = vadd.f32 0.0, %v2018
    %v2020 = vpop.f32.mrf.mxu0
    %2021 = vmatprep.mubr.f32.mxu0 0.0
    %2022 = vmatmul.mubr.f32.gmra.mxu0 %v1932
    %v2023 = vpop.f32.mrf.mxu0
    %v2024 = vadd.f32 0.0, %v2023
    %v2025 = vpop.f32.mrf.mxu0
    %2026 = vmatprep.mubr.f32.mxu0 0.0
    %2027 = vmatmul.mubr.f32.gmra.mxu0 %v1934
    %v2028 = vpop.f32.mrf.mxu0
    %v2029 = vadd.f32 0.0, %v2028
    %v2030 = vpop.f32.mrf.mxu0
    %2031 = vmatprep.mubr.f32.mxu0 0.0
    %2032 = vmatmul.mubr.f32.gmra.mxu0 %v1936
    %v2033 = vpop.f32.mrf.mxu0
    %v2034 = vadd.f32 0.0, %v2033
    %v2035 = vpop.f32.mrf.mxu0
    %2036 = vmatprep.mubr.f32.mxu0 0.0
    %2037 = vmatmul.mubr.f32.gmra.mxu0 %v1938
    %v2038 = vpop.f32.mrf.mxu0
    %v2039 = vadd.f32 0.0, %v2038
    %v2040 = vpop.f32.mrf.mxu0
    %2041 = vmatprep.mubr.f32.mxu0 0.0
    %2042 = vmatmul.mubr.f32.gmra.mxu0 %v1940
    %v2043 = vpop.f32.mrf.mxu0
    %v2044 = vadd.f32 0.0, %v2043
    %v2045 = vpop.f32.mrf.mxu0
    %2046 = vdwg.mxu0
    %v2047 = vsel %vm105, %v53, 0
    %v2049 = vsel %vm105, %v54, 0
    %v2051 = vsel %vm105, %v1901, 0
    %v2053 = vsel %vm105, %v1903, 0
    %v2055 = vsel %vm105, %v1905, 0
    %v2057 = vsel %vm105, %v1907, 0
    %v2059 = vsel %vm105, %v1909, 0
    %v2061 = vsel %vm105, %v1911, 0
    %2063 = vmatprep.subr.mxu0 0.0
    %2064 = vmatpush1.msra.mxu0 0.0
    %2065 = vmatprep.subr.mxu0 0.0
    %2066 = vmatpush1.msra.mxu0 0.0
    %2067 = vmatprep.subr.mxu0 0.0
    %2068 = vmatpush1.msra.mxu0 0.0
    %2069 = vmatprep.subr.mxu0 0.0
    %2070 = vmatpush1.msra.mxu0 0.0
    %2071 = vmatprep.subr.mxu0 0.0
    %2072 = vmatpush1.msra.mxu0 0.0
    %2073 = vmatprep.subr.mxu0 0.0
    %2074 = vmatpush1.msra.mxu0 0.0
    %2075 = vmatprep.subr.mxu0 0.0
    %2076 = vmatpush1.msra.mxu0 0.0
    %2077 = vmatprep.subr.mxu0 0.0
    %2078 = vmatpush1.msra.mxu0 0.0
    %2079 = vmatprep.subr.mxu0 0.0
    %2080 = vmatpush1.msra.mxu0 0.0
    %2081 = vmatprep.subr.mxu0 0.0
    %2082 = vmatpush1.msra.mxu0 0.0
    %2083 = vmatprep.subr.mxu0 0.0
    %2084 = vmatpush1.msra.mxu0 0.0
    %2085 = vmatprep.subr.mxu0 0.0
    %2086 = vmatpush1.msra.mxu0 0.0
    %2087 = vmatprep.subr.mxu0 0.0
    %2088 = vmatpush1.msra.mxu0 0.0
    %2089 = vmatprep.subr.mxu0 0.0
    %2090 = vmatpush1.msra.mxu0 0.0
    %2091 = vmatprep.subr.mxu0 0.0
    %2092 = vmatpush1.msra.mxu0 0.0
    %2093 = vmatprep.subr.mxu0 0.0
    %2094 = vmatpush1.msra.mxu0 %v59
    %2095 = vmatprep.subr.mxu0 0.0
    %2096 = vmatpush2.msra.mxu0 0.0
    %2097 = vmatprep.subr.mxu0 0.0
    %2098 = vmatpush2.msra.mxu0 0.0
    %2099 = vmatprep.subr.mxu0 0.0
    %2100 = vmatpush2.msra.mxu0 0.0
    %2101 = vmatprep.subr.mxu0 0.0
    %2102 = vmatpush2.msra.mxu0 0.0
    %2103 = vmatprep.subr.mxu0 0.0
    %2104 = vmatpush2.msra.mxu0 0.0
    %2105 = vmatprep.subr.mxu0 0.0
    %2106 = vmatpush2.msra.mxu0 0.0
    %2107 = vmatprep.subr.mxu0 0.0
    %2108 = vmatpush2.msra.mxu0 0.0
    %2109 = vmatprep.subr.mxu0 0.0
    %2110 = vmatpush2.msra.mxu0 0.0
    %2111 = vmatprep.subr.mxu0 0.0
    %2112 = vmatpush2.msra.mxu0 0.0
    %2113 = vmatprep.subr.mxu0 0.0
    %2114 = vmatpush2.msra.mxu0 0.0
    %2115 = vmatprep.subr.mxu0 0.0
    %2116 = vmatpush2.msra.mxu0 0.0
    %2117 = vmatprep.subr.mxu0 0.0
    %2118 = vmatpush2.msra.mxu0 0.0
    %2119 = vmatprep.subr.mxu0 0.0
    %2120 = vmatpush2.msra.mxu0 0.0
    %2121 = vmatprep.subr.mxu0 0.0
    %2122 = vmatpush2.msra.mxu0 0.0
    %2123 = vmatprep.subr.mxu0 0.0
    %2124 = vmatpush2.msra.mxu0 0.0
    %2125 = vmatprep.subr.mxu0 0.0
    %2126 = vmatpush2.msra.mxu0 0.0
    %2127 = vmatprep.mubr.f32.mxu0 0.0
    %2128 = vmatmul.mubr.f32.gmra.mxu0 %v2047
    %v2129 = vpop.f32.mrf.mxu0
    %v2130 = vadd.f32 0.0, %v2129
    %v2131 = vpop.f32.mrf.mxu0
    %2132 = vmatprep.mubr.f32.mxu0 0.0
    %2133 = vmatmul.mubr.f32.gmra.mxu0 %v2049
    %v2134 = vpop.f32.mrf.mxu0
    %v2135 = vadd.f32 0.0, %v2134
    %v2136 = vpop.f32.mrf.mxu0
    %2137 = vmatprep.mubr.f32.mxu0 0.0
    %2138 = vmatmul.mubr.f32.gmra.mxu0 %v2051
    %v2139 = vpop.f32.mrf.mxu0
    %v2140 = vadd.f32 0.0, %v2139
    %v2141 = vpop.f32.mrf.mxu0
    %2142 = vmatprep.mubr.f32.mxu0 0.0
    %2143 = vmatmul.mubr.f32.gmra.mxu0 %v2053
    %v2144 = vpop.f32.mrf.mxu0
    %v2145 = vadd.f32 0.0, %v2144
    %v2146 = vpop.f32.mrf.mxu0
    %2147 = vmatprep.mubr.f32.mxu0 0.0
    %2148 = vmatmul.mubr.f32.gmra.mxu0 %v2055
    %v2149 = vpop.f32.mrf.mxu0
    %v2150 = vadd.f32 0.0, %v2149
    %v2151 = vpop.f32.mrf.mxu0
    %2152 = vmatprep.mubr.f32.mxu0 0.0
    %2153 = vmatmul.mubr.f32.gmra.mxu0 %v2057
    %v2154 = vpop.f32.mrf.mxu0
    %v2155 = vadd.f32 0.0, %v2154
    %v2156 = vpop.f32.mrf.mxu0
    %2157 = vmatprep.mubr.f32.mxu0 0.0
    %2158 = vmatmul.mubr.f32.gmra.mxu0 %v2059
    %v2159 = vpop.f32.mrf.mxu0
    %v2160 = vadd.f32 0.0, %v2159
    %v2161 = vpop.f32.mrf.mxu0
    %2162 = vmatprep.mubr.f32.mxu0 0.0
    %2163 = vmatmul.mubr.f32.gmra.mxu0 %v2061
    %v2164 = vpop.f32.mrf.mxu0
    %v2165 = vadd.f32 0.0, %v2164
    %v2166 = vpop.f32.mrf.mxu0
    %2167 = vdwg.mxu0
    %v2168 = vsel %vm105, %v1882, 0
    %v2170 = vsel %vm105, %v1883, 0
    %v2172 = vsel %vm105, %v1915, 0
    %v2174 = vsel %vm105, %v1917, 0
    %v2176 = vsel %vm105, %v1919, 0
    %v2178 = vsel %vm105, %v1921, 0
    %v2180 = vsel %vm105, %v1923, 0
    %v2182 = vsel %vm105, %v1925, 0
    %2184 = vmatprep.subr.mxu0 0.0
    %2185 = vmatpush1.msra.mxu0 0.0
    %2186 = vmatprep.subr.mxu0 0.0
    %2187 = vmatpush1.msra.mxu0 0.0
    %2188 = vmatprep.subr.mxu0 0.0
    %2189 = vmatpush1.msra.mxu0 0.0
    %2190 = vmatprep.subr.mxu0 0.0
    %2191 = vmatpush1.msra.mxu0 0.0
    %2192 = vmatprep.subr.mxu0 0.0
    %2193 = vmatpush1.msra.mxu0 0.0
    %2194 = vmatprep.subr.mxu0 0.0
    %2195 = vmatpush1.msra.mxu0 0.0
    %2196 = vmatprep.subr.mxu0 0.0
    %2197 = vmatpush1.msra.mxu0 0.0
    %2198 = vmatprep.subr.mxu0 0.0
    %2199 = vmatpush1.msra.mxu0 0.0
    %2200 = vmatprep.subr.mxu0 0.0
    %2201 = vmatpush1.msra.mxu0 0.0
    %2202 = vmatprep.subr.mxu0 0.0
    %2203 = vmatpush1.msra.mxu0 0.0
    %2204 = vmatprep.subr.mxu0 0.0
    %2205 = vmatpush1.msra.mxu0 0.0
    %2206 = vmatprep.subr.mxu0 0.0
    %2207 = vmatpush1.msra.mxu0 0.0
    %2208 = vmatprep.subr.mxu0 0.0
    %2209 = vmatpush1.msra.mxu0 0.0
    %2210 = vmatprep.subr.mxu0 0.0
    %2211 = vmatpush1.msra.mxu0 0.0
    %2212 = vmatprep.subr.mxu0 0.0
    %2213 = vmatpush1.msra.mxu0 0.0
    %2214 = vmatprep.subr.mxu0 0.0
    %2215 = vmatpush1.msra.mxu0 %v58
    %2216 = vmatprep.subr.mxu0 0.0
    %2217 = vmatpush2.msra.mxu0 0.0
    %2218 = vmatprep.subr.mxu0 0.0
    %2219 = vmatpush2.msra.mxu0 0.0
    %2220 = vmatprep.subr.mxu0 0.0
    %2221 = vmatpush2.msra.mxu0 0.0
    %2222 = vmatprep.subr.mxu0 0.0
    %2223 = vmatpush2.msra.mxu0 0.0
    %2224 = vmatprep.subr.mxu0 0.0
    %2225 = vmatpush2.msra.mxu0 0.0
    %2226 = vmatprep.subr.mxu0 0.0
    %2227 = vmatpush2.msra.mxu0 0.0
    %2228 = vmatprep.subr.mxu0 0.0
    %2229 = vmatpush2.msra.mxu0 0.0
    %2230 = vmatprep.subr.mxu0 0.0
    %2231 = vmatpush2.msra.mxu0 0.0
    %2232 = vmatprep.subr.mxu0 0.0
    %2233 = vmatpush2.msra.mxu0 0.0
    %2234 = vmatprep.subr.mxu0 0.0
    %2235 = vmatpush2.msra.mxu0 0.0
    %2236 = vmatprep.subr.mxu0 0.0
    %2237 = vmatpush2.msra.mxu0 0.0
    %2238 = vmatprep.subr.mxu0 0.0
    %2239 = vmatpush2.msra.mxu0 0.0
    %2240 = vmatprep.subr.mxu0 0.0
    %2241 = vmatpush2.msra.mxu0 0.0
    %2242 = vmatprep.subr.mxu0 0.0
    %2243 = vmatpush2.msra.mxu0 0.0
    %2244 = vmatprep.subr.mxu0 0.0
    %2245 = vmatpush2.msra.mxu0 0.0
    %2246 = vmatprep.subr.mxu0 0.0
    %2247 = vmatpush2.msra.mxu0 0.0
    %2248 = vmatprep.mubr.f32.mxu0 0.0
    %2249 = vmatmul.mubr.f32.gmra.mxu0 %v2168
    %v2250 = vpop.f32.mrf.mxu0
    %v2251 = vadd.f32 0.0, %v2250
    %v2252 = vpop.f32.mrf.mxu0
    %2253 = vmatprep.mubr.f32.mxu0 0.0
    %2254 = vmatmul.mubr.f32.gmra.mxu0 %v2170
    %v2255 = vpop.f32.mrf.mxu0
    %v2256 = vadd.f32 0.0, %v2255
    %v2257 = vpop.f32.mrf.mxu0
    %2258 = vmatprep.mubr.f32.mxu0 0.0
    %2259 = vmatmul.mubr.f32.gmra.mxu0 %v2172
    %v2260 = vpop.f32.mrf.mxu0
    %v2261 = vadd.f32 0.0, %v2260
    %v2262 = vpop.f32.mrf.mxu0
    %2263 = vmatprep.mubr.f32.mxu0 0.0
    %2264 = vmatmul.mubr.f32.gmra.mxu0 %v2174
    %v2265 = vpop.f32.mrf.mxu0
    %v2266 = vadd.f32 0.0, %v2265
    %v2267 = vpop.f32.mrf.mxu0
    %2268 = vmatprep.mubr.f32.mxu0 0.0
    %2269 = vmatmul.mubr.f32.gmra.mxu0 %v2176
    %v2270 = vpop.f32.mrf.mxu0
    %v2271 = vadd.f32 0.0, %v2270
    %v2272 = vpop.f32.mrf.mxu0
    %2273 = vmatprep.mubr.f32.mxu0 0.0
    %2274 = vmatmul.mubr.f32.gmra.mxu0 %v2178
    %v2275 = vpop.f32.mrf.mxu0
    %v2276 = vadd.f32 0.0, %v2275
    %v2277 = vpop.f32.mrf.mxu0
    %2278 = vmatprep.mubr.f32.mxu0 0.0
    %2279 = vmatmul.mubr.f32.gmra.mxu0 %v2180
    %v2280 = vpop.f32.mrf.mxu0
    %v2281 = vadd.f32 0.0, %v2280
    %v2282 = vpop.f32.mrf.mxu0
    %2283 = vmatprep.mubr.f32.mxu0 0.0
    %2284 = vmatmul.mubr.f32.gmra.mxu0 %v2182
    %v2285 = vpop.f32.mrf.mxu0
    %v2286 = vadd.f32 0.0, %v2285
    %v2287 = vpop.f32.mrf.mxu0
    %2288 = vdwg.mxu0
    %v2290 = vsel %vm105, %v2251, 0
    %v2293 = vsel %vm105, %v2130, 0
    %2295 = vmatprep.subr.mxu0 0.0
    %2296 = vmatpush1.xpose.msra.mxu0 0.0
    %2297 = vmatprep.subr.mxu0 0.0
    %2298 = vmatpush1.xpose.msra.mxu0 0.0
    %2299 = vmatprep.subr.mxu0 0.0
    %2300 = vmatpush1.xpose.msra.mxu0 0.0
    %2301 = vmatprep.subr.mxu0 0.0
    %2302 = vmatpush1.xpose.msra.mxu0 0.0
    %2303 = vmatprep.subr.mxu0 0.0
    %2304 = vmatpush1.xpose.msra.mxu0 0.0
    %2305 = vmatprep.subr.mxu0 0.0
    %2306 = vmatpush1.xpose.msra.mxu0 0.0
    %2307 = vmatprep.subr.mxu0 0.0
    %2308 = vmatpush1.xpose.msra.mxu0 0.0
    %2309 = vmatprep.subr.mxu0 0.0
    %2310 = vmatpush1.xpose.msra.mxu0 0.0
    %2311 = vmatprep.subr.mxu0 0.0
    %2312 = vmatpush1.xpose.msra.mxu0 0.0
    %2313 = vmatprep.subr.mxu0 0.0
    %2314 = vmatpush1.xpose.msra.mxu0 0.0
    %2315 = vmatprep.subr.mxu0 0.0
    %2316 = vmatpush1.xpose.msra.mxu0 0.0
    %2317 = vmatprep.subr.mxu0 0.0
    %2318 = vmatpush1.xpose.msra.mxu0 0.0
    %2319 = vmatprep.subr.mxu0 0.0
    %2320 = vmatpush1.xpose.msra.mxu0 0.0
    %2321 = vmatprep.subr.mxu0 0.0
    %2322 = vmatpush1.xpose.msra.mxu0 0.0
    %2323 = vmatprep.subr.mxu0 0.0
    %2324 = vmatpush1.xpose.msra.mxu0 0.0
    %2325 = vmatprep.subr.mxu0 0.0
    %2326 = vmatpush1.xpose.msra.mxu0 %v2293
    %2327 = vmatprep.subr.mxu0 0.0
    %2328 = vmatpush2.xpose.msra.mxu0 0.0
    %2329 = vmatprep.subr.mxu0 0.0
    %2330 = vmatpush2.xpose.msra.mxu0 0.0
    %2331 = vmatprep.subr.mxu0 0.0
    %2332 = vmatpush2.xpose.msra.mxu0 0.0
    %2333 = vmatprep.subr.mxu0 0.0
    %2334 = vmatpush2.xpose.msra.mxu0 0.0
    %2335 = vmatprep.subr.mxu0 0.0
    %2336 = vmatpush2.xpose.msra.mxu0 0.0
    %2337 = vmatprep.subr.mxu0 0.0
    %2338 = vmatpush2.xpose.msra.mxu0 0.0
    %2339 = vmatprep.subr.mxu0 0.0
    %2340 = vmatpush2.xpose.msra.mxu0 0.0
    %2341 = vmatprep.subr.mxu0 0.0
    %2342 = vmatpush2.xpose.msra.mxu0 0.0
    %2343 = vmatprep.subr.mxu0 0.0
    %2344 = vmatpush2.xpose.msra.mxu0 0.0
    %2345 = vmatprep.subr.mxu0 0.0
    %2346 = vmatpush2.xpose.msra.mxu0 0.0
    %2347 = vmatprep.subr.mxu0 0.0
    %2348 = vmatpush2.xpose.msra.mxu0 0.0
    %2349 = vmatprep.subr.mxu0 0.0
    %2350 = vmatpush2.xpose.msra.mxu0 0.0
    %2351 = vmatprep.subr.mxu0 0.0
    %2352 = vmatpush2.xpose.msra.mxu0 0.0
    %2353 = vmatprep.subr.mxu0 0.0
    %2354 = vmatpush2.xpose.msra.mxu0 0.0
    %2355 = vmatprep.subr.mxu0 0.0
    %2356 = vmatpush2.xpose.msra.mxu0 0.0
    %2357 = vmatprep.subr.mxu0 0.0
    %2358 = vmatpush2.xpose.msra.mxu0 0.0
    %2359 = vmatprep.mubr.f32.mxu0 0.0
    %2360 = vmatmul.mubr.f32.gmra.mxu0 %v2290
    %v2361 = vpop.f32.mrf.mxu0
    %v2362 = vadd.f32 0.0, %v2361
    %v2363 = vpop.f32.mrf.mxu0
    %2364 = vdwg.mxu0
    %v2366 = vsel %vm105, %v2256, 0
    %v2369 = vsel %vm105, %v2135, 0
    %2371 = vmatprep.subr.mxu0 0.0
    %2372 = vmatpush1.xpose.msra.mxu0 0.0
    %2373 = vmatprep.subr.mxu0 0.0
    %2374 = vmatpush1.xpose.msra.mxu0 0.0
    %2375 = vmatprep.subr.mxu0 0.0
    %2376 = vmatpush1.xpose.msra.mxu0 0.0
    %2377 = vmatprep.subr.mxu0 0.0
    %2378 = vmatpush1.xpose.msra.mxu0 0.0
    %2379 = vmatprep.subr.mxu0 0.0
    %2380 = vmatpush1.xpose.msra.mxu0 0.0
    %2381 = vmatprep.subr.mxu0 0.0
    %2382 = vmatpush1.xpose.msra.mxu0 0.0
    %2383 = vmatprep.subr.mxu0 0.0
    %2384 = vmatpush1.xpose.msra.mxu0 0.0
    %2385 = vmatprep.subr.mxu0 0.0
    %2386 = vmatpush1.xpose.msra.mxu0 0.0
    %2387 = vmatprep.subr.mxu0 0.0
    %2388 = vmatpush1.xpose.msra.mxu0 0.0
    %2389 = vmatprep.subr.mxu0 0.0
    %2390 = vmatpush1.xpose.msra.mxu0 0.0
    %2391 = vmatprep.subr.mxu0 0.0
    %2392 = vmatpush1.xpose.msra.mxu0 0.0
    %2393 = vmatprep.subr.mxu0 0.0
    %2394 = vmatpush1.xpose.msra.mxu0 0.0
    %2395 = vmatprep.subr.mxu0 0.0
    %2396 = vmatpush1.xpose.msra.mxu0 0.0
    %2397 = vmatprep.subr.mxu0 0.0
    %2398 = vmatpush1.xpose.msra.mxu0 0.0
    %2399 = vmatprep.subr.mxu0 0.0
    %2400 = vmatpush1.xpose.msra.mxu0 0.0
    %2401 = vmatprep.subr.mxu0 0.0
    %2402 = vmatpush1.xpose.msra.mxu0 %v2369
    %2403 = vmatprep.subr.mxu0 0.0
    %2404 = vmatpush2.xpose.msra.mxu0 0.0
    %2405 = vmatprep.subr.mxu0 0.0
    %2406 = vmatpush2.xpose.msra.mxu0 0.0
    %2407 = vmatprep.subr.mxu0 0.0
    %2408 = vmatpush2.xpose.msra.mxu0 0.0
    %2409 = vmatprep.subr.mxu0 0.0
    %2410 = vmatpush2.xpose.msra.mxu0 0.0
    %2411 = vmatprep.subr.mxu0 0.0
    %2412 = vmatpush2.xpose.msra.mxu0 0.0
    %2413 = vmatprep.subr.mxu0 0.0
    %2414 = vmatpush2.xpose.msra.mxu0 0.0
    %2415 = vmatprep.subr.mxu0 0.0
    %2416 = vmatpush2.xpose.msra.mxu0 0.0
    %2417 = vmatprep.subr.mxu0 0.0
    %2418 = vmatpush2.xpose.msra.mxu0 0.0
    %2419 = vmatprep.subr.mxu0 0.0
    %2420 = vmatpush2.xpose.msra.mxu0 0.0
    %2421 = vmatprep.subr.mxu0 0.0
    %2422 = vmatpush2.xpose.msra.mxu0 0.0
    %2423 = vmatprep.subr.mxu0 0.0
    %2424 = vmatpush2.xpose.msra.mxu0 0.0
    %2425 = vmatprep.subr.mxu0 0.0
    %2426 = vmatpush2.xpose.msra.mxu0 0.0
    %2427 = vmatprep.subr.mxu0 0.0
    %2428 = vmatpush2.xpose.msra.mxu0 0.0
    %2429 = vmatprep.subr.mxu0 0.0
    %2430 = vmatpush2.xpose.msra.mxu0 0.0
    %2431 = vmatprep.subr.mxu0 0.0
    %2432 = vmatpush2.xpose.msra.mxu0 0.0
    %2433 = vmatprep.subr.mxu0 0.0
    %2434 = vmatpush2.xpose.msra.mxu0 0.0
    %2435 = vmatprep.mubr.f32.mxu0 0.0
    %2436 = vmatmul.mubr.f32.gmra.mxu0 %v2366
    %v2437 = vpop.f32.mrf.mxu0
    %v2438 = vadd.f32 0.0, %v2437
    %v2439 = vpop.f32.mrf.mxu0
    %2440 = vdwg.mxu0
    %v2442 = vsel %vm105, %v2261, 0
    %v2445 = vsel %vm105, %v2140, 0
    %2447 = vmatprep.subr.mxu0 0.0
    %2448 = vmatpush1.xpose.msra.mxu0 0.0
    %2449 = vmatprep.subr.mxu0 0.0
    %2450 = vmatpush1.xpose.msra.mxu0 0.0
    %2451 = vmatprep.subr.mxu0 0.0
    %2452 = vmatpush1.xpose.msra.mxu0 0.0
    %2453 = vmatprep.subr.mxu0 0.0
    %2454 = vmatpush1.xpose.msra.mxu0 0.0
    %2455 = vmatprep.subr.mxu0 0.0
    %2456 = vmatpush1.xpose.msra.mxu0 0.0
    %2457 = vmatprep.subr.mxu0 0.0
    %2458 = vmatpush1.xpose.msra.mxu0 0.0
    %2459 = vmatprep.subr.mxu0 0.0
    %2460 = vmatpush1.xpose.msra.mxu0 0.0
    %2461 = vmatprep.subr.mxu0 0.0
    %2462 = vmatpush1.xpose.msra.mxu0 0.0
    %2463 = vmatprep.subr.mxu0 0.0
    %2464 = vmatpush1.xpose.msra.mxu0 0.0
    %2465 = vmatprep.subr.mxu0 0.0
    %2466 = vmatpush1.xpose.msra.mxu0 0.0
    %2467 = vmatprep.subr.mxu0 0.0
    %2468 = vmatpush1.xpose.msra.mxu0 0.0
    %2469 = vmatprep.subr.mxu0 0.0
    %2470 = vmatpush1.xpose.msra.mxu0 0.0
    %2471 = vmatprep.subr.mxu0 0.0
    %2472 = vmatpush1.xpose.msra.mxu0 0.0
    %2473 = vmatprep.subr.mxu0 0.0
    %2474 = vmatpush1.xpose.msra.mxu0 0.0
    %2475 = vmatprep.subr.mxu0 0.0
    %2476 = vmatpush1.xpose.msra.mxu0 0.0
    %2477 = vmatprep.subr.mxu0 0.0
    %2478 = vmatpush1.xpose.msra.mxu0 %v2445
    %2479 = vmatprep.subr.mxu0 0.0
    %2480 = vmatpush2.xpose.msra.mxu0 0.0
    %2481 = vmatprep.subr.mxu0 0.0
    %2482 = vmatpush2.xpose.msra.mxu0 0.0
    %2483 = vmatprep.subr.mxu0 0.0
    %2484 = vmatpush2.xpose.msra.mxu0 0.0
    %2485 = vmatprep.subr.mxu0 0.0
    %2486 = vmatpush2.xpose.msra.mxu0 0.0
    %2487 = vmatprep.subr.mxu0 0.0
    %2488 = vmatpush2.xpose.msra.mxu0 0.0
    %2489 = vmatprep.subr.mxu0 0.0
    %2490 = vmatpush2.xpose.msra.mxu0 0.0
    %2491 = vmatprep.subr.mxu0 0.0
    %2492 = vmatpush2.xpose.msra.mxu0 0.0
    %2493 = vmatprep.subr.mxu0 0.0
    %2494 = vmatpush2.xpose.msra.mxu0 0.0
    %2495 = vmatprep.subr.mxu0 0.0
    %2496 = vmatpush2.xpose.msra.mxu0 0.0
    %2497 = vmatprep.subr.mxu0 0.0
    %2498 = vmatpush2.xpose.msra.mxu0 0.0
    %2499 = vmatprep.subr.mxu0 0.0
    %2500 = vmatpush2.xpose.msra.mxu0 0.0
    %2501 = vmatprep.subr.mxu0 0.0
    %2502 = vmatpush2.xpose.msra.mxu0 0.0
    %2503 = vmatprep.subr.mxu0 0.0
    %2504 = vmatpush2.xpose.msra.mxu0 0.0
    %2505 = vmatprep.subr.mxu0 0.0
    %2506 = vmatpush2.xpose.msra.mxu0 0.0
    %2507 = vmatprep.subr.mxu0 0.0
    %2508 = vmatpush2.xpose.msra.mxu0 0.0
    %2509 = vmatprep.subr.mxu0 0.0
    %2510 = vmatpush2.xpose.msra.mxu0 0.0
    %2511 = vmatprep.mubr.f32.mxu0 0.0
    %2512 = vmatmul.mubr.f32.gmra.mxu0 %v2442
    %v2513 = vpop.f32.mrf.mxu0
    %v2514 = vadd.f32 0.0, %v2513
    %v2515 = vpop.f32.mrf.mxu0
    %2516 = vdwg.mxu0
    %v2518 = vsel %vm105, %v2266, 0
    %v2521 = vsel %vm105, %v2145, 0
    %2523 = vmatprep.subr.mxu0 0.0
    %2524 = vmatpush1.xpose.msra.mxu0 0.0
    %2525 = vmatprep.subr.mxu0 0.0
    %2526 = vmatpush1.xpose.msra.mxu0 0.0
    %2527 = vmatprep.subr.mxu0 0.0
    %2528 = vmatpush1.xpose.msra.mxu0 0.0
    %2529 = vmatprep.subr.mxu0 0.0
    %2530 = vmatpush1.xpose.msra.mxu0 0.0
    %2531 = vmatprep.subr.mxu0 0.0
    %2532 = vmatpush1.xpose.msra.mxu0 0.0
    %2533 = vmatprep.subr.mxu0 0.0
    %2534 = vmatpush1.xpose.msra.mxu0 0.0
    %2535 = vmatprep.subr.mxu0 0.0
    %2536 = vmatpush1.xpose.msra.mxu0 0.0
    %2537 = vmatprep.subr.mxu0 0.0
    %2538 = vmatpush1.xpose.msra.mxu0 0.0
    %2539 = vmatprep.subr.mxu0 0.0
    %2540 = vmatpush1.xpose.msra.mxu0 0.0
    %2541 = vmatprep.subr.mxu0 0.0
    %2542 = vmatpush1.xpose.msra.mxu0 0.0
    %2543 = vmatprep.subr.mxu0 0.0
    %2544 = vmatpush1.xpose.msra.mxu0 0.0
    %2545 = vmatprep.subr.mxu0 0.0
    %2546 = vmatpush1.xpose.msra.mxu0 0.0
    %2547 = vmatprep.subr.mxu0 0.0
    %2548 = vmatpush1.xpose.msra.mxu0 0.0
    %2549 = vmatprep.subr.mxu0 0.0
    %2550 = vmatpush1.xpose.msra.mxu0 0.0
    %2551 = vmatprep.subr.mxu0 0.0
    %2552 = vmatpush1.xpose.msra.mxu0 0.0
    %2553 = vmatprep.subr.mxu0 0.0
    %2554 = vmatpush1.xpose.msra.mxu0 %v2521
    %2555 = vmatprep.subr.mxu0 0.0
    %2556 = vmatpush2.xpose.msra.mxu0 0.0
    %2557 = vmatprep.subr.mxu0 0.0
    %2558 = vmatpush2.xpose.msra.mxu0 0.0
    %2559 = vmatprep.subr.mxu0 0.0
    %2560 = vmatpush2.xpose.msra.mxu0 0.0
    %2561 = vmatprep.subr.mxu0 0.0
    %2562 = vmatpush2.xpose.msra.mxu0 0.0
    %2563 = vmatprep.subr.mxu0 0.0
    %2564 = vmatpush2.xpose.msra.mxu0 0.0
    %2565 = vmatprep.subr.mxu0 0.0
    %2566 = vmatpush2.xpose.msra.mxu0 0.0
    %2567 = vmatprep.subr.mxu0 0.0
    %2568 = vmatpush2.xpose.msra.mxu0 0.0
    %2569 = vmatprep.subr.mxu0 0.0
    %2570 = vmatpush2.xpose.msra.mxu0 0.0
    %2571 = vmatprep.subr.mxu0 0.0
    %2572 = vmatpush2.xpose.msra.mxu0 0.0
    %2573 = vmatprep.subr.mxu0 0.0
    %2574 = vmatpush2.xpose.msra.mxu0 0.0
    %2575 = vmatprep.subr.mxu0 0.0
    %2576 = vmatpush2.xpose.msra.mxu0 0.0
    %2577 = vmatprep.subr.mxu0 0.0
    %2578 = vmatpush2.xpose.msra.mxu0 0.0
    %2579 = vmatprep.subr.mxu0 0.0
    %2580 = vmatpush2.xpose.msra.mxu0 0.0
    %2581 = vmatprep.subr.mxu0 0.0
    %2582 = vmatpush2.xpose.msra.mxu0 0.0
    %2583 = vmatprep.subr.mxu0 0.0
    %2584 = vmatpush2.xpose.msra.mxu0 0.0
    %2585 = vmatprep.subr.mxu0 0.0
    %2586 = vmatpush2.xpose.msra.mxu0 0.0
    %2587 = vmatprep.mubr.f32.mxu0 0.0
    %2588 = vmatmul.mubr.f32.gmra.mxu0 %v2518
    %v2589 = vpop.f32.mrf.mxu0
    %v2590 = vadd.f32 0.0, %v2589
    %v2591 = vpop.f32.mrf.mxu0
    %2592 = vdwg.mxu0
    %v2594 = vsel %vm105, %v2271, 0
    %v2597 = vsel %vm105, %v2150, 0
    %2599 = vmatprep.subr.mxu0 0.0
    %2600 = vmatpush1.xpose.msra.mxu0 0.0
    %2601 = vmatprep.subr.mxu0 0.0
    %2602 = vmatpush1.xpose.msra.mxu0 0.0
    %2603 = vmatprep.subr.mxu0 0.0
    %2604 = vmatpush1.xpose.msra.mxu0 0.0
    %2605 = vmatprep.subr.mxu0 0.0
    %2606 = vmatpush1.xpose.msra.mxu0 0.0
    %2607 = vmatprep.subr.mxu0 0.0
    %2608 = vmatpush1.xpose.msra.mxu0 0.0
    %2609 = vmatprep.subr.mxu0 0.0
    %2610 = vmatpush1.xpose.msra.mxu0 0.0
    %2611 = vmatprep.subr.mxu0 0.0
    %2612 = vmatpush1.xpose.msra.mxu0 0.0
    %2613 = vmatprep.subr.mxu0 0.0
    %2614 = vmatpush1.xpose.msra.mxu0 0.0
    %2615 = vmatprep.subr.mxu0 0.0
    %2616 = vmatpush1.xpose.msra.mxu0 0.0
    %2617 = vmatprep.subr.mxu0 0.0
    %2618 = vmatpush1.xpose.msra.mxu0 0.0
    %2619 = vmatprep.subr.mxu0 0.0
    %2620 = vmatpush1.xpose.msra.mxu0 0.0
    %2621 = vmatprep.subr.mxu0 0.0
    %2622 = vmatpush1.xpose.msra.mxu0 0.0
    %2623 = vmatprep.subr.mxu0 0.0
    %2624 = vmatpush1.xpose.msra.mxu0 0.0
    %2625 = vmatprep.subr.mxu0 0.0
    %2626 = vmatpush1.xpose.msra.mxu0 0.0
    %2627 = vmatprep.subr.mxu0 0.0
    %2628 = vmatpush1.xpose.msra.mxu0 0.0
    %2629 = vmatprep.subr.mxu0 0.0
    %2630 = vmatpush1.xpose.msra.mxu0 %v2597
    %2631 = vmatprep.subr.mxu0 0.0
    %2632 = vmatpush2.xpose.msra.mxu0 0.0
    %2633 = vmatprep.subr.mxu0 0.0
    %2634 = vmatpush2.xpose.msra.mxu0 0.0
    %2635 = vmatprep.subr.mxu0 0.0
    %2636 = vmatpush2.xpose.msra.mxu0 0.0
    %2637 = vmatprep.subr.mxu0 0.0
    %2638 = vmatpush2.xpose.msra.mxu0 0.0
    %2639 = vmatprep.subr.mxu0 0.0
    %2640 = vmatpush2.xpose.msra.mxu0 0.0
    %2641 = vmatprep.subr.mxu0 0.0
    %2642 = vmatpush2.xpose.msra.mxu0 0.0
    %2643 = vmatprep.subr.mxu0 0.0
    %2644 = vmatpush2.xpose.msra.mxu0 0.0
    %2645 = vmatprep.subr.mxu0 0.0
    %2646 = vmatpush2.xpose.msra.mxu0 0.0
    %2647 = vmatprep.subr.mxu0 0.0
    %2648 = vmatpush2.xpose.msra.mxu0 0.0
    %2649 = vmatprep.subr.mxu0 0.0
    %2650 = vmatpush2.xpose.msra.mxu0 0.0
    %2651 = vmatprep.subr.mxu0 0.0
    %2652 = vmatpush2.xpose.msra.mxu0 0.0
    %2653 = vmatprep.subr.mxu0 0.0
    %2654 = vmatpush2.xpose.msra.mxu0 0.0
    %2655 = vmatprep.subr.mxu0 0.0
    %2656 = vmatpush2.xpose.msra.mxu0 0.0
    %2657 = vmatprep.subr.mxu0 0.0
    %2658 = vmatpush2.xpose.msra.mxu0 0.0
    %2659 = vmatprep.subr.mxu0 0.0
    %2660 = vmatpush2.xpose.msra.mxu0 0.0
    %2661 = vmatprep.subr.mxu0 0.0
    %2662 = vmatpush2.xpose.msra.mxu0 0.0
    %2663 = vmatprep.mubr.f32.mxu0 0.0
    %2664 = vmatmul.mubr.f32.gmra.mxu0 %v2594
    %v2665 = vpop.f32.mrf.mxu0
    %v2666 = vadd.f32 0.0, %v2665
    %v2667 = vpop.f32.mrf.mxu0
    %2668 = vdwg.mxu0
    %v2670 = vsel %vm105, %v2276, 0
    %v2673 = vsel %vm105, %v2155, 0
    %2675 = vmatprep.subr.mxu0 0.0
    %2676 = vmatpush1.xpose.msra.mxu0 0.0
    %2677 = vmatprep.subr.mxu0 0.0
    %2678 = vmatpush1.xpose.msra.mxu0 0.0
    %2679 = vmatprep.subr.mxu0 0.0
    %2680 = vmatpush1.xpose.msra.mxu0 0.0
    %2681 = vmatprep.subr.mxu0 0.0
    %2682 = vmatpush1.xpose.msra.mxu0 0.0
    %2683 = vmatprep.subr.mxu0 0.0
    %2684 = vmatpush1.xpose.msra.mxu0 0.0
    %2685 = vmatprep.subr.mxu0 0.0
    %2686 = vmatpush1.xpose.msra.mxu0 0.0
    %2687 = vmatprep.subr.mxu0 0.0
    %2688 = vmatpush1.xpose.msra.mxu0 0.0
    %2689 = vmatprep.subr.mxu0 0.0
    %2690 = vmatpush1.xpose.msra.mxu0 0.0
    %2691 = vmatprep.subr.mxu0 0.0
    %2692 = vmatpush1.xpose.msra.mxu0 0.0
    %2693 = vmatprep.subr.mxu0 0.0
    %2694 = vmatpush1.xpose.msra.mxu0 0.0
    %2695 = vmatprep.subr.mxu0 0.0
    %2696 = vmatpush1.xpose.msra.mxu0 0.0
    %2697 = vmatprep.subr.mxu0 0.0
    %2698 = vmatpush1.xpose.msra.mxu0 0.0
    %2699 = vmatprep.subr.mxu0 0.0
    %2700 = vmatpush1.xpose.msra.mxu0 0.0
    %2701 = vmatprep.subr.mxu0 0.0
    %2702 = vmatpush1.xpose.msra.mxu0 0.0
    %2703 = vmatprep.subr.mxu0 0.0
    %2704 = vmatpush1.xpose.msra.mxu0 0.0
    %2705 = vmatprep.subr.mxu0 0.0
    %2706 = vmatpush1.xpose.msra.mxu0 %v2673
    %2707 = vmatprep.subr.mxu0 0.0
    %2708 = vmatpush2.xpose.msra.mxu0 0.0
    %2709 = vmatprep.subr.mxu0 0.0
    %2710 = vmatpush2.xpose.msra.mxu0 0.0
    %2711 = vmatprep.subr.mxu0 0.0
    %2712 = vmatpush2.xpose.msra.mxu0 0.0
    %2713 = vmatprep.subr.mxu0 0.0
    %2714 = vmatpush2.xpose.msra.mxu0 0.0
    %2715 = vmatprep.subr.mxu0 0.0
    %2716 = vmatpush2.xpose.msra.mxu0 0.0
    %2717 = vmatprep.subr.mxu0 0.0
    %2718 = vmatpush2.xpose.msra.mxu0 0.0
    %2719 = vmatprep.subr.mxu0 0.0
    %2720 = vmatpush2.xpose.msra.mxu0 0.0
    %2721 = vmatprep.subr.mxu0 0.0
    %2722 = vmatpush2.xpose.msra.mxu0 0.0
    %2723 = vmatprep.subr.mxu0 0.0
    %2724 = vmatpush2.xpose.msra.mxu0 0.0
    %2725 = vmatprep.subr.mxu0 0.0
    %2726 = vmatpush2.xpose.msra.mxu0 0.0
    %2727 = vmatprep.subr.mxu0 0.0
    %2728 = vmatpush2.xpose.msra.mxu0 0.0
    %2729 = vmatprep.subr.mxu0 0.0
    %2730 = vmatpush2.xpose.msra.mxu0 0.0
    %2731 = vmatprep.subr.mxu0 0.0
    %2732 = vmatpush2.xpose.msra.mxu0 0.0
    %2733 = vmatprep.subr.mxu0 0.0
    %2734 = vmatpush2.xpose.msra.mxu0 0.0
    %2735 = vmatprep.subr.mxu0 0.0
    %2736 = vmatpush2.xpose.msra.mxu0 0.0
    %2737 = vmatprep.subr.mxu0 0.0
    %2738 = vmatpush2.xpose.msra.mxu0 0.0
    %2739 = vmatprep.mubr.f32.mxu0 0.0
    %2740 = vmatmul.mubr.f32.gmra.mxu0 %v2670
    %v2741 = vpop.f32.mrf.mxu0
    %v2742 = vadd.f32 0.0, %v2741
    %v2743 = vpop.f32.mrf.mxu0
    %2744 = vdwg.mxu0
    %v2746 = vsel %vm105, %v2281, 0
    %v2749 = vsel %vm105, %v2160, 0
    %2751 = vmatprep.subr.mxu0 0.0
    %2752 = vmatpush1.xpose.msra.mxu0 0.0
    %2753 = vmatprep.subr.mxu0 0.0
    %2754 = vmatpush1.xpose.msra.mxu0 0.0
    %2755 = vmatprep.subr.mxu0 0.0
    %2756 = vmatpush1.xpose.msra.mxu0 0.0
    %2757 = vmatprep.subr.mxu0 0.0
    %2758 = vmatpush1.xpose.msra.mxu0 0.0
    %2759 = vmatprep.subr.mxu0 0.0
    %2760 = vmatpush1.xpose.msra.mxu0 0.0
    %2761 = vmatprep.subr.mxu0 0.0
    %2762 = vmatpush1.xpose.msra.mxu0 0.0
    %2763 = vmatprep.subr.mxu0 0.0
    %2764 = vmatpush1.xpose.msra.mxu0 0.0
    %2765 = vmatprep.subr.mxu0 0.0
    %2766 = vmatpush1.xpose.msra.mxu0 0.0
    %2767 = vmatprep.subr.mxu0 0.0
    %2768 = vmatpush1.xpose.msra.mxu0 0.0
    %2769 = vmatprep.subr.mxu0 0.0
    %2770 = vmatpush1.xpose.msra.mxu0 0.0
    %2771 = vmatprep.subr.mxu0 0.0
    %2772 = vmatpush1.xpose.msra.mxu0 0.0
    %2773 = vmatprep.subr.mxu0 0.0
    %2774 = vmatpush1.xpose.msra.mxu0 0.0
    %2775 = vmatprep.subr.mxu0 0.0
    %2776 = vmatpush1.xpose.msra.mxu0 0.0
    %2777 = vmatprep.subr.mxu0 0.0
    %2778 = vmatpush1.xpose.msra.mxu0 0.0
    %2779 = vmatprep.subr.mxu0 0.0
    %2780 = vmatpush1.xpose.msra.mxu0 0.0
    %2781 = vmatprep.subr.mxu0 0.0
    %2782 = vmatpush1.xpose.msra.mxu0 %v2749
    %2783 = vmatprep.subr.mxu0 0.0
    %2784 = vmatpush2.xpose.msra.mxu0 0.0
    %2785 = vmatprep.subr.mxu0 0.0
    %2786 = vmatpush2.xpose.msra.mxu0 0.0
    %2787 = vmatprep.subr.mxu0 0.0
    %2788 = vmatpush2.xpose.msra.mxu0 0.0
    %2789 = vmatprep.subr.mxu0 0.0
    %2790 = vmatpush2.xpose.msra.mxu0 0.0
    %2791 = vmatprep.subr.mxu0 0.0
    %2792 = vmatpush2.xpose.msra.mxu0 0.0
    %2793 = vmatprep.subr.mxu0 0.0
    %2794 = vmatpush2.xpose.msra.mxu0 0.0
    %2795 = vmatprep.subr.mxu0 0.0
    %2796 = vmatpush2.xpose.msra.mxu0 0.0
    %2797 = vmatprep.subr.mxu0 0.0
    %2798 = vmatpush2.xpose.msra.mxu0 0.0
    %2799 = vmatprep.subr.mxu0 0.0
    %2800 = vmatpush2.xpose.msra.mxu0 0.0
    %2801 = vmatprep.subr.mxu0 0.0
    %2802 = vmatpush2.xpose.msra.mxu0 0.0
    %2803 = vmatprep.subr.mxu0 0.0
    %2804 = vmatpush2.xpose.msra.mxu0 0.0
    %2805 = vmatprep.subr.mxu0 0.0
    %2806 = vmatpush2.xpose.msra.mxu0 0.0
    %2807 = vmatprep.subr.mxu0 0.0
    %2808 = vmatpush2.xpose.msra.mxu0 0.0
    %2809 = vmatprep.subr.mxu0 0.0
    %2810 = vmatpush2.xpose.msra.mxu0 0.0
    %2811 = vmatprep.subr.mxu0 0.0
    %2812 = vmatpush2.xpose.msra.mxu0 0.0
    %2813 = vmatprep.subr.mxu0 0.0
    %2814 = vmatpush2.xpose.msra.mxu0 0.0
    %2815 = vmatprep.mubr.f32.mxu0 0.0
    %2816 = vmatmul.mubr.f32.gmra.mxu0 %v2746
    %v2817 = vpop.f32.mrf.mxu0
    %v2818 = vadd.f32 0.0, %v2817
    %v2819 = vpop.f32.mrf.mxu0
    %2820 = vdwg.mxu0
    %v2822 = vsel %vm105, %v2286, 0
    %v2825 = vsel %vm105, %v2165, 0
    %2827 = vmatprep.subr.mxu0 0.0
    %2828 = vmatpush1.xpose.msra.mxu0 0.0
    %2829 = vmatprep.subr.mxu0 0.0
    %2830 = vmatpush1.xpose.msra.mxu0 0.0
    %2831 = vmatprep.subr.mxu0 0.0
    %2832 = vmatpush1.xpose.msra.mxu0 0.0
    %2833 = vmatprep.subr.mxu0 0.0
    %2834 = vmatpush1.xpose.msra.mxu0 0.0
    %2835 = vmatprep.subr.mxu0 0.0
    %2836 = vmatpush1.xpose.msra.mxu0 0.0
    %2837 = vmatprep.subr.mxu0 0.0
    %2838 = vmatpush1.xpose.msra.mxu0 0.0
    %2839 = vmatprep.subr.mxu0 0.0
    %2840 = vmatpush1.xpose.msra.mxu0 0.0
    %2841 = vmatprep.subr.mxu0 0.0
    %2842 = vmatpush1.xpose.msra.mxu0 0.0
    %2843 = vmatprep.subr.mxu0 0.0
    %2844 = vmatpush1.xpose.msra.mxu0 0.0
    %2845 = vmatprep.subr.mxu0 0.0
    %2846 = vmatpush1.xpose.msra.mxu0 0.0
    %2847 = vmatprep.subr.mxu0 0.0
    %2848 = vmatpush1.xpose.msra.mxu0 0.0
    %2849 = vmatprep.subr.mxu0 0.0
    %2850 = vmatpush1.xpose.msra.mxu0 0.0
    %2851 = vmatprep.subr.mxu0 0.0
    %2852 = vmatpush1.xpose.msra.mxu0 0.0
    %2853 = vmatprep.subr.mxu0 0.0
    %2854 = vmatpush1.xpose.msra.mxu0 0.0
    %2855 = vmatprep.subr.mxu0 0.0
    %2856 = vmatpush1.xpose.msra.mxu0 0.0
    %2857 = vmatprep.subr.mxu0 0.0
    %2858 = vmatpush1.xpose.msra.mxu0 %v2825
    %2859 = vmatprep.subr.mxu0 0.0
    %2860 = vmatpush2.xpose.msra.mxu0 0.0
    %2861 = vmatprep.subr.mxu0 0.0
    %2862 = vmatpush2.xpose.msra.mxu0 0.0
    %2863 = vmatprep.subr.mxu0 0.0
    %2864 = vmatpush2.xpose.msra.mxu0 0.0
    %2865 = vmatprep.subr.mxu0 0.0
    %2866 = vmatpush2.xpose.msra.mxu0 0.0
    %2867 = vmatprep.subr.mxu0 0.0
    %2868 = vmatpush2.xpose.msra.mxu0 0.0
    %2869 = vmatprep.subr.mxu0 0.0
    %2870 = vmatpush2.xpose.msra.mxu0 0.0
    %2871 = vmatprep.subr.mxu0 0.0
    %2872 = vmatpush2.xpose.msra.mxu0 0.0
    %2873 = vmatprep.subr.mxu0 0.0
    %2874 = vmatpush2.xpose.msra.mxu0 0.0
    %2875 = vmatprep.subr.mxu0 0.0
    %2876 = vmatpush2.xpose.msra.mxu0 0.0
    %2877 = vmatprep.subr.mxu0 0.0
    %2878 = vmatpush2.xpose.msra.mxu0 0.0
    %2879 = vmatprep.subr.mxu0 0.0
    %2880 = vmatpush2.xpose.msra.mxu0 0.0
    %2881 = vmatprep.subr.mxu0 0.0
    %2882 = vmatpush2.xpose.msra.mxu0 0.0
    %2883 = vmatprep.subr.mxu0 0.0
    %2884 = vmatpush2.xpose.msra.mxu0 0.0
    %2885 = vmatprep.subr.mxu0 0.0
    %2886 = vmatpush2.xpose.msra.mxu0 0.0
    %2887 = vmatprep.subr.mxu0 0.0
    %2888 = vmatpush2.xpose.msra.mxu0 0.0
    %2889 = vmatprep.subr.mxu0 0.0
    %2890 = vmatpush2.xpose.msra.mxu0 0.0
    %2891 = vmatprep.mubr.f32.mxu0 0.0
    %2892 = vmatmul.mubr.f32.gmra.mxu0 %v2822
    %v2893 = vpop.f32.mrf.mxu0
    %v2894 = vadd.f32 0.0, %v2893
    %v2895 = vpop.f32.mrf.mxu0
    %2896 = vdwg.mxu0
    %v2897 = vadd.f32 %v2362, %v89
    %v2898 = vadd.f32 %v2438, %v90
    %v2899 = vadd.f32 %v2514, %v89
    %v2900 = vadd.f32 %v2590, %v90
    %v2901 = vadd.f32 %v2666, %v89
    %v2902 = vadd.f32 %v2742, %v90
    %v2903 = vadd.f32 %v2818, %v89
    %v2904 = vadd.f32 %v2894, %v90
    %v2905 = vsel %vm105, %v2897, -inf
    %2906 = vmax.xlane.f32.xlu0 %v2905
    %v2907 = vpop.xlane.xlu0 %2906
    %v2908 = vsel %vm105, %v2898, -inf
    %2909 = vmax.xlane.f32.xlu0 %v2908
    %v2910 = vpop.xlane.xlu0 %2909
    %v2911 = vsel %vm105, %v2899, -inf
    %2912 = vmax.xlane.f32.xlu0 %v2911
    %v2913 = vpop.xlane.xlu0 %2912
    %v2914 = vsel %vm105, %v2900, -inf
    %2915 = vmax.xlane.f32.xlu0 %v2914
    %v2916 = vpop.xlane.xlu0 %2915
    %v2917 = vsel %vm105, %v2901, -inf
    %2918 = vmax.xlane.f32.xlu0 %v2917
    %v2919 = vpop.xlane.xlu0 %2918
    %v2920 = vsel %vm105, %v2902, -inf
    %2921 = vmax.xlane.f32.xlu0 %v2920
    %v2922 = vpop.xlane.xlu0 %2921
    %v2923 = vsel %vm105, %v2903, -inf
    %2924 = vmax.xlane.f32.xlu0 %v2923
    %v2925 = vpop.xlane.xlu0 %2924
    %v2926 = vsel %vm105, %v2904, -inf
    %2927 = vmax.xlane.f32.xlu0 %v2926
    %v2928 = vpop.xlane.xlu0 %2927
    %v2929 = vsub.f32 %v2897, %v2907
    %v2930 = vsub.f32 %v2898, %v2910
    %v2931 = vsub.f32 %v2899, %v2913
    %v2932 = vsub.f32 %v2900, %v2916
    %v2933 = vsub.f32 %v2901, %v2919
    %v2934 = vsub.f32 %v2902, %v2922
    %v2935 = vsub.f32 %v2903, %v2925
    %v2936 = vsub.f32 %v2904, %v2928
    %v2937 = vmul.f32 %v2929, 1.442695
    %v2938 = vpow.pop %v2937
    %v2939 = vmul.f32 %v2930, 1.442695
    %v2940 = vpow.pop %v2939
    %v2941 = vmul.f32 %v2931, 1.442695
    %v2942 = vpow.pop %v2941
    %v2943 = vmul.f32 %v2932, 1.442695
    %v2944 = vpow.pop %v2943
    %v2945 = vmul.f32 %v2933, 1.442695
    %v2946 = vpow.pop %v2945
    %v2947 = vmul.f32 %v2934, 1.442695
    %v2948 = vpow.pop %v2947
    %v2949 = vmul.f32 %v2935, 1.442695
    %v2950 = vpow.pop %v2949
    %v2951 = vmul.f32 %v2936, 1.442695
    %v2952 = vpow.pop %v2951
    %v2953 = vsel %vm105, %v2938, 0.0
    %2954 = vadd.xlane.f32.xlu0 %v2953
    %v2955 = vpop.xlane.xlu0 %2954
    %v2956 = vsel %vm105, %v2940, 0.0
    %2957 = vadd.xlane.f32.xlu0 %v2956
    %v2958 = vpop.xlane.xlu0 %2957
    %v2959 = vsel %vm105, %v2942, 0.0
    %2960 = vadd.xlane.f32.xlu0 %v2959
    %v2961 = vpop.xlane.xlu0 %2960
    %v2962 = vsel %vm105, %v2944, 0.0
    %2963 = vadd.xlane.f32.xlu0 %v2962
    %v2964 = vpop.xlane.xlu0 %2963
    %v2965 = vsel %vm105, %v2946, 0.0
    %2966 = vadd.xlane.f32.xlu0 %v2965
    %v2967 = vpop.xlane.xlu0 %2966
    %v2968 = vsel %vm105, %v2948, 0.0
    %2969 = vadd.xlane.f32.xlu0 %v2968
    %v2970 = vpop.xlane.xlu0 %2969
    %v2971 = vsel %vm105, %v2950, 0.0
    %2972 = vadd.xlane.f32.xlu0 %v2971
    %v2973 = vpop.xlane.xlu0 %2972
    %v2974 = vsel %vm105, %v2952, 0.0
    %2975 = vadd.xlane.f32.xlu0 %v2974
    %v2976 = vpop.xlane.xlu0 %2975
    %v2977 = vrcp.pop %v2955
    %v2978 = vrcp.pop %v2958
    %v2979 = vrcp.pop %v2961
    %v2980 = vrcp.pop %v2964
    %v2981 = vrcp.pop %v2967
    %v2982 = vrcp.pop %v2970
    %v2983 = vrcp.pop %v2973
    %v2984 = vrcp.pop %v2976
    %v2985 = vmul.f32 %v2938, %v2977
    %v2986 = vmul.f32 %v2940, %v2978
    %v2987 = vmul.f32 %v2942, %v2979
    %v2988 = vmul.f32 %v2944, %v2980
    %v2989 = vmul.f32 %v2946, %v2981
    %v2990 = vmul.f32 %v2948, %v2982
    %v2991 = vmul.f32 %v2950, %v2983
    %v2992 = vmul.f32 %v2952, %v2984
    %v2994 = vsel %vm105, %v2985, 0
    %2996 = vmatprep.subr.mxu0 0.0
    %2997 = vmatpush1.msra.mxu0 0.0
    %2998 = vmatprep.subr.mxu0 0.0
    %2999 = vmatpush1.msra.mxu0 0.0
    %3000 = vmatprep.subr.mxu0 0.0
    %3001 = vmatpush1.msra.mxu0 0.0
    %3002 = vmatprep.subr.mxu0 0.0
    %3003 = vmatpush1.msra.mxu0 0.0
    %3004 = vmatprep.subr.mxu0 0.0
    %3005 = vmatpush1.msra.mxu0 0.0
    %3006 = vmatprep.subr.mxu0 0.0
    %3007 = vmatpush1.msra.mxu0 0.0
    %3008 = vmatprep.subr.mxu0 0.0
    %3009 = vmatpush1.msra.mxu0 0.0
    %3010 = vmatprep.subr.mxu0 0.0
    %3011 = vmatpush1.msra.mxu0 0.0
    %3012 = vmatprep.subr.mxu0 0.0
    %3013 = vmatpush1.msra.mxu0 0.0
    %3014 = vmatprep.subr.mxu0 0.0
    %3015 = vmatpush1.msra.mxu0 0.0
    %3016 = vmatprep.subr.mxu0 0.0
    %3017 = vmatpush1.msra.mxu0 0.0
    %3018 = vmatprep.subr.mxu0 0.0
    %3019 = vmatpush1.msra.mxu0 0.0
    %3020 = vmatprep.subr.mxu0 0.0
    %3021 = vmatpush1.msra.mxu0 0.0
    %3022 = vmatprep.subr.mxu0 0.0
    %3023 = vmatpush1.msra.mxu0 0.0
    %3024 = vmatprep.subr.mxu0 0.0
    %3025 = vmatpush1.msra.mxu0 0.0
    %3026 = vmatprep.subr.mxu0 0.0
    %3027 = vmatpush1.msra.mxu0 %v2009
    %3028 = vmatprep.subr.mxu0 0.0
    %3029 = vmatpush2.msra.mxu0 0.0
    %3030 = vmatprep.subr.mxu0 0.0
    %3031 = vmatpush2.msra.mxu0 0.0
    %3032 = vmatprep.subr.mxu0 0.0
    %3033 = vmatpush2.msra.mxu0 0.0
    %3034 = vmatprep.subr.mxu0 0.0
    %3035 = vmatpush2.msra.mxu0 0.0
    %3036 = vmatprep.subr.mxu0 0.0
    %3037 = vmatpush2.msra.mxu0 0.0
    %3038 = vmatprep.subr.mxu0 0.0
    %3039 = vmatpush2.msra.mxu0 0.0
    %3040 = vmatprep.subr.mxu0 0.0
    %3041 = vmatpush2.msra.mxu0 0.0
    %3042 = vmatprep.subr.mxu0 0.0
    %3043 = vmatpush2.msra.mxu0 0.0
    %3044 = vmatprep.subr.mxu0 0.0
    %3045 = vmatpush2.msra.mxu0 0.0
    %3046 = vmatprep.subr.mxu0 0.0
    %3047 = vmatpush2.msra.mxu0 0.0
    %3048 = vmatprep.subr.mxu0 0.0
    %3049 = vmatpush2.msra.mxu0 0.0
    %3050 = vmatprep.subr.mxu0 0.0
    %3051 = vmatpush2.msra.mxu0 0.0
    %3052 = vmatprep.subr.mxu0 0.0
    %3053 = vmatpush2.msra.mxu0 0.0
    %3054 = vmatprep.subr.mxu0 0.0
    %3055 = vmatpush2.msra.mxu0 0.0
    %3056 = vmatprep.subr.mxu0 0.0
    %3057 = vmatpush2.msra.mxu0 0.0
    %3058 = vmatprep.subr.mxu0 0.0
    %3059 = vmatpush2.msra.mxu0 0.0
    %3060 = vmatprep.mubr.f32.mxu0 0.0
    %3061 = vmatmul.mubr.f32.gmra.mxu0 %v2994
    %v3062 = vpop.f32.mrf.mxu0
    %v3063 = vadd.f32 0.0, %v3062
    %v3064 = vpop.f32.mrf.mxu0
    %3065 = vdwg.mxu0
    %v3067 = vsel %vm105, %v2986, 0
    %3069 = vmatprep.subr.mxu0 0.0
    %3070 = vmatpush1.msra.mxu0 0.0
    %3071 = vmatprep.subr.mxu0 0.0
    %3072 = vmatpush1.msra.mxu0 0.0
    %3073 = vmatprep.subr.mxu0 0.0
    %3074 = vmatpush1.msra.mxu0 0.0
    %3075 = vmatprep.subr.mxu0 0.0
    %3076 = vmatpush1.msra.mxu0 0.0
    %3077 = vmatprep.subr.mxu0 0.0
    %3078 = vmatpush1.msra.mxu0 0.0
    %3079 = vmatprep.subr.mxu0 0.0
    %3080 = vmatpush1.msra.mxu0 0.0
    %3081 = vmatprep.subr.mxu0 0.0
    %3082 = vmatpush1.msra.mxu0 0.0
    %3083 = vmatprep.subr.mxu0 0.0
    %3084 = vmatpush1.msra.mxu0 0.0
    %3085 = vmatprep.subr.mxu0 0.0
    %3086 = vmatpush1.msra.mxu0 0.0
    %3087 = vmatprep.subr.mxu0 0.0
    %3088 = vmatpush1.msra.mxu0 0.0
    %3089 = vmatprep.subr.mxu0 0.0
    %3090 = vmatpush1.msra.mxu0 0.0
    %3091 = vmatprep.subr.mxu0 0.0
    %3092 = vmatpush1.msra.mxu0 0.0
    %3093 = vmatprep.subr.mxu0 0.0
    %3094 = vmatpush1.msra.mxu0 0.0
    %3095 = vmatprep.subr.mxu0 0.0
    %3096 = vmatpush1.msra.mxu0 0.0
    %3097 = vmatprep.subr.mxu0 0.0
    %3098 = vmatpush1.msra.mxu0 0.0
    %3099 = vmatprep.subr.mxu0 0.0
    %3100 = vmatpush1.msra.mxu0 %v2014
    %3101 = vmatprep.subr.mxu0 0.0
    %3102 = vmatpush2.msra.mxu0 0.0
    %3103 = vmatprep.subr.mxu0 0.0
    %3104 = vmatpush2.msra.mxu0 0.0
    %3105 = vmatprep.subr.mxu0 0.0
    %3106 = vmatpush2.msra.mxu0 0.0
    %3107 = vmatprep.subr.mxu0 0.0
    %3108 = vmatpush2.msra.mxu0 0.0
    %3109 = vmatprep.subr.mxu0 0.0
    %3110 = vmatpush2.msra.mxu0 0.0
    %3111 = vmatprep.subr.mxu0 0.0
    %3112 = vmatpush2.msra.mxu0 0.0
    %3113 = vmatprep.subr.mxu0 0.0
    %3114 = vmatpush2.msra.mxu0 0.0
    %3115 = vmatprep.subr.mxu0 0.0
    %3116 = vmatpush2.msra.mxu0 0.0
    %3117 = vmatprep.subr.mxu0 0.0
    %3118 = vmatpush2.msra.mxu0 0.0
    %3119 = vmatprep.subr.mxu0 0.0
    %3120 = vmatpush2.msra.mxu0 0.0
    %3121 = vmatprep.subr.mxu0 0.0
    %3122 = vmatpush2.msra.mxu0 0.0
    %3123 = vmatprep.subr.mxu0 0.0
    %3124 = vmatpush2.msra.mxu0 0.0
    %3125 = vmatprep.subr.mxu0 0.0
    %3126 = vmatpush2.msra.mxu0 0.0
    %3127 = vmatprep.subr.mxu0 0.0
    %3128 = vmatpush2.msra.mxu0 0.0
    %3129 = vmatprep.subr.mxu0 0.0
    %3130 = vmatpush2.msra.mxu0 0.0
    %3131 = vmatprep.subr.mxu0 0.0
    %3132 = vmatpush2.msra.mxu0 0.0
    %3133 = vmatprep.mubr.f32.mxu0 0.0
    %3134 = vmatmul.mubr.f32.gmra.mxu0 %v3067
    %v3135 = vpop.f32.mrf.mxu0
    %v3136 = vadd.f32 0.0, %v3135
    %v3137 = vpop.f32.mrf.mxu0
    %3138 = vdwg.mxu0
    %v3140 = vsel %vm105, %v2987, 0
    %3142 = vmatprep.subr.mxu0 0.0
    %3143 = vmatpush1.msra.mxu0 0.0
    %3144 = vmatprep.subr.mxu0 0.0
    %3145 = vmatpush1.msra.mxu0 0.0
    %3146 = vmatprep.subr.mxu0 0.0
    %3147 = vmatpush1.msra.mxu0 0.0
    %3148 = vmatprep.subr.mxu0 0.0
    %3149 = vmatpush1.msra.mxu0 0.0
    %3150 = vmatprep.subr.mxu0 0.0
    %3151 = vmatpush1.msra.mxu0 0.0
    %3152 = vmatprep.subr.mxu0 0.0
    %3153 = vmatpush1.msra.mxu0 0.0
    %3154 = vmatprep.subr.mxu0 0.0
    %3155 = vmatpush1.msra.mxu0 0.0
    %3156 = vmatprep.subr.mxu0 0.0
    %3157 = vmatpush1.msra.mxu0 0.0
    %3158 = vmatprep.subr.mxu0 0.0
    %3159 = vmatpush1.msra.mxu0 0.0
    %3160 = vmatprep.subr.mxu0 0.0
    %3161 = vmatpush1.msra.mxu0 0.0
    %3162 = vmatprep.subr.mxu0 0.0
    %3163 = vmatpush1.msra.mxu0 0.0
    %3164 = vmatprep.subr.mxu0 0.0
    %3165 = vmatpush1.msra.mxu0 0.0
    %3166 = vmatprep.subr.mxu0 0.0
    %3167 = vmatpush1.msra.mxu0 0.0
    %3168 = vmatprep.subr.mxu0 0.0
    %3169 = vmatpush1.msra.mxu0 0.0
    %3170 = vmatprep.subr.mxu0 0.0
    %3171 = vmatpush1.msra.mxu0 0.0
    %3172 = vmatprep.subr.mxu0 0.0
    %3173 = vmatpush1.msra.mxu0 %v2019
    %3174 = vmatprep.subr.mxu0 0.0
    %3175 = vmatpush2.msra.mxu0 0.0
    %3176 = vmatprep.subr.mxu0 0.0
    %3177 = vmatpush2.msra.mxu0 0.0
    %3178 = vmatprep.subr.mxu0 0.0
    %3179 = vmatpush2.msra.mxu0 0.0
    %3180 = vmatprep.subr.mxu0 0.0
    %3181 = vmatpush2.msra.mxu0 0.0
    %3182 = vmatprep.subr.mxu0 0.0
    %3183 = vmatpush2.msra.mxu0 0.0
    %3184 = vmatprep.subr.mxu0 0.0
    %3185 = vmatpush2.msra.mxu0 0.0
    %3186 = vmatprep.subr.mxu0 0.0
    %3187 = vmatpush2.msra.mxu0 0.0
    %3188 = vmatprep.subr.mxu0 0.0
    %3189 = vmatpush2.msra.mxu0 0.0
    %3190 = vmatprep.subr.mxu0 0.0
    %3191 = vmatpush2.msra.mxu0 0.0
    %3192 = vmatprep.subr.mxu0 0.0
    %3193 = vmatpush2.msra.mxu0 0.0
    %3194 = vmatprep.subr.mxu0 0.0
    %3195 = vmatpush2.msra.mxu0 0.0
    %3196 = vmatprep.subr.mxu0 0.0
    %3197 = vmatpush2.msra.mxu0 0.0
    %3198 = vmatprep.subr.mxu0 0.0
    %3199 = vmatpush2.msra.mxu0 0.0
    %3200 = vmatprep.subr.mxu0 0.0
    %3201 = vmatpush2.msra.mxu0 0.0
    %3202 = vmatprep.subr.mxu0 0.0
    %3203 = vmatpush2.msra.mxu0 0.0
    %3204 = vmatprep.subr.mxu0 0.0
    %3205 = vmatpush2.msra.mxu0 0.0
    %3206 = vmatprep.mubr.f32.mxu0 0.0
    %3207 = vmatmul.mubr.f32.gmra.mxu0 %v3140
    %v3208 = vpop.f32.mrf.mxu0
    %v3209 = vadd.f32 0.0, %v3208
    %v3210 = vpop.f32.mrf.mxu0
    %3211 = vdwg.mxu0
    %v3213 = vsel %vm105, %v2988, 0
    %3215 = vmatprep.subr.mxu0 0.0
    %3216 = vmatpush1.msra.mxu0 0.0
    %3217 = vmatprep.subr.mxu0 0.0
    %3218 = vmatpush1.msra.mxu0 0.0
    %3219 = vmatprep.subr.mxu0 0.0
    %3220 = vmatpush1.msra.mxu0 0.0
    %3221 = vmatprep.subr.mxu0 0.0
    %3222 = vmatpush1.msra.mxu0 0.0
    %3223 = vmatprep.subr.mxu0 0.0
    %3224 = vmatpush1.msra.mxu0 0.0
    %3225 = vmatprep.subr.mxu0 0.0
    %3226 = vmatpush1.msra.mxu0 0.0
    %3227 = vmatprep.subr.mxu0 0.0
    %3228 = vmatpush1.msra.mxu0 0.0
    %3229 = vmatprep.subr.mxu0 0.0
    %3230 = vmatpush1.msra.mxu0 0.0
    %3231 = vmatprep.subr.mxu0 0.0
    %3232 = vmatpush1.msra.mxu0 0.0
    %3233 = vmatprep.subr.mxu0 0.0
    %3234 = vmatpush1.msra.mxu0 0.0
    %3235 = vmatprep.subr.mxu0 0.0
    %3236 = vmatpush1.msra.mxu0 0.0
    %3237 = vmatprep.subr.mxu0 0.0
    %3238 = vmatpush1.msra.mxu0 0.0
    %3239 = vmatprep.subr.mxu0 0.0
    %3240 = vmatpush1.msra.mxu0 0.0
    %3241 = vmatprep.subr.mxu0 0.0
    %3242 = vmatpush1.msra.mxu0 0.0
    %3243 = vmatprep.subr.mxu0 0.0
    %3244 = vmatpush1.msra.mxu0 0.0
    %3245 = vmatprep.subr.mxu0 0.0
    %3246 = vmatpush1.msra.mxu0 %v2024
    %3247 = vmatprep.subr.mxu0 0.0
    %3248 = vmatpush2.msra.mxu0 0.0
    %3249 = vmatprep.subr.mxu0 0.0
    %3250 = vmatpush2.msra.mxu0 0.0
    %3251 = vmatprep.subr.mxu0 0.0
    %3252 = vmatpush2.msra.mxu0 0.0
    %3253 = vmatprep.subr.mxu0 0.0
    %3254 = vmatpush2.msra.mxu0 0.0
    %3255 = vmatprep.subr.mxu0 0.0
    %3256 = vmatpush2.msra.mxu0 0.0
    %3257 = vmatprep.subr.mxu0 0.0
    %3258 = vmatpush2.msra.mxu0 0.0
    %3259 = vmatprep.subr.mxu0 0.0
    %3260 = vmatpush2.msra.mxu0 0.0
    %3261 = vmatprep.subr.mxu0 0.0
    %3262 = vmatpush2.msra.mxu0 0.0
    %3263 = vmatprep.subr.mxu0 0.0
    %3264 = vmatpush2.msra.mxu0 0.0
    %3265 = vmatprep.subr.mxu0 0.0
    %3266 = vmatpush2.msra.mxu0 0.0
    %3267 = vmatprep.subr.mxu0 0.0
    %3268 = vmatpush2.msra.mxu0 0.0
    %3269 = vmatprep.subr.mxu0 0.0
    %3270 = vmatpush2.msra.mxu0 0.0
    %3271 = vmatprep.subr.mxu0 0.0
    %3272 = vmatpush2.msra.mxu0 0.0
    %3273 = vmatprep.subr.mxu0 0.0
    %3274 = vmatpush2.msra.mxu0 0.0
    %3275 = vmatprep.subr.mxu0 0.0
    %3276 = vmatpush2.msra.mxu0 0.0
    %3277 = vmatprep.subr.mxu0 0.0
    %3278 = vmatpush2.msra.mxu0 0.0
    %3279 = vmatprep.mubr.f32.mxu0 0.0
    %3280 = vmatmul.mubr.f32.gmra.mxu0 %v3213
    %v3281 = vpop.f32.mrf.mxu0
    %v3282 = vadd.f32 0.0, %v3281
    %v3283 = vpop.f32.mrf.mxu0
    %3284 = vdwg.mxu0
    %v3286 = vsel %vm105, %v2989, 0
    %3288 = vmatprep.subr.mxu0 0.0
    %3289 = vmatpush1.msra.mxu0 0.0
    %3290 = vmatprep.subr.mxu0 0.0
    %3291 = vmatpush1.msra.mxu0 0.0
    %3292 = vmatprep.subr.mxu0 0.0
    %3293 = vmatpush1.msra.mxu0 0.0
    %3294 = vmatprep.subr.mxu0 0.0
    %3295 = vmatpush1.msra.mxu0 0.0
    %3296 = vmatprep.subr.mxu0 0.0
    %3297 = vmatpush1.msra.mxu0 0.0
    %3298 = vmatprep.subr.mxu0 0.0
    %3299 = vmatpush1.msra.mxu0 0.0
    %3300 = vmatprep.subr.mxu0 0.0
    %3301 = vmatpush1.msra.mxu0 0.0
    %3302 = vmatprep.subr.mxu0 0.0
    %3303 = vmatpush1.msra.mxu0 0.0
    %3304 = vmatprep.subr.mxu0 0.0
    %3305 = vmatpush1.msra.mxu0 0.0
    %3306 = vmatprep.subr.mxu0 0.0
    %3307 = vmatpush1.msra.mxu0 0.0
    %3308 = vmatprep.subr.mxu0 0.0
    %3309 = vmatpush1.msra.mxu0 0.0
    %3310 = vmatprep.subr.mxu0 0.0
    %3311 = vmatpush1.msra.mxu0 0.0
    %3312 = vmatprep.subr.mxu0 0.0
    %3313 = vmatpush1.msra.mxu0 0.0
    %3314 = vmatprep.subr.mxu0 0.0
    %3315 = vmatpush1.msra.mxu0 0.0
    %3316 = vmatprep.subr.mxu0 0.0
    %3317 = vmatpush1.msra.mxu0 0.0
    %3318 = vmatprep.subr.mxu0 0.0
    %3319 = vmatpush1.msra.mxu0 %v2029
    %3320 = vmatprep.subr.mxu0 0.0
    %3321 = vmatpush2.msra.mxu0 0.0
    %3322 = vmatprep.subr.mxu0 0.0
    %3323 = vmatpush2.msra.mxu0 0.0
    %3324 = vmatprep.subr.mxu0 0.0
    %3325 = vmatpush2.msra.mxu0 0.0
    %3326 = vmatprep.subr.mxu0 0.0
    %3327 = vmatpush2.msra.mxu0 0.0
    %3328 = vmatprep.subr.mxu0 0.0
    %3329 = vmatpush2.msra.mxu0 0.0
    %3330 = vmatprep.subr.mxu0 0.0
    %3331 = vmatpush2.msra.mxu0 0.0
    %3332 = vmatprep.subr.mxu0 0.0
    %3333 = vmatpush2.msra.mxu0 0.0
    %3334 = vmatprep.subr.mxu0 0.0
    %3335 = vmatpush2.msra.mxu0 0.0
    %3336 = vmatprep.subr.mxu0 0.0
    %3337 = vmatpush2.msra.mxu0 0.0
    %3338 = vmatprep.subr.mxu0 0.0
    %3339 = vmatpush2.msra.mxu0 0.0
    %3340 = vmatprep.subr.mxu0 0.0
    %3341 = vmatpush2.msra.mxu0 0.0
    %3342 = vmatprep.subr.mxu0 0.0
    %3343 = vmatpush2.msra.mxu0 0.0
    %3344 = vmatprep.subr.mxu0 0.0
    %3345 = vmatpush2.msra.mxu0 0.0
    %3346 = vmatprep.subr.mxu0 0.0
    %3347 = vmatpush2.msra.mxu0 0.0
    %3348 = vmatprep.subr.mxu0 0.0
    %3349 = vmatpush2.msra.mxu0 0.0
    %3350 = vmatprep.subr.mxu0 0.0
    %3351 = vmatpush2.msra.mxu0 0.0
    %3352 = vmatprep.mubr.f32.mxu0 0.0
    %3353 = vmatmul.mubr.f32.gmra.mxu0 %v3286
    %v3354 = vpop.f32.mrf.mxu0
    %v3355 = vadd.f32 0.0, %v3354
    %v3356 = vpop.f32.mrf.mxu0
    %3357 = vdwg.mxu0
    %v3359 = vsel %vm105, %v2990, 0
    %3361 = vmatprep.subr.mxu0 0.0
    %3362 = vmatpush1.msra.mxu0 0.0
    %3363 = vmatprep.subr.mxu0 0.0
    %3364 = vmatpush1.msra.mxu0 0.0
    %3365 = vmatprep.subr.mxu0 0.0
    %3366 = vmatpush1.msra.mxu0 0.0
    %3367 = vmatprep.subr.mxu0 0.0
    %3368 = vmatpush1.msra.mxu0 0.0
    %3369 = vmatprep.subr.mxu0 0.0
    %3370 = vmatpush1.msra.mxu0 0.0
    %3371 = vmatprep.subr.mxu0 0.0
    %3372 = vmatpush1.msra.mxu0 0.0
    %3373 = vmatprep.subr.mxu0 0.0
    %3374 = vmatpush1.msra.mxu0 0.0
    %3375 = vmatprep.subr.mxu0 0.0
    %3376 = vmatpush1.msra.mxu0 0.0
    %3377 = vmatprep.subr.mxu0 0.0
    %3378 = vmatpush1.msra.mxu0 0.0
    %3379 = vmatprep.subr.mxu0 0.0
    %3380 = vmatpush1.msra.mxu0 0.0
    %3381 = vmatprep.subr.mxu0 0.0
    %3382 = vmatpush1.msra.mxu0 0.0
    %3383 = vmatprep.subr.mxu0 0.0
    %3384 = vmatpush1.msra.mxu0 0.0
    %3385 = vmatprep.subr.mxu0 0.0
    %3386 = vmatpush1.msra.mxu0 0.0
    %3387 = vmatprep.subr.mxu0 0.0
    %3388 = vmatpush1.msra.mxu0 0.0
    %3389 = vmatprep.subr.mxu0 0.0
    %3390 = vmatpush1.msra.mxu0 0.0
    %3391 = vmatprep.subr.mxu0 0.0
    %3392 = vmatpush1.msra.mxu0 %v2034
    %3393 = vmatprep.subr.mxu0 0.0
    %3394 = vmatpush2.msra.mxu0 0.0
    %3395 = vmatprep.subr.mxu0 0.0
    %3396 = vmatpush2.msra.mxu0 0.0
    %3397 = vmatprep.subr.mxu0 0.0
    %3398 = vmatpush2.msra.mxu0 0.0
    %3399 = vmatprep.subr.mxu0 0.0
    %3400 = vmatpush2.msra.mxu0 0.0
    %3401 = vmatprep.subr.mxu0 0.0
    %3402 = vmatpush2.msra.mxu0 0.0
    %3403 = vmatprep.subr.mxu0 0.0
    %3404 = vmatpush2.msra.mxu0 0.0
    %3405 = vmatprep.subr.mxu0 0.0
    %3406 = vmatpush2.msra.mxu0 0.0
    %3407 = vmatprep.subr.mxu0 0.0
    %3408 = vmatpush2.msra.mxu0 0.0
    %3409 = vmatprep.subr.mxu0 0.0
    %3410 = vmatpush2.msra.mxu0 0.0
    %3411 = vmatprep.subr.mxu0 0.0
    %3412 = vmatpush2.msra.mxu0 0.0
    %3413 = vmatprep.subr.mxu0 0.0
    %3414 = vmatpush2.msra.mxu0 0.0
    %3415 = vmatprep.subr.mxu0 0.0
    %3416 = vmatpush2.msra.mxu0 0.0
    %3417 = vmatprep.subr.mxu0 0.0
    %3418 = vmatpush2.msra.mxu0 0.0
    %3419 = vmatprep.subr.mxu0 0.0
    %3420 = vmatpush2.msra.mxu0 0.0
    %3421 = vmatprep.subr.mxu0 0.0
    %3422 = vmatpush2.msra.mxu0 0.0
    %3423 = vmatprep.subr.mxu0 0.0
    %3424 = vmatpush2.msra.mxu0 0.0
    %3425 = vmatprep.mubr.f32.mxu0 0.0
    %3426 = vmatmul.mubr.f32.gmra.mxu0 %v3359
    %v3427 = vpop.f32.mrf.mxu0
    %v3428 = vadd.f32 0.0, %v3427
    %v3429 = vpop.f32.mrf.mxu0
    %3430 = vdwg.mxu0
    %v3432 = vsel %vm105, %v2991, 0
    %3434 = vmatprep.subr.mxu0 0.0
    %3435 = vmatpush1.msra.mxu0 0.0
    %3436 = vmatprep.subr.mxu0 0.0
    %3437 = vmatpush1.msra.mxu0 0.0
    %3438 = vmatprep.subr.mxu0 0.0
    %3439 = vmatpush1.msra.mxu0 0.0
    %3440 = vmatprep.subr.mxu0 0.0
    %3441 = vmatpush1.msra.mxu0 0.0
    %3442 = vmatprep.subr.mxu0 0.0
    %3443 = vmatpush1.msra.mxu0 0.0
    %3444 = vmatprep.subr.mxu0 0.0
    %3445 = vmatpush1.msra.mxu0 0.0
    %3446 = vmatprep.subr.mxu0 0.0
    %3447 = vmatpush1.msra.mxu0 0.0
    %3448 = vmatprep.subr.mxu0 0.0
    %3449 = vmatpush1.msra.mxu0 0.0
    %3450 = vmatprep.subr.mxu0 0.0
    %3451 = vmatpush1.msra.mxu0 0.0
    %3452 = vmatprep.subr.mxu0 0.0
    %3453 = vmatpush1.msra.mxu0 0.0
    %3454 = vmatprep.subr.mxu0 0.0
    %3455 = vmatpush1.msra.mxu0 0.0
    %3456 = vmatprep.subr.mxu0 0.0
    %3457 = vmatpush1.msra.mxu0 0.0
    %3458 = vmatprep.subr.mxu0 0.0
    %3459 = vmatpush1.msra.mxu0 0.0
    %3460 = vmatprep.subr.mxu0 0.0
    %3461 = vmatpush1.msra.mxu0 0.0
    %3462 = vmatprep.subr.mxu0 0.0
    %3463 = vmatpush1.msra.mxu0 0.0
    %3464 = vmatprep.subr.mxu0 0.0
    %3465 = vmatpush1.msra.mxu0 %v2039
    %3466 = vmatprep.subr.mxu0 0.0
    %3467 = vmatpush2.msra.mxu0 0.0
    %3468 = vmatprep.subr.mxu0 0.0
    %3469 = vmatpush2.msra.mxu0 0.0
    %3470 = vmatprep.subr.mxu0 0.0
    %3471 = vmatpush2.msra.mxu0 0.0
    %3472 = vmatprep.subr.mxu0 0.0
    %3473 = vmatpush2.msra.mxu0 0.0
    %3474 = vmatprep.subr.mxu0 0.0
    %3475 = vmatpush2.msra.mxu0 0.0
    %3476 = vmatprep.subr.mxu0 0.0
    %3477 = vmatpush2.msra.mxu0 0.0
    %3478 = vmatprep.subr.mxu0 0.0
    %3479 = vmatpush2.msra.mxu0 0.0
    %3480 = vmatprep.subr.mxu0 0.0
    %3481 = vmatpush2.msra.mxu0 0.0
    %3482 = vmatprep.subr.mxu0 0.0
    %3483 = vmatpush2.msra.mxu0 0.0
    %3484 = vmatprep.subr.mxu0 0.0
    %3485 = vmatpush2.msra.mxu0 0.0
    %3486 = vmatprep.subr.mxu0 0.0
    %3487 = vmatpush2.msra.mxu0 0.0
    %3488 = vmatprep.subr.mxu0 0.0
    %3489 = vmatpush2.msra.mxu0 0.0
    %3490 = vmatprep.subr.mxu0 0.0
    %3491 = vmatpush2.msra.mxu0 0.0
    %3492 = vmatprep.subr.mxu0 0.0
    %3493 = vmatpush2.msra.mxu0 0.0
    %3494 = vmatprep.subr.mxu0 0.0
    %3495 = vmatpush2.msra.mxu0 0.0
    %3496 = vmatprep.subr.mxu0 0.0
    %3497 = vmatpush2.msra.mxu0 0.0
    %3498 = vmatprep.mubr.f32.mxu0 0.0
    %3499 = vmatmul.mubr.f32.gmra.mxu0 %v3432
    %v3500 = vpop.f32.mrf.mxu0
    %v3501 = vadd.f32 0.0, %v3500
    %v3502 = vpop.f32.mrf.mxu0
    %3503 = vdwg.mxu0
    %v3505 = vsel %vm105, %v2992, 0
    %3507 = vmatprep.subr.mxu0 0.0
    %3508 = vmatpush1.msra.mxu0 0.0
    %3509 = vmatprep.subr.mxu0 0.0
    %3510 = vmatpush1.msra.mxu0 0.0
    %3511 = vmatprep.subr.mxu0 0.0
    %3512 = vmatpush1.msra.mxu0 0.0
    %3513 = vmatprep.subr.mxu0 0.0
    %3514 = vmatpush1.msra.mxu0 0.0
    %3515 = vmatprep.subr.mxu0 0.0
    %3516 = vmatpush1.msra.mxu0 0.0
    %3517 = vmatprep.subr.mxu0 0.0
    %3518 = vmatpush1.msra.mxu0 0.0
    %3519 = vmatprep.subr.mxu0 0.0
    %3520 = vmatpush1.msra.mxu0 0.0
    %3521 = vmatprep.subr.mxu0 0.0
    %3522 = vmatpush1.msra.mxu0 0.0
    %3523 = vmatprep.subr.mxu0 0.0
    %3524 = vmatpush1.msra.mxu0 0.0
    %3525 = vmatprep.subr.mxu0 0.0
    %3526 = vmatpush1.msra.mxu0 0.0
    %3527 = vmatprep.subr.mxu0 0.0
    %3528 = vmatpush1.msra.mxu0 0.0
    %3529 = vmatprep.subr.mxu0 0.0
    %3530 = vmatpush1.msra.mxu0 0.0
    %3531 = vmatprep.subr.mxu0 0.0
    %3532 = vmatpush1.msra.mxu0 0.0
    %3533 = vmatprep.subr.mxu0 0.0
    %3534 = vmatpush1.msra.mxu0 0.0
    %3535 = vmatprep.subr.mxu0 0.0
    %3536 = vmatpush1.msra.mxu0 0.0
    %3537 = vmatprep.subr.mxu0 0.0
    %3538 = vmatpush1.msra.mxu0 %v2044
    %3539 = vmatprep.subr.mxu0 0.0
    %3540 = vmatpush2.msra.mxu0 0.0
    %3541 = vmatprep.subr.mxu0 0.0
    %3542 = vmatpush2.msra.mxu0 0.0
    %3543 = vmatprep.subr.mxu0 0.0
    %3544 = vmatpush2.msra.mxu0 0.0
    %3545 = vmatprep.subr.mxu0 0.0
    %3546 = vmatpush2.msra.mxu0 0.0
    %3547 = vmatprep.subr.mxu0 0.0
    %3548 = vmatpush2.msra.mxu0 0.0
    %3549 = vmatprep.subr.mxu0 0.0
    %3550 = vmatpush2.msra.mxu0 0.0
    %3551 = vmatprep.subr.mxu0 0.0
    %3552 = vmatpush2.msra.mxu0 0.0
    %3553 = vmatprep.subr.mxu0 0.0
    %3554 = vmatpush2.msra.mxu0 0.0
    %3555 = vmatprep.subr.mxu0 0.0
    %3556 = vmatpush2.msra.mxu0 0.0
    %3557 = vmatprep.subr.mxu0 0.0
    %3558 = vmatpush2.msra.mxu0 0.0
    %3559 = vmatprep.subr.mxu0 0.0
    %3560 = vmatpush2.msra.mxu0 0.0
    %3561 = vmatprep.subr.mxu0 0.0
    %3562 = vmatpush2.msra.mxu0 0.0
    %3563 = vmatprep.subr.mxu0 0.0
    %3564 = vmatpush2.msra.mxu0 0.0
    %3565 = vmatprep.subr.mxu0 0.0
    %3566 = vmatpush2.msra.mxu0 0.0
    %3567 = vmatprep.subr.mxu0 0.0
    %3568 = vmatpush2.msra.mxu0 0.0
    %3569 = vmatprep.subr.mxu0 0.0
    %3570 = vmatpush2.msra.mxu0 0.0
    %3571 = vmatprep.mubr.f32.mxu0 0.0
    %3572 = vmatmul.mubr.f32.gmra.mxu0 %v3505
    %v3573 = vpop.f32.mrf.mxu0
    %v3574 = vadd.f32 0.0, %v3573
    %v3575 = vpop.f32.mrf.mxu0
    %3576 = vdwg.mxu0
    %3579 = vrot.lane.b32.xlu0 %v3209, 8
    %v3580 = vpop.permute.xlu0 %3579
    %3581 = vrot.lane.b32.xlu0 %v3282, 8
    %v3582 = vpop.permute.xlu0 %3581
    %3587 = vrot.lane.b32.xlu0 %v3355, 16
    %v3588 = vpop.permute.xlu0 %3587
    %3589 = vrot.lane.b32.xlu0 %v3428, 16
    %v3590 = vpop.permute.xlu0 %3589
    %3595 = vrot.lane.b32.xlu0 %v3501, 24
    %v3596 = vpop.permute.xlu0 %3595
    %3597 = vrot.lane.b32.xlu0 %v3574, 24
    %v3598 = vpop.permute.xlu0 %3597
    %v3601 = vsel %vm105, %v3063, %v3580
    %v3602 = vsel %vm105, %v3136, %v3582
    %v3603 = vsel %vm1751, %v3601, %v3588
    %v3604 = vsel %vm1751, %v3602, %v3590
    %v3605 = vsel %vm1754, %v3603, %v3596
    %v3606 = vsel %vm1754, %v3604, %v3598
    %v3607 = vlaneseq
    %v3608 = vshrl.u32 %v3607, 7
    %v3609 = vsub.s32 1, %v3608
    %v3610 = vrot.slane %v85, %v3609
    %v3612 = vsel %vm1761, %v3605, 0
    %v3615 = vsel %vm1761, %v3606, 0
    %3617 = vmatprep.subr.mxu0 0.0
    %3618 = vmatpush1.msra.mxu0 0.0
    %3619 = vmatprep.subr.mxu0 0.0
    %3620 = vmatpush1.msra.mxu0 0.0
    %3621 = vmatprep.subr.mxu0 0.0
    %3622 = vmatpush1.msra.mxu0 0.0
    %3623 = vmatprep.subr.mxu0 0.0
    %3624 = vmatpush1.msra.mxu0 0.0
    %3625 = vmatprep.subr.mxu0 0.0
    %3626 = vmatpush1.msra.mxu0 0.0
    %3627 = vmatprep.subr.mxu0 0.0
    %3628 = vmatpush1.msra.mxu0 0.0
    %3629 = vmatprep.subr.mxu0 0.0
    %3630 = vmatpush1.msra.mxu0 0.0
    %3631 = vmatprep.subr.mxu0 0.0
    %3632 = vmatpush1.msra.mxu0 0.0
    %3633 = vmatprep.subr.mxu0 0.0
    %3634 = vmatpush1.msra.mxu0 0.0
    %3635 = vmatprep.subr.mxu0 0.0
    %3636 = vmatpush1.msra.mxu0 0.0
    %3637 = vmatprep.subr.mxu0 0.0
    %3638 = vmatpush1.msra.mxu0 0.0
    %3639 = vmatprep.subr.mxu0 0.0
    %3640 = vmatpush1.msra.mxu0 0.0
    %3641 = vmatprep.subr.mxu0 0.0
    %3642 = vmatpush1.msra.mxu0 %v68
    %3643 = vmatprep.subr.mxu0 0.0
    %3644 = vmatpush1.msra.mxu0 %v67
    %3645 = vmatprep.subr.mxu0 0.0
    %3646 = vmatpush1.msra.mxu0 %v66
    %3647 = vmatprep.subr.mxu0 0.0
    %3648 = vmatpush1.msra.mxu0 %v65
    %3649 = vmatprep.subr.mxu0 0.0
    %3650 = vmatpush2.msra.mxu0 0.0
    %3651 = vmatprep.subr.mxu0 0.0
    %3652 = vmatpush2.msra.mxu0 0.0
    %3653 = vmatprep.subr.mxu0 0.0
    %3654 = vmatpush2.msra.mxu0 0.0
    %3655 = vmatprep.subr.mxu0 0.0
    %3656 = vmatpush2.msra.mxu0 0.0
    %3657 = vmatprep.subr.mxu0 0.0
    %3658 = vmatpush2.msra.mxu0 0.0
    %3659 = vmatprep.subr.mxu0 0.0
    %3660 = vmatpush2.msra.mxu0 0.0
    %3661 = vmatprep.subr.mxu0 0.0
    %3662 = vmatpush2.msra.mxu0 0.0
    %3663 = vmatprep.subr.mxu0 0.0
    %3664 = vmatpush2.msra.mxu0 0.0
    %3665 = vmatprep.subr.mxu0 0.0
    %3666 = vmatpush2.msra.mxu0 0.0
    %3667 = vmatprep.subr.mxu0 0.0
    %3668 = vmatpush2.msra.mxu0 0.0
    %3669 = vmatprep.subr.mxu0 0.0
    %3670 = vmatpush2.msra.mxu0 0.0
    %3671 = vmatprep.subr.mxu0 0.0
    %3672 = vmatpush2.msra.mxu0 0.0
    %3673 = vmatprep.subr.mxu0 0.0
    %3674 = vmatpush2.msra.mxu0 0.0
    %3675 = vmatprep.subr.mxu0 0.0
    %3676 = vmatpush2.msra.mxu0 0.0
    %3677 = vmatprep.subr.mxu0 0.0
    %3678 = vmatpush2.msra.mxu0 0.0
    %3679 = vmatprep.subr.mxu0 0.0
    %3680 = vmatpush2.msra.mxu0 0.0
    %3681 = vmatprep.mubr.f32.mxu0 0.0
    %3682 = vmatmul.mubr.f32.gmra.mxu0 %v3612
    %v3683 = vpop.f32.mrf.mxu0
    %v3684 = vadd.f32 %v3610, %v3683
    %v3685 = vpop.f32.mrf.mxu0
    %3686 = vmatprep.mubr.f32.mxu0 0.0
    %3687 = vmatmul.mubr.f32.gmra.mxu0 %v3615
    %v3688 = vpop.f32.mrf.mxu0
    %v3689 = vadd.f32 %v3610, %v3688
    %v3690 = vpop.f32.mrf.mxu0
    %3691 = vdwg.mxu0
    %v3692 = vadd.f32 %v3684, %v1882
    %v3693 = vadd.f32 %v3689, %v1883
    %v3694 = vsel %vm1761, %v3692, 0.0
    %3695 = vadd.xlane.f32.xlu0 %v3694
    %v3696 = vpop.xlane.xlu0 %3695
    %v3697 = vsel %vm1761, %v3693, 0.0
    %3698 = vadd.xlane.f32.xlu0 %v3697
    %v3699 = vpop.xlane.xlu0 %3698
    %v3700 = vmul.f32 %v3696, %v1851
    %v3701 = vmul.f32 %v3699, %v1851
    %v3702 = vsub.f32 %v3692, %v3700
    %v3703 = vsub.f32 %v3693, %v3701
    %v3704 = vmul.f32 %v3702, %v3702
    %v3705 = vmul.f32 %v3703, %v3703
    %v3706 = vsel %vm1761, %v3704, 0.0
    %3707 = vadd.xlane.f32.xlu0 %v3706
    %v3708 = vpop.xlane.xlu0 %3707
    %v3709 = vsel %vm1761, %v3705, 0.0
    %3710 = vadd.xlane.f32.xlu0 %v3709
    %v3711 = vpop.xlane.xlu0 %3710
    %v3712 = vmul.f32 %v3708, %v1851
    %v3713 = vmul.f32 %v3711, %v1851
    %v3714 = vadd.f32 %v3712, 1e-05
    %v3715 = vadd.f32 %v3713, 1e-05
    %v3716 = vrsqrt.pop %v3714
    %v3717 = vrsqrt.pop %v3715
    %v3718 = vmul.f32 %v3702, %v3716
    %v3719 = vmul.f32 %v3703, %v3717
    %v3720 = vlaneseq
    %v3721 = vshrl.u32 %v3720, 7
    %v3722 = vsub.s32 4, %v3721
    %v3723 = vrot.slane %v85, %v3722
    %v3724 = vmul.f32 %v3718, %v3723
    %v3725 = vmul.f32 %v3719, %v3723
    %v3726 = vlaneseq
    %v3727 = vshrl.u32 %v3726, 7
    %v3728 = vsub.s32 5, %v3727
    %v3729 = vrot.slane %v85, %v3728
    %v3730 = vadd.f32 %v3724, %v3729
    %v3731 = vadd.f32 %v3725, %v3729
    %v3732 = vlaneseq
    %v3733 = vshrl.u32 %v3732, 7
    %v3734 = vsub.s32 1, %v3733
    %v3735 = vrot.slane %v86, %v3734
    %v3737 = vsel %vm1761, %v3730, 0
    %v3740 = vsel %vm1761, %v3731, 0
    %3742 = vmatprep.subr.mxu0 0.0
    %3743 = vmatpush1.msra.mxu0 0.0
    %3744 = vmatprep.subr.mxu0 0.0
    %3745 = vmatpush1.msra.mxu0 0.0
    %3746 = vmatprep.subr.mxu0 0.0
    %3747 = vmatpush1.msra.mxu0 0.0
    %3748 = vmatprep.subr.mxu0 0.0
    %3749 = vmatpush1.msra.mxu0 0.0
    %3750 = vmatprep.subr.mxu0 0.0
    %3751 = vmatpush1.msra.mxu0 0.0
    %3752 = vmatprep.subr.mxu0 0.0
    %3753 = vmatpush1.msra.mxu0 0.0
    %3754 = vmatprep.subr.mxu0 0.0
    %3755 = vmatpush1.msra.mxu0 0.0
    %3756 = vmatprep.subr.mxu0 0.0
    %3757 = vmatpush1.msra.mxu0 0.0
    %3758 = vmatprep.subr.mxu0 0.0
    %3759 = vmatpush1.msra.mxu0 0.0
    %3760 = vmatprep.subr.mxu0 0.0
    %3761 = vmatpush1.msra.mxu0 0.0
    %3762 = vmatprep.subr.mxu0 0.0
    %3763 = vmatpush1.msra.mxu0 0.0
    %3764 = vmatprep.subr.mxu0 0.0
    %3765 = vmatpush1.msra.mxu0 0.0
    %3766 = vmatprep.subr.mxu0 0.0
    %3767 = vmatpush1.msra.mxu0 %v72
    %3768 = vmatprep.subr.mxu0 0.0
    %3769 = vmatpush1.msra.mxu0 %v71
    %3770 = vmatprep.subr.mxu0 0.0
    %3771 = vmatpush1.msra.mxu0 %v70
    %3772 = vmatprep.subr.mxu0 0.0
    %3773 = vmatpush1.msra.mxu0 %v69
    %3774 = vmatprep.subr.mxu0 0.0
    %3775 = vmatpush2.msra.mxu0 0.0
    %3776 = vmatprep.subr.mxu0 0.0
    %3777 = vmatpush2.msra.mxu0 0.0
    %3778 = vmatprep.subr.mxu0 0.0
    %3779 = vmatpush2.msra.mxu0 0.0
    %3780 = vmatprep.subr.mxu0 0.0
    %3781 = vmatpush2.msra.mxu0 0.0
    %3782 = vmatprep.subr.mxu0 0.0
    %3783 = vmatpush2.msra.mxu0 0.0
    %3784 = vmatprep.subr.mxu0 0.0
    %3785 = vmatpush2.msra.mxu0 0.0
    %3786 = vmatprep.subr.mxu0 0.0
    %3787 = vmatpush2.msra.mxu0 0.0
    %3788 = vmatprep.subr.mxu0 0.0
    %3789 = vmatpush2.msra.mxu0 0.0
    %3790 = vmatprep.subr.mxu0 0.0
    %3791 = vmatpush2.msra.mxu0 0.0
    %3792 = vmatprep.subr.mxu0 0.0
    %3793 = vmatpush2.msra.mxu0 0.0
    %3794 = vmatprep.subr.mxu0 0.0
    %3795 = vmatpush2.msra.mxu0 0.0
    %3796 = vmatprep.subr.mxu0 0.0
    %3797 = vmatpush2.msra.mxu0 0.0
    %3798 = vmatprep.subr.mxu0 0.0
    %3799 = vmatpush2.msra.mxu0 0.0
    %3800 = vmatprep.subr.mxu0 0.0
    %3801 = vmatpush2.msra.mxu0 0.0
    %3802 = vmatprep.subr.mxu0 0.0
    %3803 = vmatpush2.msra.mxu0 0.0
    %3804 = vmatprep.subr.mxu0 0.0
    %3805 = vmatpush2.msra.mxu0 0.0
    %3806 = vmatprep.mubr.f32.mxu0 0.0
    %3807 = vmatmul.mubr.f32.gmra.mxu0 %v3737
    %v3808 = vpop.f32.mrf.mxu0
    %v3809 = vadd.f32 %v3735, %v3808
    %v3810 = vpop.f32.mrf.mxu0
    %3811 = vmatprep.mubr.f32.mxu0 0.0
    %3812 = vmatmul.mubr.f32.gmra.mxu0 %v3740
    %v3813 = vpop.f32.mrf.mxu0
    %v3814 = vadd.f32 %v3735, %v3813
    %v3815 = vpop.f32.mrf.mxu0
    %3816 = vdwg.mxu0
    %v3817 = vmax.f32 %v3809, 0.0
    %v3818 = vmax.f32 %v3814, 0.0
    %v3819 = vlaneseq
    %v3820 = vshrl.u32 %v3819, 7
    %v3821 = vsub.s32 2, %v3820
    %v3822 = vrot.slane %v86, %v3821
    %3823 = vmatprep.subr.mxu0 0.0
    %3824 = vmatpush1.msra.mxu0 0.0
    %3825 = vmatprep.subr.mxu0 0.0
    %3826 = vmatpush1.msra.mxu0 0.0
    %3827 = vmatprep.subr.mxu0 0.0
    %3828 = vmatpush1.msra.mxu0 0.0
    %3829 = vmatprep.subr.mxu0 0.0
    %3830 = vmatpush1.msra.mxu0 0.0
    %3831 = vmatprep.subr.mxu0 0.0
    %3832 = vmatpush1.msra.mxu0 0.0
    %3833 = vmatprep.subr.mxu0 0.0
    %3834 = vmatpush1.msra.mxu0 0.0
    %3835 = vmatprep.subr.mxu0 0.0
    %3836 = vmatpush1.msra.mxu0 0.0
    %3837 = vmatprep.subr.mxu0 0.0
    %3838 = vmatpush1.msra.mxu0 0.0
    %3839 = vmatprep.subr.mxu0 0.0
    %3840 = vmatpush1.msra.mxu0 0.0
    %3841 = vmatprep.subr.mxu0 0.0
    %3842 = vmatpush1.msra.mxu0 0.0
    %3843 = vmatprep.subr.mxu0 0.0
    %3844 = vmatpush1.msra.mxu0 0.0
    %3845 = vmatprep.subr.mxu0 0.0
    %3846 = vmatpush1.msra.mxu0 0.0
    %3847 = vmatprep.subr.mxu0 0.0
    %3848 = vmatpush1.msra.mxu0 %v76
    %3849 = vmatprep.subr.mxu0 0.0
    %3850 = vmatpush1.msra.mxu0 %v75
    %3851 = vmatprep.subr.mxu0 0.0
    %3852 = vmatpush1.msra.mxu0 %v74
    %3853 = vmatprep.subr.mxu0 0.0
    %3854 = vmatpush1.msra.mxu0 %v73
    %3855 = vmatprep.subr.mxu0 0.0
    %3856 = vmatpush2.msra.mxu0 0.0
    %3857 = vmatprep.subr.mxu0 0.0
    %3858 = vmatpush2.msra.mxu0 0.0
    %3859 = vmatprep.subr.mxu0 0.0
    %3860 = vmatpush2.msra.mxu0 0.0
    %3861 = vmatprep.subr.mxu0 0.0
    %3862 = vmatpush2.msra.mxu0 0.0
    %3863 = vmatprep.subr.mxu0 0.0
    %3864 = vmatpush2.msra.mxu0 0.0
    %3865 = vmatprep.subr.mxu0 0.0
    %3866 = vmatpush2.msra.mxu0 0.0
    %3867 = vmatprep.subr.mxu0 0.0
    %3868 = vmatpush2.msra.mxu0 0.0
    %3869 = vmatprep.subr.mxu0 0.0
    %3870 = vmatpush2.msra.mxu0 0.0
    %3871 = vmatprep.subr.mxu0 0.0
    %3872 = vmatpush2.msra.mxu0 0.0
    %3873 = vmatprep.subr.mxu0 0.0
    %3874 = vmatpush2.msra.mxu0 0.0
    %3875 = vmatprep.subr.mxu0 0.0
    %3876 = vmatpush2.msra.mxu0 0.0
    %3877 = vmatprep.subr.mxu0 0.0
    %3878 = vmatpush2.msra.mxu0 0.0
    %3879 = vmatprep.subr.mxu0 0.0
    %3880 = vmatpush2.msra.mxu0 0.0
    %3881 = vmatprep.subr.mxu0 0.0
    %3882 = vmatpush2.msra.mxu0 0.0
    %3883 = vmatprep.subr.mxu0 0.0
    %3884 = vmatpush2.msra.mxu0 0.0
    %3885 = vmatprep.subr.mxu0 0.0
    %3886 = vmatpush2.msra.mxu0 0.0
    %3887 = vmatprep.mubr.f32.mxu0 0.0
    %3888 = vmatmul.mubr.f32.gmra.mxu0 %v3737
    %v3889 = vpop.f32.mrf.mxu0
    %v3890 = vadd.f32 %v3822, %v3889
    %v3891 = vpop.f32.mrf.mxu0
    %3892 = vmatprep.mubr.f32.mxu0 0.0
    %3893 = vmatmul.mubr.f32.gmra.mxu0 %v3740
    %v3894 = vpop.f32.mrf.mxu0
    %v3895 = vadd.f32 %v3822, %v3894
    %v3896 = vpop.f32.mrf.mxu0
    %3897 = vdwg.mxu0
    %v3898 = vmax.f32 %v3890, 0.0
    %v3899 = vmax.f32 %v3895, 0.0
    %v3901 = vsel %vm1761, %v3898, 0
    %v3904 = vsel %vm1761, %v3899, 0
    %3906 = vmatprep.subr.mxu0 0.0
    %3907 = vmatpush1.msra.mxu0 0.0
    %3908 = vmatprep.subr.mxu0 0.0
    %3909 = vmatpush1.msra.mxu0 0.0
    %3910 = vmatprep.subr.mxu0 0.0
    %3911 = vmatpush1.msra.mxu0 0.0
    %3912 = vmatprep.subr.mxu0 0.0
    %3913 = vmatpush1.msra.mxu0 0.0
    %3914 = vmatprep.subr.mxu0 0.0
    %3915 = vmatpush1.msra.mxu0 0.0
    %3916 = vmatprep.subr.mxu0 0.0
    %3917 = vmatpush1.msra.mxu0 0.0
    %3918 = vmatprep.subr.mxu0 0.0
    %3919 = vmatpush1.msra.mxu0 0.0
    %3920 = vmatprep.subr.mxu0 0.0
    %3921 = vmatpush1.msra.mxu0 0.0
    %3922 = vmatprep.subr.mxu0 0.0
    %3923 = vmatpush1.msra.mxu0 0.0
    %3924 = vmatprep.subr.mxu0 0.0
    %3925 = vmatpush1.msra.mxu0 0.0
    %3926 = vmatprep.subr.mxu0 0.0
    %3927 = vmatpush1.msra.mxu0 0.0
    %3928 = vmatprep.subr.mxu0 0.0
    %3929 = vmatpush1.msra.mxu0 0.0
    %3930 = vmatprep.subr.mxu0 0.0
    %3931 = vmatpush1.msra.mxu0 %v84
    %3932 = vmatprep.subr.mxu0 0.0
    %3933 = vmatpush1.msra.mxu0 %v83
    %3934 = vmatprep.subr.mxu0 0.0
    %3935 = vmatpush1.msra.mxu0 %v82
    %3936 = vmatprep.subr.mxu0 0.0
    %3937 = vmatpush1.msra.mxu0 %v81
    %3938 = vmatprep.subr.mxu0 0.0
    %3939 = vmatpush2.msra.mxu0 0.0
    %3940 = vmatprep.subr.mxu0 0.0
    %3941 = vmatpush2.msra.mxu0 0.0
    %3942 = vmatprep.subr.mxu0 0.0
    %3943 = vmatpush2.msra.mxu0 0.0
    %3944 = vmatprep.subr.mxu0 0.0
    %3945 = vmatpush2.msra.mxu0 0.0
    %3946 = vmatprep.subr.mxu0 0.0
    %3947 = vmatpush2.msra.mxu0 0.0
    %3948 = vmatprep.subr.mxu0 0.0
    %3949 = vmatpush2.msra.mxu0 0.0
    %3950 = vmatprep.subr.mxu0 0.0
    %3951 = vmatpush2.msra.mxu0 0.0
    %3952 = vmatprep.subr.mxu0 0.0
    %3953 = vmatpush2.msra.mxu0 0.0
    %3954 = vmatprep.subr.mxu0 0.0
    %3955 = vmatpush2.msra.mxu0 0.0
    %3956 = vmatprep.subr.mxu0 0.0
    %3957 = vmatpush2.msra.mxu0 0.0
    %3958 = vmatprep.subr.mxu0 0.0
    %3959 = vmatpush2.msra.mxu0 0.0
    %3960 = vmatprep.subr.mxu0 0.0
    %3961 = vmatpush2.msra.mxu0 0.0
    %3962 = vmatprep.subr.mxu0 0.0
    %3963 = vmatpush2.msra.mxu0 0.0
    %3964 = vmatprep.subr.mxu0 0.0
    %3965 = vmatpush2.msra.mxu0 0.0
    %3966 = vmatprep.subr.mxu0 0.0
    %3967 = vmatpush2.msra.mxu0 0.0
    %3968 = vmatprep.subr.mxu0 0.0
    %3969 = vmatpush2.msra.mxu0 0.0
    %3970 = vmatprep.mubr.f32.mxu0 0.0
    %3971 = vmatmul.mubr.f32.gmra.mxu0 %v3901
    %v3972 = vpop.f32.mrf.mxu0
    %v3973 = vadd.f32 0.0, %v3972
    %v3974 = vpop.f32.mrf.mxu0
    %3975 = vmatprep.mubr.f32.mxu0 0.0
    %3976 = vmatmul.mubr.f32.gmra.mxu0 %v3904
    %v3977 = vpop.f32.mrf.mxu0
    %v3978 = vadd.f32 0.0, %v3977
    %v3979 = vpop.f32.mrf.mxu0
    %3980 = vdwg.mxu0
    %v3982 = vsel %vm1761, %v3817, 0
    %v3985 = vsel %vm1761, %v3818, 0
    %3987 = vmatprep.subr.mxu0 0.0
    %3988 = vmatpush1.msra.mxu0 0.0
    %3989 = vmatprep.subr.mxu0 0.0
    %3990 = vmatpush1.msra.mxu0 0.0
    %3991 = vmatprep.subr.mxu0 0.0
    %3992 = vmatpush1.msra.mxu0 0.0
    %3993 = vmatprep.subr.mxu0 0.0
    %3994 = vmatpush1.msra.mxu0 0.0
    %3995 = vmatprep.subr.mxu0 0.0
    %3996 = vmatpush1.msra.mxu0 0.0
    %3997 = vmatprep.subr.mxu0 0.0
    %3998 = vmatpush1.msra.mxu0 0.0
    %3999 = vmatprep.subr.mxu0 0.0
    %4000 = vmatpush1.msra.mxu0 0.0
    %4001 = vmatprep.subr.mxu0 0.0
    %4002 = vmatpush1.msra.mxu0 0.0
    %4003 = vmatprep.subr.mxu0 0.0
    %4004 = vmatpush1.msra.mxu0 0.0
    %4005 = vmatprep.subr.mxu0 0.0
    %4006 = vmatpush1.msra.mxu0 0.0
    %4007 = vmatprep.subr.mxu0 0.0
    %4008 = vmatpush1.msra.mxu0 0.0
    %4009 = vmatprep.subr.mxu0 0.0
    %4010 = vmatpush1.msra.mxu0 0.0
    %4011 = vmatprep.subr.mxu0 0.0
    %4012 = vmatpush1.msra.mxu0 %v80
    %4013 = vmatprep.subr.mxu0 0.0
    %4014 = vmatpush1.msra.mxu0 %v79
    %4015 = vmatprep.subr.mxu0 0.0
    %4016 = vmatpush1.msra.mxu0 %v78
    %4017 = vmatprep.subr.mxu0 0.0
    %4018 = vmatpush1.msra.mxu0 %v77
    %4019 = vmatprep.subr.mxu0 0.0
    %4020 = vmatpush2.msra.mxu0 0.0
    %4021 = vmatprep.subr.mxu0 0.0
    %4022 = vmatpush2.msra.mxu0 0.0
    %4023 = vmatprep.subr.mxu0 0.0
    %4024 = vmatpush2.msra.mxu0 0.0
    %4025 = vmatprep.subr.mxu0 0.0
    %4026 = vmatpush2.msra.mxu0 0.0
    %4027 = vmatprep.subr.mxu0 0.0
    %4028 = vmatpush2.msra.mxu0 0.0
    %4029 = vmatprep.subr.mxu0 0.0
    %4030 = vmatpush2.msra.mxu0 0.0
    %4031 = vmatprep.subr.mxu0 0.0
    %4032 = vmatpush2.msra.mxu0 0.0
    %4033 = vmatprep.subr.mxu0 0.0
    %4034 = vmatpush2.msra.mxu0 0.0
    %4035 = vmatprep.subr.mxu0 0.0
    %4036 = vmatpush2.msra.mxu0 0.0
    %4037 = vmatprep.subr.mxu0 0.0
    %4038 = vmatpush2.msra.mxu0 0.0
    %4039 = vmatprep.subr.mxu0 0.0
    %4040 = vmatpush2.msra.mxu0 0.0
    %4041 = vmatprep.subr.mxu0 0.0
    %4042 = vmatpush2.msra.mxu0 0.0
    %4043 = vmatprep.subr.mxu0 0.0
    %4044 = vmatpush2.msra.mxu0 0.0
    %4045 = vmatprep.subr.mxu0 0.0
    %4046 = vmatpush2.msra.mxu0 0.0
    %4047 = vmatprep.subr.mxu0 0.0
    %4048 = vmatpush2.msra.mxu0 0.0
    %4049 = vmatprep.subr.mxu0 0.0
    %4050 = vmatpush2.msra.mxu0 0.0
    %4051 = vmatprep.mubr.f32.mxu0 0.0
    %4052 = vmatmul.mubr.f32.gmra.mxu0 %v3982
    %v4053 = vpop.f32.mrf.mxu0
    %v4054 = vadd.f32 %v3973, %v4053
    %v4055 = vpop.f32.mrf.mxu0
    %4056 = vmatprep.mubr.f32.mxu0 0.0
    %4057 = vmatmul.mubr.f32.gmra.mxu0 %v3985
    %v4058 = vpop.f32.mrf.mxu0
    %v4059 = vadd.f32 %v3978, %v4058
    %v4060 = vpop.f32.mrf.mxu0
    %4061 = vdwg.mxu0
    %v4062 = vlaneseq
    %v4063 = vshrl.u32 %v4062, 7
    %v4064 = vsub.s32 0, %v4063
    %v4065 = vrot.slane %v86, %v4064
    %v4066 = vadd.f32 %v4054, %v4065
    %v4067 = vadd.f32 %v4059, %v4065
    %v4068 = vadd.f32 %v4066, %v3730
    %v4069 = vadd.f32 %v4067, %v3731
    %v4070 = vsel %vm1761, %v4068, 0.0
    %4071 = vadd.xlane.f32.xlu0 %v4070
    %v4072 = vpop.xlane.xlu0 %4071
    %v4073 = vsel %vm1761, %v4069, 0.0
    %4074 = vadd.xlane.f32.xlu0 %v4073
    %v4075 = vpop.xlane.xlu0 %4074
    %v4076 = vmul.f32 %v4072, %v1851
    %v4077 = vmul.f32 %v4075, %v1851
    %v4078 = vsub.f32 %v4068, %v4076
    %v4079 = vsub.f32 %v4069, %v4077
    %v4080 = vmul.f32 %v4078, %v4078
    %v4081 = vmul.f32 %v4079, %v4079
    %v4082 = vsel %vm1761, %v4080, 0.0
    %4083 = vadd.xlane.f32.xlu0 %v4082
    %v4084 = vpop.xlane.xlu0 %4083
    %v4085 = vsel %vm1761, %v4081, 0.0
    %4086 = vadd.xlane.f32.xlu0 %v4085
    %v4087 = vpop.xlane.xlu0 %4086
    %v4088 = vmul.f32 %v4084, %v1851
    %v4089 = vmul.f32 %v4087, %v1851
    %v4090 = vadd.f32 %v4088, 1e-05
    %v4091 = vadd.f32 %v4089, 1e-05
    %v4092 = vrsqrt.pop %v4090
    %v4093 = vrsqrt.pop %v4091
    %v4094 = vmul.f32 %v4078, %v4092
    %v4095 = vmul.f32 %v4079, %v4093
    %v4096 = vlaneseq
    %v4097 = vshrl.u32 %v4096, 7
    %v4098 = vsub.s32 6, %v4097
    %v4099 = vrot.slane %v85, %v4098
    %v4100 = vmul.f32 %v4094, %v4099
    %v4101 = vmul.f32 %v4095, %v4099
    %v4102 = vlaneseq
    %v4103 = vshrl.u32 %v4102, 7
    %v4104 = vsub.s32 7, %v4103
    %v4105 = vrot.slane %v85, %v4104
    %v4106 = vadd.f32 %v4100, %v4105
    %v4107 = vadd.f32 %v4101, %v4105
    %4108 = vst.msk [vmem:[#allocation7] sm:$0xff] %vm1761, %v4106
    %4109 = vst.msk [vmem:[#allocation7 + $0x8] sm:$0xff] %vm1761, %v4107
    // Predicated region
    $region30: #{tpu_custom_call.1} parent=1 // pred_check
      _
    $region31: #{tpu_custom_call.1} parent=1 // pred_check_branch
      %4111 = sbr.rel (0) target = $region33
    $region32: #{tpu_custom_call.1} parent=1 // pred_region
      %s4113 = ssub.s32 256, 256
      %4114 = vsyncadd [#allocation4], %s4113
      %s4115 = sshll.u32 [#allocation7], 4
      %s4116 = int_to_ptr.vmem [resolvable:$true] %s4115
      %4121 = dma.vmem_to_hbm [thread:$0]  %s4116, 256, %s5, [#allocation4], 128, 128, 8
    $region33: #{tpu_custom_call.1} parent=1 // pred_fallthru
      _
    // Predicated region
    $region34: #{tpu_custom_call.1} parent=1 // pred_check
      _
    $region35: #{tpu_custom_call.1} parent=1 // pred_check_branch
      %4123 = sbr.rel (0) target = $region37
    $region36: #{tpu_custom_call.1} parent=1 // pred_region
      %4124 = dma.done [#allocation4], 256
    $region37: #{tpu_custom_call.1} parent=1 // pred_fallthru
      _
    %4125 = vsyncpa [#allocation3], 1
    %4126 = vsyncpa [#allocation6], 1
    %4127 = vsyncpa [#allocation4], 1

</llo_original>
